<compile_context>
chip_gen: v7x
topology: tpu7x:2x2x1
jax: 0.10.0
libtpu: 0.0.40
codegen_flags: <defaults>
</compile_context>

<pallas_src>
import functools

import jax
import jax.numpy as jnp
from jax import lax
from jax.experimental import pallas as pl
from jax.experimental.pallas import tpu as pltpu


def _bilinear_matrix(n_in):
    """(2*n_in, n_in) interpolation matrix for scale_factor=2, align_corners=True."""
    n_out = 2 * n_in
    if n_in == 1:
        return jnp.ones((n_out, 1), jnp.float32)
    src = jnp.arange(n_out, dtype=jnp.float32) * (n_in - 1) / (n_out - 1)
    i0 = jnp.clip(jnp.floor(src).astype(jnp.int32), 0, n_in - 2)
    i1 = i0 + 1
    frac = src - i0.astype(jnp.float32)
    m = jnp.zeros((n_out, n_in), jnp.float32)
    rows = jnp.arange(n_out)
    m = m.at[rows, i0].add(1.0 - frac)
    m = m.at[rows, i1].add(frac)
    return m


def _band_matrices(w_hwio, W):
    """Fold the 3 kx taps + channel mixing of a 3x3 conv into one (W*C, W*Co)
    band-block matrix per ky tap.  W-direction zero padding is encoded by the
    truncated shifted-identity kron factor."""
    w = w_hwio.astype(jnp.float32)
    mats = []
    for ky in range(3):
        m = 0.0
        for kx in range(3):
            # output column w_out reads input column w_in = w_out + kx - 1
            shift = jnp.eye(W, k=-(kx - 1), dtype=jnp.float32)      # [w_in, w_out]
            m = m + jnp.kron(shift, w[ky, kx])                      # (W*C, W*Co)
        mats.append(m)
    return jnp.stack(mats)                                          # (3, W*C, W*Co)


def _ffb_kernel(x0_ref, x1_ref, bands_ref, cbias_ref, owmwf_ref, outb_ref,
                mhb_ref, o_ref, *, img_h):
    M, WC = x0_ref.shape                      # M = batch_tile * H (folded rows)
    cdt = bands_ref.dtype                     # matmul operand dtype (bf16 or f32)

    # Per-image row index of every folded row; masks keep the ky row shifts from
    # bleeding across image boundaries.  Hoisted once, reused by all 4 convs.
    row = lax.broadcasted_iota(jnp.int32, (M, 1), 0) % img_h
    dn_keep = row != 0
    up_keep = row != img_h - 1

    def shift_rows(x, shift, keep):
        # XLU sublane rotate + VPU select: no concat/copy on the vector ld/st slots.
        return jnp.where(keep, pltpu.roll(x, shift, axis=0), 0.0)

    def conv3x3(x, idx):
        # x: (M, WC) f32.  Three MXU matmuls, one per ky tap; the kx taps +
        # channel mixing live in the precomputed band-block matrices (the
        # W-direction zero padding is already inside them).
        x_dn = shift_rows(x, 1, dn_keep)        # row h sees x[h-1]
        x_up = shift_rows(x, M - 1, up_keep)    # row h sees x[h+1]
        acc = jnp.dot(x_dn.astype(cdt), bands_ref[idx, 0],
                      preferred_element_type=jnp.float32)
        acc = acc + jnp.dot(x.astype(cdt), bands_ref[idx, 1],
                            preferred_element_type=jnp.float32)
        acc = acc + jnp.dot(x_up.astype(cdt), bands_ref[idx, 2],
                            preferred_element_type=jnp.float32)
        return acc + cbias_ref[idx]             # (1, WC) bias broadcast

    def rcu(x, idx0):
        out = jnp.maximum(x, 0.0)
        out = conv3x3(out, idx0)
        out = jnp.maximum(out, 0.0)
        out = conv3x3(out, idx0 + 1)
        return out + x

    x0 = x0_ref[...].astype(jnp.float32)
    x1 = x1_ref[...].astype(jnp.float32)

    out = x0 + rcu(x1, 0)          # skip_add(xs[0], resConfUnit1(xs[1]))
    out = rcu(out, 2)              # resConfUnit2

    # Fused (1x1 out_conv ∘ W-direction bilinear x2): the 1x1 conv is commuted in
    # front of the upsample (both linear) and pre-multiplied into the W-interp
    # matrix on the host -> a single (M, WC) x (WC, 2*WCo) matmul.
    out = jnp.dot(out.astype(cdt), owmwf_ref[...], preferred_element_type=jnp.float32)
    # H-direction bilinear x2, block-diagonal over the folded batch (K = M).
    out = jnp.dot(mhb_ref[...], out.astype(cdt), preferred_element_type=jnp.float32)
    out = out + outb_ref[...]                                       # out_conv bias
    o_ref[...] = out.astype(o_ref.dtype)


def _default_batch_tile(B, H, target_rows=128):
    """Smallest divisor of B whose folded row count reaches an MXU-friendly M;
    multiple grid steps also keep both v7x TensorCores busy ("parallel" axis)."""
    for bt in range(1, B + 1):
        if B % bt == 0 and bt * H >= target_rows:
            return bt
    return B


def feature_fusion_block(x0_nhwc, x1_nhwc, params, *,
                         matmul_dtype=jnp.bfloat16, batch_tile=None):
    """Two-input FeatureFusionBlock_custom forward (deconv=False, bn=False,
    expand=False, align_corners=True, ReLU).  NHWC in / NHWC out."""
    # TODO(synk): single-input path (len(xs)==1, skips resConfUnit1) not exposed here.
    B, H, W, C = x0_nhwc.shape
    Co = params["w_out"].shape[1]
    WC, WCo = W * C, W * Co
    bt = batch_tile if batch_tile is not None else _default_batch_tile(B, H)
    assert B % bt == 0, (B, bt)
    M = bt * H
    f32 = jnp.float32

    # ---- constant folding (done once per checkpoint in a real model) ----
    bands = jnp.stack([_band_matrices(params[k], W)
                       for k in ("w1_1", "w1_2", "w2_1", "w2_2")]
                      ).astype(matmul_dtype)                                   # (4,3,WC,WC)
    cbias = jnp.stack([jnp.tile(params[k].astype(f32).reshape(-1), W)[None, :]
                       for k in ("b1_1", "b1_2", "b2_1", "b2_2")])             # (4,1,WC) f32
    mw = _bilinear_matrix(W)                                                   # (2W, W)
    # kron(I_W, w_out) @ kron(mw.T, I_Co) == kron(mw.T, w_out): fused out_conv + W-upsample.
    ow_mwf = jnp.kron(mw.T, params["w_out"].astype(f32)).astype(matmul_dtype)  # (WC, 2WCo)
    outb = jnp.tile(params["b_out"].astype(f32).reshape(-1), 2 * W)[None, :]   # (1, 2WCo) f32
    # Block-diagonal H-interp over the folded batch tile -> lane-dense, K = bt*H.
    mh_block = jnp.kron(jnp.eye(bt, dtype=f32),
                        _bilinear_matrix(H)).astype(matmul_dtype)              # (2M, M)

    # Lane-dense flat layout (rows, W*C); contiguous reshape, no transpose.
    x0f = x0_nhwc.reshape(B * H, WC)
    x1f = x1_nhwc.reshape(B * H, WC)

    def const_spec(shape):
        zeros = (0,) * len(shape)
        # Constant across the grid -> single-buffer (no wasted double-buffer VMEM).
        return pl.BlockSpec(shape, lambda b, zeros=zeros: zeros,
                            pipeline_mode=pl.Buffered(1))

    in_specs = [
        pl.BlockSpec((M, WC), lambda b: (b, 0)),
        pl.BlockSpec((M, WC), lambda b: (b, 0)),
        const_spec((4, 3, WC, WC)),
        const_spec((4, 1, WC)),
        const_spec((WC, 2 * WCo)),
        const_spec((1, 2 * WCo)),
        const_spec((2 * M, M)),
    ]
    out_spec = pl.BlockSpec((2 * M, 2 * WCo), lambda b: (b, 0))

    # TODO(synk): at production DPT sizes (C~256, H,W~96) the (W*C)^2 band matrices
    # are infeasible — switch to per-(ky,kx) CxC channel matmuls (ideal 256x256 MXU
    # shape), a row-tiled grid with a 1-row halo, single-buffered weights, and size
    # the row tile against v7x's 64 MiB VMEM (vs 128 MiB on v5e/v6e), raising
    # vmem_limit_bytes as needed.
    y_flat = pl.pallas_call(
        functools.partial(_ffb_kernel, img_h=H),
        out_shape=jax.ShapeDtypeStruct((B * 2 * H, 2 * WCo), x0_nhwc.dtype),
        grid=(B // bt,),
        in_specs=in_specs,
        out_specs=out_spec,
        compiler_params=pltpu.CompilerParams(dimension_semantics=("parallel",)),
    )(x0f, x1f, bands, cbias, ow_mwf, outb, mh_block)

    return y_flat.reshape(B, 2 * H, 2 * W, Co)


def feature_fusion_block_nchw(x0_nchw, x1_nchw, params, **kw):
    """Thin NCHW wrapper for PyTorch layout parity (layout glue only)."""
    y = feature_fusion_block(jnp.transpose(x0_nchw, (0, 2, 3, 1)),
                             jnp.transpose(x1_nchw, (0, 2, 3, 1)), params, **kw)
    return jnp.transpose(y, (0, 3, 1, 2))


def _reference_nhwc(x0, x1, params):
    """Pure-JAX (XLA) reference of the same forward pass (PyTorch op order)."""
    def conv3x3(x, w, b):
        y = lax.conv_general_dilated(x.astype(jnp.float32), w.astype(jnp.float32),
                                     (1, 1), "SAME",
                                     dimension_numbers=("NHWC", "HWIO", "NHWC"))
        return y + b.reshape(-1)

    def rcu(x, wa, ba, wb, bb):
        o = jnp.maximum(x, 0.0)
        o = conv3x3(o, wa, ba)
        o = jnp.maximum(o, 0.0)
        o = conv3x3(o, wb, bb)
        return o + x

    x0 = x0.astype(jnp.float32)
    x1 = x1.astype(jnp.float32)
    out = x0 + rcu(x1, params["w1_1"], params["b1_1"], params["w1_2"], params["b1_2"])
    out = rcu(out, params["w2_1"], params["b2_1"], params["w2_2"], params["b2_2"])
    H, W = out.shape[1], out.shape[2]
    mh = _bilinear_matrix(H)
    mw = _bilinear_matrix(W)
    up = jnp.einsum("oh,bhwc->bowc", mh, out)
    up = jnp.einsum("pw,bowc->bopc", mw, up)
    return jnp.einsum("bopc,cd->bopd", up, params["w_out"]) + params["b_out"].reshape(-1)


if __name__ == "__main__":
    # W*C = 128 -> fully lane-dense flat layout; B*H = 128 -> M=128 rows per matmul.
    B, C, H, W = 8, 8, 16, 16
    key = jax.random.PRNGKey(0)
    ks = jax.random.split(key, 12)
    s = 0.1
    # Conv weights stored HWIO: (kh, kw, Cin, Cout) (PyTorch OIHW -> transpose (2,3,1,0)).
    params = {
        "w1_1": jax.random.normal(ks[0], (3, 3, C, C), jnp.float32) * s,
        "b1_1": jax.random.normal(ks[1], (1, C), jnp.float32) * s,
        "w1_2": jax.random.normal(ks[2], (3, 3, C, C), jnp.float32) * s,
        "b1_2": jax.random.normal(ks[3], (1, C), jnp.float32) * s,
        "w2_1": jax.random.normal(ks[4], (3, 3, C, C), jnp.float32) * s,
        "b2_1": jax.random.normal(ks[5], (1, C), jnp.float32) * s,
        "w2_2": jax.random.normal(ks[6], (3, 3, C, C), jnp.float32) * s,
        "b2_2": jax.random.normal(ks[7], (1, C), jnp.float32) * s,
        "w_out": jax.random.normal(ks[8], (C, C), jnp.float32) * s,   # expand=False -> Cout=C
        "b_out": jax.random.normal(ks[9], (1, C), jnp.float32) * s,
    }
    x0_nchw = jax.random.normal(ks[10], (B, C, H, W), jnp.float32)
    x1_nchw = jax.random.normal(ks[11], (B, C, H, W), jnp.float32)

    x0 = jnp.transpose(x0_nchw, (0, 2, 3, 1))
    x1 = jnp.transpose(x1_nchw, (0, 2, 3, 1))
    ref_nhwc = _reference_nhwc(x0, x1, params)

    # Exactness check: f32 matmul operands must match the XLA reference tightly.
    y_f32 = jax.block_until_ready(
        feature_fusion_block(x0, x1, params, matmul_dtype=jnp.float32))
    assert y_f32.shape == (B, 2 * H, 2 * W, C), y_f32.shape
    err32 = float(jnp.max(jnp.abs(y_f32 - ref_nhwc)))
    assert jnp.allclose(y_f32, ref_nhwc, atol=1e-3, rtol=1e-3), err32

    # Performance path: bf16 matmul operands, f32 accumulation (looser tolerance).
    y_bf16 = jax.block_until_ready(feature_fusion_block(x0, x1, params))
    errbf = float(jnp.max(jnp.abs(y_bf16 - ref_nhwc)))
    assert jnp.allclose(y_bf16, ref_nhwc, atol=5e-2, rtol=5e-2), errbf

    # NCHW convenience wrapper (PyTorch layout parity), bf16 fast path.
    y_nchw = jax.block_until_ready(feature_fusion_block_nchw(x0_nchw, x1_nchw, params))
    assert y_nchw.shape == (B, C, 2 * H, 2 * W), y_nchw.shape
    assert jnp.allclose(y_nchw, jnp.transpose(ref_nhwc, (0, 3, 1, 2)),
                        atol=5e-2, rtol=5e-2)

    print("KERNEL_OK")
</pallas_src>

<mosaic_0001>
module attributes {stable_mosaic.version = 11 : i64} {
  func.func @_ffb_kernel(%arg0: i32, %arg1: memref<128x128xf32, #tpu.memory_space<vmem>>, %arg2: memref<128x128xf32, #tpu.memory_space<vmem>>, %arg3: memref<4x3x128x128xf32, #tpu.memory_space<vmem>>, %arg4: memref<4x1x128xf32, #tpu.memory_space<vmem>>, %arg5: memref<128x256xf32, #tpu.memory_space<vmem>>, %arg6: memref<1x256xf32, #tpu.memory_space<vmem>>, %arg7: memref<256x128xf32, #tpu.memory_space<vmem>>, %arg8: memref<256x256xf32, #tpu.memory_space<vmem>>) attributes {dimension_semantics = [#tpu.dimension_semantics<parallel>], iteration_bounds = array<i64: 1>, scalar_prefetch = 0 : i64, scratch_operands = 0 : i64, tpu.core_type = #tpu.core_type<tc>, window_params = [{transform_indices = @transform_0, window_bounds = array<i64: 128, 128>}, {transform_indices = @transform_1, window_bounds = array<i64: 128, 128>}, {pipeline_mode = #tpu.pipeline_mode<synchronous>, transform_indices = @transform_2, window_bounds = array<i64: 4, 3, 128, 128>}, {pipeline_mode = #tpu.pipeline_mode<synchronous>, transform_indices = @transform_3, window_bounds = array<i64: 4, 1, 128>}, {pipeline_mode = #tpu.pipeline_mode<synchronous>, transform_indices = @transform_4, window_bounds = array<i64: 128, 256>}, {pipeline_mode = #tpu.pipeline_mode<synchronous>, transform_indices = @transform_5, window_bounds = array<i64: 1, 256>}, {pipeline_mode = #tpu.pipeline_mode<synchronous>, transform_indices = @transform_6, window_bounds = array<i64: 256, 128>}, {transform_indices = @transform_7, window_bounds = array<i64: 256, 256>}]} {
    %0 = tpu.iota {dimensions = array<i32: 0>} : vector<128x1xi32>
    %c16_i32 = arith.constant 16 : i32
    %c0_i32 = arith.constant 0 : i32
    %1 = arith.cmpi eq, %c16_i32, %c0_i32 : i32
    %c1_i32 = arith.constant 1 : i32
    %2 = arith.select %1, %c1_i32, %c16_i32 : i32
    %3 = vector.broadcast %2 : i32 to vector<128x1xi32>
    %4 = arith.remsi %0, %3 : vector<128x1xi32>
    %c0_i32_0 = arith.constant 0 : i32
    %5 = vector.broadcast %c0_i32_0 : i32 to vector<128x1xi32>
    %6 = arith.cmpi ne, %4, %5 : vector<128x1xi32>
    %c0_i32_1 = arith.constant 0 : i32
    %7 = vector.broadcast %c0_i32_1 : i32 to vector<128x1xi32>
    %8 = arith.cmpi slt, %4, %7 : vector<128x1xi32>
    %c0_i32_2 = arith.constant 0 : i32
    %9 = arith.cmpi slt, %2, %c0_i32_2 : i32
    %10 = vector.broadcast %9 : i1 to vector<128x1xi1>
    %11 = vector.broadcast %10 : vector<128x1xi1> to vector<128x1xi1>
    %12 = arith.xori %8, %11 : vector<128x1xi1>
    %13 = arith.andi %12, %6 : vector<128x1xi1>
    %14 = vector.broadcast %2 : i32 to vector<128x1xi32>
    %15 = arith.addi %4, %14 : vector<128x1xi32>
    %16 = arith.select %13, %15, %4 : vector<128x1xi1>, vector<128x1xi32>
    %c0_i32_3 = arith.constant 0 : i32
    %17 = vector.broadcast %c0_i32_3 : i32 to vector<128x1xi32>
    %18 = arith.cmpi ne, %16, %17 : vector<128x1xi32>
    %c15_i32 = arith.constant 15 : i32
    %19 = vector.broadcast %c15_i32 : i32 to vector<128x1xi32>
    %20 = arith.cmpi ne, %16, %19 : vector<128x1xi32>
    %c0 = arith.constant 0 : index
    %c0_4 = arith.constant 0 : index
    %21 = vector.load %arg1[%c0, %c0_4] : memref<128x128xf32, #tpu.memory_space<vmem>>, vector<128x128xf32>
    %c0_5 = arith.constant 0 : index
    %c0_6 = arith.constant 0 : index
    %22 = vector.load %arg2[%c0_5, %c0_6] : memref<128x128xf32, #tpu.memory_space<vmem>>, vector<128x128xf32>
    %cst = arith.constant 0.000000e+00 : f32
    %23 = vector.broadcast %cst : f32 to vector<128x128xf32>
    %24 = arith.maximumf %22, %23 : vector<128x128xf32>
    %c1_i32_7 = arith.constant 1 : i32
    %25 = tpu.dynamic_rotate %24 by %c1_i32_7 dim 0 : vector<128x128xf32>, i32 -> vector<128x128xf32>
    %cst_8 = arith.constant 0.000000e+00 : f32
    %26 = vector.shape_cast %18 : vector<128x1xi1> to vector<128x1xi1>
    %27 = vector.broadcast %26 : vector<128x1xi1> to vector<128x128xi1>
    %28 = vector.broadcast %cst_8 : f32 to vector<128x128xf32>
    %29 = arith.select %27, %25, %28 : vector<128x128xi1>, vector<128x128xf32>
    %c127_i32 = arith.constant 127 : i32
    %30 = tpu.dynamic_rotate %24 by %c127_i32 dim 0 : vector<128x128xf32>, i32 -> vector<128x128xf32>
    %cst_9 = arith.constant 0.000000e+00 : f32
    %31 = vector.shape_cast %20 : vector<128x1xi1> to vector<128x1xi1>
    %32 = vector.broadcast %31 : vector<128x1xi1> to vector<128x128xi1>
    %33 = vector.broadcast %cst_9 : f32 to vector<128x128xf32>
    %34 = arith.select %32, %30, %33 : vector<128x128xi1>, vector<128x128xf32>
    %c0_10 = arith.constant 0 : index
    %c0_11 = arith.constant 0 : index
    %c0_12 = arith.constant 0 : index
    %c0_13 = arith.constant 0 : index
    %35 = vector.load %arg3[%c0_10, %c0_11, %c0_12, %c0_13] : memref<4x3x128x128xf32, #tpu.memory_space<vmem>>, vector<1x1x128x128xf32>
    %36 = vector.shape_cast %35 : vector<1x1x128x128xf32> to vector<128x128xf32>
    %cst_14 = arith.constant dense<0.000000e+00> : vector<128x128xf32>
    %37 = tpu.matmul %29, %36, %cst_14 {dimension_numbers = #tpu.dot_dimension_numbers<[1], [0], [0], [1], [0, 0, 1, 1], [], []>} : vector<128x128xf32>, vector<128x128xf32>, vector<128x128xf32> -> vector<128x128xf32>
    %c0_15 = arith.constant 0 : index
    %c1 = arith.constant 1 : index
    %c0_16 = arith.constant 0 : index
    %c0_17 = arith.constant 0 : index
    %38 = vector.load %arg3[%c0_15, %c1, %c0_16, %c0_17] : memref<4x3x128x128xf32, #tpu.memory_space<vmem>>, vector<1x1x128x128xf32>
    %39 = vector.shape_cast %38 : vector<1x1x128x128xf32> to vector<128x128xf32>
    %cst_18 = arith.constant dense<0.000000e+00> : vector<128x128xf32>
    %40 = tpu.matmul %24, %39, %cst_18 {dimension_numbers = #tpu.dot_dimension_numbers<[1], [0], [0], [1], [0, 0, 1, 1], [], []>} : vector<128x128xf32>, vector<128x128xf32>, vector<128x128xf32> -> vector<128x128xf32>
    %41 = arith.addf %37, %40 : vector<128x128xf32>
    %c0_19 = arith.constant 0 : index
    %c2 = arith.constant 2 : index
    %c0_20 = arith.constant 0 : index
    %c0_21 = arith.constant 0 : index
    %42 = vector.load %arg3[%c0_19, %c2, %c0_20, %c0_21] : memref<4x3x128x128xf32, #tpu.memory_space<vmem>>, vector<1x1x128x128xf32>
    %43 = vector.shape_cast %42 : vector<1x1x128x128xf32> to vector<128x128xf32>
    %cst_22 = arith.constant dense<0.000000e+00> : vector<128x128xf32>
    %44 = tpu.matmul %34, %43, %cst_22 {dimension_numbers = #tpu.dot_dimension_numbers<[1], [0], [0], [1], [0, 0, 1, 1], [], []>} : vector<128x128xf32>, vector<128x128xf32>, vector<128x128xf32> -> vector<128x128xf32>
    %45 = arith.addf %41, %44 : vector<128x128xf32>
    %c0_23 = arith.constant 0 : index
    %c0_24 = arith.constant 0 : index
    %c0_25 = arith.constant 0 : index
    %46 = vector.load %arg4[%c0_23, %c0_24, %c0_25] : memref<4x1x128xf32, #tpu.memory_space<vmem>>, vector<1x1x128xf32>
    %47 = vector.shape_cast %46 : vector<1x1x128xf32> to vector<1x128xf32>
    %48 = vector.broadcast %47 : vector<1x128xf32> to vector<128x128xf32>
    %49 = arith.addf %45, %48 : vector<128x128xf32>
    %cst_26 = arith.constant 0.000000e+00 : f32
    %50 = vector.broadcast %cst_26 : f32 to vector<128x128xf32>
    %51 = arith.maximumf %49, %50 : vector<128x128xf32>
    %c1_i32_27 = arith.constant 1 : i32
    %52 = tpu.dynamic_rotate %51 by %c1_i32_27 dim 0 : vector<128x128xf32>, i32 -> vector<128x128xf32>
    %cst_28 = arith.constant 0.000000e+00 : f32
    %53 = vector.shape_cast %18 : vector<128x1xi1> to vector<128x1xi1>
    %54 = vector.broadcast %53 : vector<128x1xi1> to vector<128x128xi1>
    %55 = vector.broadcast %cst_28 : f32 to vector<128x128xf32>
    %56 = arith.select %54, %52, %55 : vector<128x128xi1>, vector<128x128xf32>
    %c127_i32_29 = arith.constant 127 : i32
    %57 = tpu.dynamic_rotate %51 by %c127_i32_29 dim 0 : vector<128x128xf32>, i32 -> vector<128x128xf32>
    %cst_30 = arith.constant 0.000000e+00 : f32
    %58 = vector.shape_cast %20 : vector<128x1xi1> to vector<128x1xi1>
    %59 = vector.broadcast %58 : vector<128x1xi1> to vector<128x128xi1>
    %60 = vector.broadcast %cst_30 : f32 to vector<128x128xf32>
    %61 = arith.select %59, %57, %60 : vector<128x128xi1>, vector<128x128xf32>
    %c1_31 = arith.constant 1 : index
    %c0_32 = arith.constant 0 : index
    %c0_33 = arith.constant 0 : index
    %c0_34 = arith.constant 0 : index
    %62 = vector.load %arg3[%c1_31, %c0_32, %c0_33, %c0_34] : memref<4x3x128x128xf32, #tpu.memory_space<vmem>>, vector<1x1x128x128xf32>
    %63 = vector.shape_cast %62 : vector<1x1x128x128xf32> to vector<128x128xf32>
    %cst_35 = arith.constant dense<0.000000e+00> : vector<128x128xf32>
    %64 = tpu.matmul %56, %63, %cst_35 {dimension_numbers = #tpu.dot_dimension_numbers<[1], [0], [0], [1], [0, 0, 1, 1], [], []>} : vector<128x128xf32>, vector<128x128xf32>, vector<128x128xf32> -> vector<128x128xf32>
    %c1_36 = arith.constant 1 : index
    %c1_37 = arith.constant 1 : index
    %c0_38 = arith.constant 0 : index
    %c0_39 = arith.constant 0 : index
    %65 = vector.load %arg3[%c1_36, %c1_37, %c0_38, %c0_39] : memref<4x3x128x128xf32, #tpu.memory_space<vmem>>, vector<1x1x128x128xf32>
    %66 = vector.shape_cast %65 : vector<1x1x128x128xf32> to vector<128x128xf32>
    %cst_40 = arith.constant dense<0.000000e+00> : vector<128x128xf32>
    %67 = tpu.matmul %51, %66, %cst_40 {dimension_numbers = #tpu.dot_dimension_numbers<[1], [0], [0], [1], [0, 0, 1, 1], [], []>} : vector<128x128xf32>, vector<128x128xf32>, vector<128x128xf32> -> vector<128x128xf32>
    %68 = arith.addf %64, %67 : vector<128x128xf32>
    %c1_41 = arith.constant 1 : index
    %c2_42 = arith.constant 2 : index
    %c0_43 = arith.constant 0 : index
    %c0_44 = arith.constant 0 : index
    %69 = vector.load %arg3[%c1_41, %c2_42, %c0_43, %c0_44] : memref<4x3x128x128xf32, #tpu.memory_space<vmem>>, vector<1x1x128x128xf32>
    %70 = vector.shape_cast %69 : vector<1x1x128x128xf32> to vector<128x128xf32>
    %cst_45 = arith.constant dense<0.000000e+00> : vector<128x128xf32>
    %71 = tpu.matmul %61, %70, %cst_45 {dimension_numbers = #tpu.dot_dimension_numbers<[1], [0], [0], [1], [0, 0, 1, 1], [], []>} : vector<128x128xf32>, vector<128x128xf32>, vector<128x128xf32> -> vector<128x128xf32>
    %72 = arith.addf %68, %71 : vector<128x128xf32>
    %c1_46 = arith.constant 1 : index
    %c0_47 = arith.constant 0 : index
    %c0_48 = arith.constant 0 : index
    %73 = vector.load %arg4[%c1_46, %c0_47, %c0_48] : memref<4x1x128xf32, #tpu.memory_space<vmem>>, vector<1x1x128xf32>
    %74 = vector.shape_cast %73 : vector<1x1x128xf32> to vector<1x128xf32>
    %75 = vector.broadcast %74 : vector<1x128xf32> to vector<128x128xf32>
    %76 = arith.addf %72, %75 : vector<128x128xf32>
    %77 = arith.addf %76, %22 : vector<128x128xf32>
    %78 = arith.addf %21, %77 : vector<128x128xf32>
    %cst_49 = arith.constant 0.000000e+00 : f32
    %79 = vector.broadcast %cst_49 : f32 to vector<128x128xf32>
    %80 = arith.maximumf %78, %79 : vector<128x128xf32>
    %c1_i32_50 = arith.constant 1 : i32
    %81 = tpu.dynamic_rotate %80 by %c1_i32_50 dim 0 : vector<128x128xf32>, i32 -> vector<128x128xf32>
    %cst_51 = arith.constant 0.000000e+00 : f32
    %82 = vector.shape_cast %18 : vector<128x1xi1> to vector<128x1xi1>
    %83 = vector.broadcast %82 : vector<128x1xi1> to vector<128x128xi1>
    %84 = vector.broadcast %cst_51 : f32 to vector<128x128xf32>
    %85 = arith.select %83, %81, %84 : vector<128x128xi1>, vector<128x128xf32>
    %c127_i32_52 = arith.constant 127 : i32
    %86 = tpu.dynamic_rotate %80 by %c127_i32_52 dim 0 : vector<128x128xf32>, i32 -> vector<128x128xf32>
    %cst_53 = arith.constant 0.000000e+00 : f32
    %87 = vector.shape_cast %20 : vector<128x1xi1> to vector<128x1xi1>
    %88 = vector.broadcast %87 : vector<128x1xi1> to vector<128x128xi1>
    %89 = vector.broadcast %cst_53 : f32 to vector<128x128xf32>
    %90 = arith.select %88, %86, %89 : vector<128x128xi1>, vector<128x128xf32>
    %c2_54 = arith.constant 2 : index
    %c0_55 = arith.constant 0 : index
    %c0_56 = arith.constant 0 : index
    %c0_57 = arith.constant 0 : index
    %91 = vector.load %arg3[%c2_54, %c0_55, %c0_56, %c0_57] : memref<4x3x128x128xf32, #tpu.memory_space<vmem>>, vector<1x1x128x128xf32>
    %92 = vector.shape_cast %91 : vector<1x1x128x128xf32> to vector<128x128xf32>
    %cst_58 = arith.constant dense<0.000000e+00> : vector<128x128xf32>
    %93 = tpu.matmul %85, %92, %cst_58 {dimension_numbers = #tpu.dot_dimension_numbers<[1], [0], [0], [1], [0, 0, 1, 1], [], []>} : vector<128x128xf32>, vector<128x128xf32>, vector<128x128xf32> -> vector<128x128xf32>
    %c2_59 = arith.constant 2 : index
    %c1_60 = arith.constant 1 : index
    %c0_61 = arith.constant 0 : index
    %c0_62 = arith.constant 0 : index
    %94 = vector.load %arg3[%c2_59, %c1_60, %c0_61, %c0_62] : memref<4x3x128x128xf32, #tpu.memory_space<vmem>>, vector<1x1x128x128xf32>
    %95 = vector.shape_cast %94 : vector<1x1x128x128xf32> to vector<128x128xf32>
    %cst_63 = arith.constant dense<0.000000e+00> : vector<128x128xf32>
    %96 = tpu.matmul %80, %95, %cst_63 {dimension_numbers = #tpu.dot_dimension_numbers<[1], [0], [0], [1], [0, 0, 1, 1], [], []>} : vector<128x128xf32>, vector<128x128xf32>, vector<128x128xf32> -> vector<128x128xf32>
    %97 = arith.addf %93, %96 : vector<128x128xf32>
    %c2_64 = arith.constant 2 : index
    %c2_65 = arith.constant 2 : index
    %c0_66 = arith.constant 0 : index
    %c0_67 = arith.constant 0 : index
    %98 = vector.load %arg3[%c2_64, %c2_65, %c0_66, %c0_67] : memref<4x3x128x128xf32, #tpu.memory_space<vmem>>, vector<1x1x128x128xf32>
    %99 = vector.shape_cast %98 : vector<1x1x128x128xf32> to vector<128x128xf32>
    %cst_68 = arith.constant dense<0.000000e+00> : vector<128x128xf32>
    %100 = tpu.matmul %90, %99, %cst_68 {dimension_numbers = #tpu.dot_dimension_numbers<[1], [0], [0], [1], [0, 0, 1, 1], [], []>} : vector<128x128xf32>, vector<128x128xf32>, vector<128x128xf32> -> vector<128x128xf32>
    %101 = arith.addf %97, %100 : vector<128x128xf32>
    %c2_69 = arith.constant 2 : index
    %c0_70 = arith.constant 0 : index
    %c0_71 = arith.constant 0 : index
    %102 = vector.load %arg4[%c2_69, %c0_70, %c0_71] : memref<4x1x128xf32, #tpu.memory_space<vmem>>, vector<1x1x128xf32>
    %103 = vector.shape_cast %102 : vector<1x1x128xf32> to vector<1x128xf32>
    %104 = vector.broadcast %103 : vector<1x128xf32> to vector<128x128xf32>
    %105 = arith.addf %101, %104 : vector<128x128xf32>
    %cst_72 = arith.constant 0.000000e+00 : f32
    %106 = vector.broadcast %cst_72 : f32 to vector<128x128xf32>
    %107 = arith.maximumf %105, %106 : vector<128x128xf32>
    %c1_i32_73 = arith.constant 1 : i32
    %108 = tpu.dynamic_rotate %107 by %c1_i32_73 dim 0 : vector<128x128xf32>, i32 -> vector<128x128xf32>
    %cst_74 = arith.constant 0.000000e+00 : f32
    %109 = vector.shape_cast %18 : vector<128x1xi1> to vector<128x1xi1>
    %110 = vector.broadcast %109 : vector<128x1xi1> to vector<128x128xi1>
    %111 = vector.broadcast %cst_74 : f32 to vector<128x128xf32>
    %112 = arith.select %110, %108, %111 : vector<128x128xi1>, vector<128x128xf32>
    %c127_i32_75 = arith.constant 127 : i32
    %113 = tpu.dynamic_rotate %107 by %c127_i32_75 dim 0 : vector<128x128xf32>, i32 -> vector<128x128xf32>
    %cst_76 = arith.constant 0.000000e+00 : f32
    %114 = vector.shape_cast %20 : vector<128x1xi1> to vector<128x1xi1>
    %115 = vector.broadcast %114 : vector<128x1xi1> to vector<128x128xi1>
    %116 = vector.broadcast %cst_76 : f32 to vector<128x128xf32>
    %117 = arith.select %115, %113, %116 : vector<128x128xi1>, vector<128x128xf32>
    %c3 = arith.constant 3 : index
    %c0_77 = arith.constant 0 : index
    %c0_78 = arith.constant 0 : index
    %c0_79 = arith.constant 0 : index
    %118 = vector.load %arg3[%c3, %c0_77, %c0_78, %c0_79] : memref<4x3x128x128xf32, #tpu.memory_space<vmem>>, vector<1x1x128x128xf32>
    %119 = vector.shape_cast %118 : vector<1x1x128x128xf32> to vector<128x128xf32>
    %cst_80 = arith.constant dense<0.000000e+00> : vector<128x128xf32>
    %120 = tpu.matmul %112, %119, %cst_80 {dimension_numbers = #tpu.dot_dimension_numbers<[1], [0], [0], [1], [0, 0, 1, 1], [], []>} : vector<128x128xf32>, vector<128x128xf32>, vector<128x128xf32> -> vector<128x128xf32>
    %c3_81 = arith.constant 3 : index
    %c1_82 = arith.constant 1 : index
    %c0_83 = arith.constant 0 : index
    %c0_84 = arith.constant 0 : index
    %121 = vector.load %arg3[%c3_81, %c1_82, %c0_83, %c0_84] : memref<4x3x128x128xf32, #tpu.memory_space<vmem>>, vector<1x1x128x128xf32>
    %122 = vector.shape_cast %121 : vector<1x1x128x128xf32> to vector<128x128xf32>
    %cst_85 = arith.constant dense<0.000000e+00> : vector<128x128xf32>
    %123 = tpu.matmul %107, %122, %cst_85 {dimension_numbers = #tpu.dot_dimension_numbers<[1], [0], [0], [1], [0, 0, 1, 1], [], []>} : vector<128x128xf32>, vector<128x128xf32>, vector<128x128xf32> -> vector<128x128xf32>
    %124 = arith.addf %120, %123 : vector<128x128xf32>
    %c3_86 = arith.constant 3 : index
    %c2_87 = arith.constant 2 : index
    %c0_88 = arith.constant 0 : index
    %c0_89 = arith.constant 0 : index
    %125 = vector.load %arg3[%c3_86, %c2_87, %c0_88, %c0_89] : memref<4x3x128x128xf32, #tpu.memory_space<vmem>>, vector<1x1x128x128xf32>
    %126 = vector.shape_cast %125 : vector<1x1x128x128xf32> to vector<128x128xf32>
    %cst_90 = arith.constant dense<0.000000e+00> : vector<128x128xf32>
    %127 = tpu.matmul %117, %126, %cst_90 {dimension_numbers = #tpu.dot_dimension_numbers<[1], [0], [0], [1], [0, 0, 1, 1], [], []>} : vector<128x128xf32>, vector<128x128xf32>, vector<128x128xf32> -> vector<128x128xf32>
    %128 = arith.addf %124, %127 : vector<128x128xf32>
    %c3_91 = arith.constant 3 : index
    %c0_92 = arith.constant 0 : index
    %c0_93 = arith.constant 0 : index
    %129 = vector.load %arg4[%c3_91, %c0_92, %c0_93] : memref<4x1x128xf32, #tpu.memory_space<vmem>>, vector<1x1x128xf32>
    %130 = vector.shape_cast %129 : vector<1x1x128xf32> to vector<1x128xf32>
    %131 = vector.broadcast %130 : vector<1x128xf32> to vector<128x128xf32>
    %132 = arith.addf %128, %131 : vector<128x128xf32>
    %133 = arith.addf %132, %78 : vector<128x128xf32>
    %c0_94 = arith.constant 0 : index
    %c0_95 = arith.constant 0 : index
    %134 = vector.load %arg5[%c0_94, %c0_95] : memref<128x256xf32, #tpu.memory_space<vmem>>, vector<128x256xf32>
    %cst_96 = arith.constant dense<0.000000e+00> : vector<128x256xf32>
    %135 = tpu.matmul %133, %134, %cst_96 {dimension_numbers = #tpu.dot_dimension_numbers<[1], [0], [0], [1], [0, 0, 1, 1], [], []>} : vector<128x128xf32>, vector<128x256xf32>, vector<128x256xf32> -> vector<128x256xf32>
    %c0_97 = arith.constant 0 : index
    %c0_98 = arith.constant 0 : index
    %136 = vector.load %arg7[%c0_97, %c0_98] : memref<256x128xf32, #tpu.memory_space<vmem>>, vector<256x128xf32>
    %cst_99 = arith.constant dense<0.000000e+00> : vector<256x256xf32>
    %137 = tpu.matmul %136, %135, %cst_99 {dimension_numbers = #tpu.dot_dimension_numbers<[1], [0], [0], [1], [0, 0, 1, 1], [], []>} : vector<256x128xf32>, vector<128x256xf32>, vector<256x256xf32> -> vector<256x256xf32>
    %c0_100 = arith.constant 0 : index
    %c0_101 = arith.constant 0 : index
    %138 = vector.load %arg6[%c0_100, %c0_101] : memref<1x256xf32, #tpu.memory_space<vmem>>, vector<1x256xf32>
    %139 = vector.broadcast %138 : vector<1x256xf32> to vector<256x256xf32>
    %140 = arith.addf %137, %139 : vector<256x256xf32>
    %c0_102 = arith.constant 0 : index
    %c0_103 = arith.constant 0 : index
    %141 = vector.load %arg8[%c0_102, %c0_103] : memref<256x256xf32, #tpu.memory_space<vmem>>, vector<256x256xf32>
    tpu.vector_store %arg8[%c0_102, %c0_103], %140 {strides = array<i32>} : memref<256x256xf32, #tpu.memory_space<vmem>>, vector<256x256xf32>,
    return
  }
  func.func @transform_0(%arg0: i32) -> (i32, i32) {
    %c0_i32 = arith.constant 0 : i32
    %c0_i32_0 = arith.constant 0 : i32
    return %arg0, %c0_i32 : i32, i32
  }
  func.func @transform_1(%arg0: i32) -> (i32, i32) {
    %c0_i32 = arith.constant 0 : i32
    %c0_i32_0 = arith.constant 0 : i32
    return %arg0, %c0_i32 : i32, i32
  }
  func.func @transform_2(%arg0: i32) -> (i32, i32, i32, i32) {
    %c0_i32 = arith.constant 0 : i32
    %c0_i32_0 = arith.constant 0 : i32
    %c0_i32_1 = arith.constant 0 : i32
    %c0_i32_2 = arith.constant 0 : i32
    %c0_i32_3 = arith.constant 0 : i32
    return %c0_i32, %c0_i32_0, %c0_i32_1, %c0_i32_2 : i32, i32, i32, i32
  }
  func.func @transform_3(%arg0: i32) -> (i32, i32, i32) {
    %c0_i32 = arith.constant 0 : i32
    %c0_i32_0 = arith.constant 0 : i32
    %c0_i32_1 = arith.constant 0 : i32
    %c0_i32_2 = arith.constant 0 : i32
    return %c0_i32, %c0_i32_0, %c0_i32_1 : i32, i32, i32
  }
  func.func @transform_4(%arg0: i32) -> (i32, i32) {
    %c0_i32 = arith.constant 0 : i32
    %c0_i32_0 = arith.constant 0 : i32
    %c0_i32_1 = arith.constant 0 : i32
    return %c0_i32, %c0_i32_0 : i32, i32
  }
  func.func @transform_5(%arg0: i32) -> (i32, i32) {
    %c0_i32 = arith.constant 0 : i32
    %c0_i32_0 = arith.constant 0 : i32
    %c0_i32_1 = arith.constant 0 : i32
    return %c0_i32, %c0_i32_0 : i32, i32
  }
  func.func @transform_6(%arg0: i32) -> (i32, i32) {
    %c0_i32 = arith.constant 0 : i32
    %c0_i32_0 = arith.constant 0 : i32
    %c0_i32_1 = arith.constant 0 : i32
    return %c0_i32, %c0_i32_0 : i32, i32
  }
  func.func @transform_7(%arg0: i32) -> (i32, i32) {
    %c0_i32 = arith.constant 0 : i32
    %c0_i32_0 = arith.constant 0 : i32
    return %arg0, %c0_i32 : i32, i32
  }
}

</mosaic_0001>

<llo_original>
// kernel: tpu_custom_call.1
$region0: #{tpu_custom_call.1}
  #allocation0 [shape = 'u32[]', space=smem, size = 0x4, offset = 0x4, fixed_abs, tag = 'smem constant byte address 0x4 - core index']
  #allocation1 [shape = 'u32[144,128]{1,0:T(1,128)}', space=vmem, size = 0x12000, scoped, tag = 'internal scratch']
  %s0 = inlined_call_operand.hbm [shape: f32[128,128], index: 0, kind: input, shape index: {}]
  %s1 = inlined_call_operand.hbm [shape: f32[128,128], index: 1, kind: input, shape index: {}]
  %s2 = inlined_call_operand.hbm [shape: f32[4,3,128,128], index: 2, kind: input, shape index: {}]
  %s3 = inlined_call_operand.vmem [shape: f32[4,1,128], index: 3, kind: input, shape index: {}]
  %s4 = inlined_call_operand.hbm [shape: f32[128,256], index: 4, kind: input, shape index: {}]
  %s5 = inlined_call_operand.vmem [shape: f32[1,256], index: 5, kind: input, shape index: {}]
  %s6 = inlined_call_operand.hbm [shape: f32[256,128], index: 6, kind: input, shape index: {}]
  %s7 = inlined_call_operand.hbm [shape: f32[256,256], index: 7, kind: output, shape index: {}]
  %s8 = sld [smem:[#allocation0]]
  $region58: #{tpu_custom_call.1} parent=0
    _
  %s10 = ssub.s32 1, %s8
  %s11 = scalar_select 0, %s10, %s8
  $region1: #{tpu_custom_call.1} parent=0
    #allocation2 [shape = 'u8[65536]{0}', space=vmem, size = 0x10000, scoped, tag = 'input window, operand 0, single buffered']
    #allocation3 [shape = 's32[1]{0}', space=sflag, size = 0x4, scoped, tag = 'scoped memory for tpu_custom_call.1']
    #allocation4 [shape = 's32[1]{0}', space=sflag, size = 0x4, scoped, tag = 'scoped memory for tpu_custom_call.1']
    #allocation5 [shape = 'u8[65536]{0}', space=vmem, size = 0x10000, scoped, tag = 'input window, operand 1, single buffered']
    #allocation6 [shape = 's32[1]{0}', space=sflag, size = 0x4, scoped, tag = 'scoped memory for tpu_custom_call.1']
    #allocation7 [shape = 'u8[786432]{0}', space=vmem, size = 0xc0000, scoped, tag = 'input window, operand 2, single buffered']
    #allocation8 [shape = 'u8[131072]{0}', space=vmem, size = 0x20000, scoped, tag = 'input window, operand 4, single buffered']
    #allocation9 [shape = 's32[1]{0}', space=sflag, size = 0x4, scoped, tag = 'scoped memory for tpu_custom_call.1']
    #allocation10 [shape = 'u8[131072]{0}', space=vmem, size = 0x20000, scoped, tag = 'input window, operand 6, single buffered']
    #allocation11 [shape = 'u8[262144]{0}', space=vmem, size = 0x40000, scoped, tag = 'output window, operand 0, single buffered']
    %12 = vsyncpa [#allocation3], 0
    %13 = vsyncpa [#allocation6], 0
    %14 = vsyncpa [#allocation9], 0
    %15 = vsyncpa [#allocation4], 0
    // Predicated region
    $region2: #{tpu_custom_call.1} parent=1 // pred_check
      _
    $region3: #{tpu_custom_call.1} parent=1 // pred_check_branch
      %17 = sbr.rel (0) target = $region5
    $region4: #{tpu_custom_call.1} parent=1 // pred_region
      %s19 = ssub.s32 2048, 2048
      %20 = vsyncadd [#allocation3], %s19
      %s21 = sshll.u32 [#allocation2], 4
      %s22 = int_to_ptr.vmem [resolvable:$true] %s21
      %27 = dma.hbm_to_vmem [thread:$0]  %s0, 2048, %s22, [#allocation3], 128, 128, 8
    $region5: #{tpu_custom_call.1} parent=1 // pred_fallthru
      _
    // Predicated region
    $region6: #{tpu_custom_call.1} parent=1 // pred_check
      _
    $region7: #{tpu_custom_call.1} parent=1 // pred_check_branch
      %29 = sbr.rel (0) target = $region9
    $region8: #{tpu_custom_call.1} parent=1 // pred_region
      %s31 = ssub.s32 2048, 2048
      %32 = vsyncadd [#allocation6], %s31
      %s33 = sshll.u32 [#allocation5], 4
      %s34 = int_to_ptr.vmem [resolvable:$true] %s33
      %39 = dma.hbm_to_vmem [thread:$0]  %s1, 2048, %s34, [#allocation6], 128, 128, 8
    $region9: #{tpu_custom_call.1} parent=1 // pred_fallthru
      _
    // Predicated region
    $region10: #{tpu_custom_call.1} parent=1 // pred_check
      _
    $region11: #{tpu_custom_call.1} parent=1 // pred_check_branch
      %41 = sbr.rel (0) target = $region13
    $region12: #{tpu_custom_call.1} parent=1 // pred_region
      %s43 = ssub.s32 24576, 24576
      %44 = vsyncadd [#allocation6], %s43
      %s45 = sshll.u32 [#allocation7], 4
      %s46 = int_to_ptr.vmem [resolvable:$true] %s45
      %51 = dma.hbm_to_vmem [thread:$0]  %s2, 24576, %s46, [#allocation6], 128, 128, 8
    $region13: #{tpu_custom_call.1} parent=1 // pred_fallthru
      _
    // Predicated region
    $region14: #{tpu_custom_call.1} parent=1 // pred_check
      _
    $region15: #{tpu_custom_call.1} parent=1 // pred_check_branch
      %53 = sbr.rel (0) target = $region17
    $region16: #{tpu_custom_call.1} parent=1 // pred_region
      _
    $region17: #{tpu_custom_call.1} parent=1 // pred_fallthru
      _
    // Predicated region
    $region18: #{tpu_custom_call.1} parent=1 // pred_check
      _
    $region19: #{tpu_custom_call.1} parent=1 // pred_check_branch
      %55 = sbr.rel (0) target = $region21
    $region20: #{tpu_custom_call.1} parent=1 // pred_region
      %s57 = ssub.s32 4096, 4096
      %58 = vsyncadd [#allocation9], %s57
      %s59 = sshll.u32 [#allocation8], 4
      %s60 = int_to_ptr.vmem [resolvable:$true] %s59
      %65 = dma.hbm_to_vmem [thread:$0]  %s4, 4096, %s60, [#allocation9], 256, 256, 16
    $region21: #{tpu_custom_call.1} parent=1 // pred_fallthru
      _
    // Predicated region
    $region22: #{tpu_custom_call.1} parent=1 // pred_check
      _
    $region23: #{tpu_custom_call.1} parent=1 // pred_check_branch
      %67 = sbr.rel (0) target = $region25
    $region24: #{tpu_custom_call.1} parent=1 // pred_region
      _
    $region25: #{tpu_custom_call.1} parent=1 // pred_fallthru
      _
    // Predicated region
    $region26: #{tpu_custom_call.1} parent=1 // pred_check
      _
    $region27: #{tpu_custom_call.1} parent=1 // pred_check_branch
      %69 = sbr.rel (0) target = $region29
    $region28: #{tpu_custom_call.1} parent=1 // pred_region
      %s71 = ssub.s32 4096, 4096
      %72 = vsyncadd [#allocation9], %s71
      %s73 = sshll.u32 [#allocation10], 4
      %s74 = int_to_ptr.vmem [resolvable:$true] %s73
      %79 = dma.hbm_to_vmem [thread:$0]  %s6, 4096, %s74, [#allocation9], 128, 128, 8
    $region29: #{tpu_custom_call.1} parent=1 // pred_fallthru
      _
    // Predicated region
    $region30: #{tpu_custom_call.1} parent=1 // pred_check
      _
    $region31: #{tpu_custom_call.1} parent=1 // pred_check_branch
      %81 = sbr.rel (0) target = $region33
    $region32: #{tpu_custom_call.1} parent=1 // pred_region
      %82 = dma.done [#allocation3], 2048
    $region33: #{tpu_custom_call.1} parent=1 // pred_fallthru
      _
    // Predicated region
    $region34: #{tpu_custom_call.1} parent=1 // pred_check
      _
    $region35: #{tpu_custom_call.1} parent=1 // pred_check_branch
      %84 = sbr.rel (0) target = $region37
    $region36: #{tpu_custom_call.1} parent=1 // pred_region
      %85 = dma.done [#allocation6], 2048
    $region37: #{tpu_custom_call.1} parent=1 // pred_fallthru
      _
    // Predicated region
    $region38: #{tpu_custom_call.1} parent=1 // pred_check
      _
    $region39: #{tpu_custom_call.1} parent=1 // pred_check_branch
      %87 = sbr.rel (0) target = $region41
    $region40: #{tpu_custom_call.1} parent=1 // pred_region
      %88 = dma.done [#allocation6], 24576
    $region41: #{tpu_custom_call.1} parent=1 // pred_fallthru
      _
    // Predicated region
    $region42: #{tpu_custom_call.1} parent=1 // pred_check
      _
    $region43: #{tpu_custom_call.1} parent=1 // pred_check_branch
      %90 = sbr.rel (0) target = $region45
    $region44: #{tpu_custom_call.1} parent=1 // pred_region
      %91 = dma.done [#allocation9], 4096
    $region45: #{tpu_custom_call.1} parent=1 // pred_fallthru
      _
    // Predicated region
    $region46: #{tpu_custom_call.1} parent=1 // pred_check
      _
    $region47: #{tpu_custom_call.1} parent=1 // pred_check_branch
      %93 = sbr.rel (0) target = $region49
    $region48: #{tpu_custom_call.1} parent=1 // pred_region
      %94 = dma.done [#allocation9], 4096
    $region49: #{tpu_custom_call.1} parent=1 // pred_fallthru
      _
    %v95 = vlaneseq
    %v96 = vshrl.u32 %v95, 7
    %v97 = vadd.s32 %v96, 8
    %v98 = vadd.s32 %v96, 16
    %v99 = vadd.s32 %v96, 24
    %v100 = vadd.s32 %v96, 32
    %v101 = vadd.s32 %v96, 40
    %v102 = vadd.s32 %v96, 48
    %v103 = vadd.s32 %v96, 56
    %v104 = vadd.s32 %v96, 64
    %v105 = vadd.s32 %v96, 72
    %v106 = vadd.s32 %v96, 80
    %v107 = vadd.s32 %v96, 88
    %v108 = vadd.s32 %v96, 96
    %v109 = vadd.s32 %v96, 104
    %v110 = vadd.s32 %v96, 112
    %v111 = vadd.s32 %v96, 120
    %vm112 = vcmp.lt.s32.totalorder %v96, 0
    %v113 = vsub.s32 0, %v96
    %v114 = vsel %vm112, %v113, %v96
    %v115 = vshrl.u32 %v114, 4
    %v116 = vand.u32 %v114, 15
    %v117 = vsub.s32 0, %v116
    %v118 = vsel %vm112, %v117, %v116
    %vm119 = vcmp.lt.s32.totalorder %v97, 0
    %v120 = vsub.s32 0, %v97
    %v121 = vsel %vm119, %v120, %v97
    %v122 = vshrl.u32 %v121, 4
    %v123 = vand.u32 %v121, 15
    %v124 = vsub.s32 0, %v123
    %v125 = vsel %vm119, %v124, %v123
    %vm126 = vcmp.lt.s32.totalorder %v98, 0
    %v127 = vsub.s32 0, %v98
    %v128 = vsel %vm126, %v127, %v98
    %v129 = vshrl.u32 %v128, 4
    %v130 = vand.u32 %v128, 15
    %v131 = vsub.s32 0, %v130
    %v132 = vsel %vm126, %v131, %v130
    %vm133 = vcmp.lt.s32.totalorder %v99, 0
    %v134 = vsub.s32 0, %v99
    %v135 = vsel %vm133, %v134, %v99
    %v136 = vshrl.u32 %v135, 4
    %v137 = vand.u32 %v135, 15
    %v138 = vsub.s32 0, %v137
    %v139 = vsel %vm133, %v138, %v137
    %vm140 = vcmp.lt.s32.totalorder %v100, 0
    %v141 = vsub.s32 0, %v100
    %v142 = vsel %vm140, %v141, %v100
    %v143 = vshrl.u32 %v142, 4
    %v144 = vand.u32 %v142, 15
    %v145 = vsub.s32 0, %v144
    %v146 = vsel %vm140, %v145, %v144
    %vm147 = vcmp.lt.s32.totalorder %v101, 0
    %v148 = vsub.s32 0, %v101
    %v149 = vsel %vm147, %v148, %v101
    %v150 = vshrl.u32 %v149, 4
    %v151 = vand.u32 %v149, 15
    %v152 = vsub.s32 0, %v151
    %v153 = vsel %vm147, %v152, %v151
    %vm154 = vcmp.lt.s32.totalorder %v102, 0
    %v155 = vsub.s32 0, %v102
    %v156 = vsel %vm154, %v155, %v102
    %v157 = vshrl.u32 %v156, 4
    %v158 = vand.u32 %v156, 15
    %v159 = vsub.s32 0, %v158
    %v160 = vsel %vm154, %v159, %v158
    %vm161 = vcmp.lt.s32.totalorder %v103, 0
    %v162 = vsub.s32 0, %v103
    %v163 = vsel %vm161, %v162, %v103
    %v164 = vshrl.u32 %v163, 4
    %v165 = vand.u32 %v163, 15
    %v166 = vsub.s32 0, %v165
    %v167 = vsel %vm161, %v166, %v165
    %vm168 = vcmp.lt.s32.totalorder %v104, 0
    %v169 = vsub.s32 0, %v104
    %v170 = vsel %vm168, %v169, %v104
    %v171 = vshrl.u32 %v170, 4
    %v172 = vand.u32 %v170, 15
    %v173 = vsub.s32 0, %v172
    %v174 = vsel %vm168, %v173, %v172
    %vm175 = vcmp.lt.s32.totalorder %v105, 0
    %v176 = vsub.s32 0, %v105
    %v177 = vsel %vm175, %v176, %v105
    %v178 = vshrl.u32 %v177, 4
    %v179 = vand.u32 %v177, 15
    %v180 = vsub.s32 0, %v179
    %v181 = vsel %vm175, %v180, %v179
    %vm182 = vcmp.lt.s32.totalorder %v106, 0
    %v183 = vsub.s32 0, %v106
    %v184 = vsel %vm182, %v183, %v106
    %v185 = vshrl.u32 %v184, 4
    %v186 = vand.u32 %v184, 15
    %v187 = vsub.s32 0, %v186
    %v188 = vsel %vm182, %v187, %v186
    %vm189 = vcmp.lt.s32.totalorder %v107, 0
    %v190 = vsub.s32 0, %v107
    %v191 = vsel %vm189, %v190, %v107
    %v192 = vshrl.u32 %v191, 4
    %v193 = vand.u32 %v191, 15
    %v194 = vsub.s32 0, %v193
    %v195 = vsel %vm189, %v194, %v193
    %vm196 = vcmp.lt.s32.totalorder %v108, 0
    %v197 = vsub.s32 0, %v108
    %v198 = vsel %vm196, %v197, %v108
    %v199 = vshrl.u32 %v198, 4
    %v200 = vand.u32 %v198, 15
    %v201 = vsub.s32 0, %v200
    %v202 = vsel %vm196, %v201, %v200
    %vm203 = vcmp.lt.s32.totalorder %v109, 0
    %v204 = vsub.s32 0, %v109
    %v205 = vsel %vm203, %v204, %v109
    %v206 = vshrl.u32 %v205, 4
    %v207 = vand.u32 %v205, 15
    %v208 = vsub.s32 0, %v207
    %v209 = vsel %vm203, %v208, %v207
    %vm210 = vcmp.lt.s32.totalorder %v110, 0
    %v211 = vsub.s32 0, %v110
    %v212 = vsel %vm210, %v211, %v110
    %v213 = vshrl.u32 %v212, 4
    %v214 = vand.u32 %v212, 15
    %v215 = vsub.s32 0, %v214
    %v216 = vsel %vm210, %v215, %v214
    %vm217 = vcmp.lt.s32.totalorder %v111, 0
    %v218 = vsub.s32 0, %v111
    %v219 = vsel %vm217, %v218, %v111
    %v220 = vshrl.u32 %v219, 4
    %v221 = vand.u32 %v219, 15
    %v222 = vsub.s32 0, %v221
    %v223 = vsel %vm217, %v222, %v221
    %vm224 = vcmp.ne.s32.totalorder %v118, 0
    %vm225 = vcmp.ne.s32.totalorder %v125, 0
    %vm226 = vcmp.ne.s32.totalorder %v132, 0
    %vm227 = vcmp.ne.s32.totalorder %v139, 0
    %vm228 = vcmp.ne.s32.totalorder %v146, 0
    %vm229 = vcmp.ne.s32.totalorder %v153, 0
    %vm230 = vcmp.ne.s32.totalorder %v160, 0
    %vm231 = vcmp.ne.s32.totalorder %v167, 0
    %vm232 = vcmp.ne.s32.totalorder %v174, 0
    %vm233 = vcmp.ne.s32.totalorder %v181, 0
    %vm234 = vcmp.ne.s32.totalorder %v188, 0
    %vm235 = vcmp.ne.s32.totalorder %v195, 0
    %vm236 = vcmp.ne.s32.totalorder %v202, 0
    %vm237 = vcmp.ne.s32.totalorder %v209, 0
    %vm238 = vcmp.ne.s32.totalorder %v216, 0
    %vm239 = vcmp.ne.s32.totalorder %v223, 0
    %vm240 = vcmp.lt.s32.totalorder %v118, 0
    %vm241 = vcmp.lt.s32.totalorder %v125, 0
    %vm242 = vcmp.lt.s32.totalorder %v132, 0
    %vm243 = vcmp.lt.s32.totalorder %v139, 0
    %vm244 = vcmp.lt.s32.totalorder %v146, 0
    %vm245 = vcmp.lt.s32.totalorder %v153, 0
    %vm246 = vcmp.lt.s32.totalorder %v160, 0
    %vm247 = vcmp.lt.s32.totalorder %v167, 0
    %vm248 = vcmp.lt.s32.totalorder %v174, 0
    %vm249 = vcmp.lt.s32.totalorder %v181, 0
    %vm250 = vcmp.lt.s32.totalorder %v188, 0
    %vm251 = vcmp.lt.s32.totalorder %v195, 0
    %vm252 = vcmp.lt.s32.totalorder %v202, 0
    %vm253 = vcmp.lt.s32.totalorder %v209, 0
    %vm254 = vcmp.lt.s32.totalorder %v216, 0
    %vm255 = vcmp.lt.s32.totalorder %v223, 0
    %vm256 = vmand %vm240, %vm224
    %vm257 = vmand %vm241, %vm225
    %vm258 = vmand %vm242, %vm226
    %vm259 = vmand %vm243, %vm227
    %vm260 = vmand %vm244, %vm228
    %vm261 = vmand %vm245, %vm229
    %vm262 = vmand %vm246, %vm230
    %vm263 = vmand %vm247, %vm231
    %vm264 = vmand %vm248, %vm232
    %vm265 = vmand %vm249, %vm233
    %vm266 = vmand %vm250, %vm234
    %vm267 = vmand %vm251, %vm235
    %vm268 = vmand %vm252, %vm236
    %vm269 = vmand %vm253, %vm237
    %vm270 = vmand %vm254, %vm238
    %vm271 = vmand %vm255, %vm239
    %v272 = vadd.s32 %v118, 16
    %v273 = vadd.s32 %v125, 16
    %v274 = vadd.s32 %v132, 16
    %v275 = vadd.s32 %v139, 16
    %v276 = vadd.s32 %v146, 16
    %v277 = vadd.s32 %v153, 16
    %v278 = vadd.s32 %v160, 16
    %v279 = vadd.s32 %v167, 16
    %v280 = vadd.s32 %v174, 16
    %v281 = vadd.s32 %v181, 16
    %v282 = vadd.s32 %v188, 16
    %v283 = vadd.s32 %v195, 16
    %v284 = vadd.s32 %v202, 16
    %v285 = vadd.s32 %v209, 16
    %v286 = vadd.s32 %v216, 16
    %v287 = vadd.s32 %v223, 16
    %v288 = vsel %vm256, %v272, %v118
    %v289 = vsel %vm257, %v273, %v125
    %v290 = vsel %vm258, %v274, %v132
    %v291 = vsel %vm259, %v275, %v139
    %v292 = vsel %vm260, %v276, %v146
    %v293 = vsel %vm261, %v277, %v153
    %v294 = vsel %vm262, %v278, %v160
    %v295 = vsel %vm263, %v279, %v167
    %v296 = vsel %vm264, %v280, %v174
    %v297 = vsel %vm265, %v281, %v181
    %v298 = vsel %vm266, %v282, %v188
    %v299 = vsel %vm267, %v283, %v195
    %v300 = vsel %vm268, %v284, %v202
    %v301 = vsel %vm269, %v285, %v209
    %v302 = vsel %vm270, %v286, %v216
    %v303 = vsel %vm271, %v287, %v223
    %vm304 = vcmp.ne.s32.totalorder %v288, 0
    %vm305 = vcmp.ne.s32.totalorder %v289, 0
    %vm306 = vcmp.ne.s32.totalorder %v290, 0
    %vm307 = vcmp.ne.s32.totalorder %v291, 0
    %vm308 = vcmp.ne.s32.totalorder %v292, 0
    %vm309 = vcmp.ne.s32.totalorder %v293, 0
    %vm310 = vcmp.ne.s32.totalorder %v294, 0
    %vm311 = vcmp.ne.s32.totalorder %v295, 0
    %vm312 = vcmp.ne.s32.totalorder %v296, 0
    %vm313 = vcmp.ne.s32.totalorder %v297, 0
    %vm314 = vcmp.ne.s32.totalorder %v298, 0
    %vm315 = vcmp.ne.s32.totalorder %v299, 0
    %vm316 = vcmp.ne.s32.totalorder %v300, 0
    %vm317 = vcmp.ne.s32.totalorder %v301, 0
    %vm318 = vcmp.ne.s32.totalorder %v302, 0
    %vm319 = vcmp.ne.s32.totalorder %v303, 0
    %vm320 = vcmp.ne.s32.totalorder %v288, 15
    %vm321 = vcmp.ne.s32.totalorder %v289, 15
    %vm322 = vcmp.ne.s32.totalorder %v290, 15
    %vm323 = vcmp.ne.s32.totalorder %v291, 15
    %vm324 = vcmp.ne.s32.totalorder %v292, 15
    %vm325 = vcmp.ne.s32.totalorder %v293, 15
    %vm326 = vcmp.ne.s32.totalorder %v294, 15
    %vm327 = vcmp.ne.s32.totalorder %v295, 15
    %vm328 = vcmp.ne.s32.totalorder %v296, 15
    %vm329 = vcmp.ne.s32.totalorder %v297, 15
    %vm330 = vcmp.ne.s32.totalorder %v298, 15
    %vm331 = vcmp.ne.s32.totalorder %v299, 15
    %vm332 = vcmp.ne.s32.totalorder %v300, 15
    %vm333 = vcmp.ne.s32.totalorder %v301, 15
    %vm334 = vcmp.ne.s32.totalorder %v302, 15
    %vm335 = vcmp.ne.s32.totalorder %v303, 15
    %v336 = vld [vmem:[#allocation2] sm:$0xff]
    %v337 = vld [vmem:[#allocation2 + $0x8] sm:$0xff]
    %v338 = vld [vmem:[#allocation2 + $0x10] sm:$0xff]
    %v339 = vld [vmem:[#allocation2 + $0x18] sm:$0xff]
    %v340 = vld [vmem:[#allocation2 + $0x20] sm:$0xff]
    %v341 = vld [vmem:[#allocation2 + $0x28] sm:$0xff]
    %v342 = vld [vmem:[#allocation2 + $0x30] sm:$0xff]
    %v343 = vld [vmem:[#allocation2 + $0x38] sm:$0xff]
    %v344 = vld [vmem:[#allocation2 + $0x40] sm:$0xff]
    %v345 = vld [vmem:[#allocation2 + $0x48] sm:$0xff]
    %v346 = vld [vmem:[#allocation2 + $0x50] sm:$0xff]
    %v347 = vld [vmem:[#allocation2 + $0x58] sm:$0xff]
    %v348 = vld [vmem:[#allocation2 + $0x60] sm:$0xff]
    %v349 = vld [vmem:[#allocation2 + $0x68] sm:$0xff]
    %v350 = vld [vmem:[#allocation2 + $0x70] sm:$0xff]
    %v351 = vld [vmem:[#allocation2 + $0x78] sm:$0xff]
    %v352 = vld [vmem:[#allocation5] sm:$0xff]
    %v353 = vld [vmem:[#allocation5 + $0x8] sm:$0xff]
    %v354 = vld [vmem:[#allocation5 + $0x10] sm:$0xff]
    %v355 = vld [vmem:[#allocation5 + $0x18] sm:$0xff]
    %v356 = vld [vmem:[#allocation5 + $0x20] sm:$0xff]
    %v357 = vld [vmem:[#allocation5 + $0x28] sm:$0xff]
    %v358 = vld [vmem:[#allocation5 + $0x30] sm:$0xff]
    %v359 = vld [vmem:[#allocation5 + $0x38] sm:$0xff]
    %v360 = vld [vmem:[#allocation5 + $0x40] sm:$0xff]
    %v361 = vld [vmem:[#allocation5 + $0x48] sm:$0xff]
    %v362 = vld [vmem:[#allocation5 + $0x50] sm:$0xff]
    %v363 = vld [vmem:[#allocation5 + $0x58] sm:$0xff]
    %v364 = vld [vmem:[#allocation5 + $0x60] sm:$0xff]
    %v365 = vld [vmem:[#allocation5 + $0x68] sm:$0xff]
    %v366 = vld [vmem:[#allocation5 + $0x70] sm:$0xff]
    %v367 = vld [vmem:[#allocation5 + $0x78] sm:$0xff]
    %v368 = vmax.f32 %v352, 0.0
    %v369 = vmax.f32 %v353, 0.0
    %v370 = vmax.f32 %v354, 0.0
    %v371 = vmax.f32 %v355, 0.0
    %v372 = vmax.f32 %v356, 0.0
    %v373 = vmax.f32 %v357, 0.0
    %v374 = vmax.f32 %v358, 0.0
    %v375 = vmax.f32 %v359, 0.0
    %v376 = vmax.f32 %v360, 0.0
    %v377 = vmax.f32 %v361, 0.0
    %v378 = vmax.f32 %v362, 0.0
    %v379 = vmax.f32 %v363, 0.0
    %v380 = vmax.f32 %v364, 0.0
    %v381 = vmax.f32 %v365, 0.0
    %v382 = vmax.f32 %v366, 0.0
    %v383 = vmax.f32 %v367, 0.0
    %v384 = vrot.slane %v368, 7
    %v385 = vrot.slane %v369, 7
    %v386 = vrot.slane %v370, 7
    %v387 = vrot.slane %v371, 7
    %v388 = vrot.slane %v372, 7
    %v389 = vrot.slane %v373, 7
    %v390 = vrot.slane %v374, 7
    %v391 = vrot.slane %v375, 7
    %v392 = vrot.slane %v376, 7
    %v393 = vrot.slane %v377, 7
    %v394 = vrot.slane %v378, 7
    %v395 = vrot.slane %v379, 7
    %v396 = vrot.slane %v380, 7
    %v397 = vrot.slane %v381, 7
    %v398 = vrot.slane %v382, 7
    %v399 = vrot.slane %v383, 7
    %vm400 = vcmp.lt.s32.totalorder %v96, 1
    %v401 = vsel %vm400, %v398, %v399
    %v402 = vsel %vm400, %v397, %v398
    %v403 = vsel %vm400, %v396, %v397
    %v404 = vsel %vm400, %v395, %v396
    %v405 = vsel %vm400, %v394, %v395
    %v406 = vsel %vm400, %v393, %v394
    %v407 = vsel %vm400, %v392, %v393
    %v408 = vsel %vm400, %v391, %v392
    %v409 = vsel %vm400, %v390, %v391
    %v410 = vsel %vm400, %v389, %v390
    %v411 = vsel %vm400, %v388, %v389
    %v412 = vsel %vm400, %v387, %v388
    %v413 = vsel %vm400, %v386, %v387
    %v414 = vsel %vm400, %v385, %v386
    %v415 = vsel %vm400, %v384, %v385
    %v416 = vsel %vm400, %v399, %v384
    %v417 = vsel %vm304, 1, 0
    %v418 = vsel %vm305, 1, 0
    %v419 = vsel %vm306, 1, 0
    %v420 = vsel %vm307, 1, 0
    %v421 = vsel %vm308, 1, 0
    %v422 = vsel %vm309, 1, 0
    %v423 = vsel %vm310, 1, 0
    %v424 = vsel %vm311, 1, 0
    %v425 = vsel %vm312, 1, 0
    %v426 = vsel %vm313, 1, 0
    %v427 = vsel %vm314, 1, 0
    %v428 = vsel %vm315, 1, 0
    %v429 = vsel %vm316, 1, 0
    %v430 = vsel %vm317, 1, 0
    %v431 = vsel %vm318, 1, 0
    %v432 = vsel %vm319, 1, 0
    %vm433 = vcmp.eq.s32.totalorder %v417, 1
    %vm434 = vcmp.eq.s32.totalorder %v418, 1
    %vm435 = vcmp.eq.s32.totalorder %v419, 1
    %vm436 = vcmp.eq.s32.totalorder %v420, 1
    %vm437 = vcmp.eq.s32.totalorder %v421, 1
    %vm438 = vcmp.eq.s32.totalorder %v422, 1
    %vm439 = vcmp.eq.s32.totalorder %v423, 1
    %vm440 = vcmp.eq.s32.totalorder %v424, 1
    %vm441 = vcmp.eq.s32.totalorder %v425, 1
    %vm442 = vcmp.eq.s32.totalorder %v426, 1
    %vm443 = vcmp.eq.s32.totalorder %v427, 1
    %vm444 = vcmp.eq.s32.totalorder %v428, 1
    %vm445 = vcmp.eq.s32.totalorder %v429, 1
    %vm446 = vcmp.eq.s32.totalorder %v430, 1
    %vm447 = vcmp.eq.s32.totalorder %v431, 1
    %vm448 = vcmp.eq.s32.totalorder %v432, 1
    %v449 = vsel %vm433, %v416, 0.0
    %v450 = vsel %vm434, %v415, 0.0
    %v451 = vsel %vm435, %v414, 0.0
    %v452 = vsel %vm436, %v413, 0.0
    %v453 = vsel %vm437, %v412, 0.0
    %v454 = vsel %vm438, %v411, 0.0
    %v455 = vsel %vm439, %v410, 0.0
    %v456 = vsel %vm440, %v409, 0.0
    %v457 = vsel %vm441, %v408, 0.0
    %v458 = vsel %vm442, %v407, 0.0
    %v459 = vsel %vm443, %v406, 0.0
    %v460 = vsel %vm444, %v405, 0.0
    %v461 = vsel %vm445, %v404, 0.0
    %v462 = vsel %vm446, %v403, 0.0
    %v463 = vsel %vm447, %v402, 0.0
    %v464 = vsel %vm448, %v401, 0.0
    %v465 = vrot.slane %v368, 1
    %v466 = vrot.slane %v369, 1
    %v467 = vrot.slane %v370, 1
    %v468 = vrot.slane %v371, 1
    %v469 = vrot.slane %v372, 1
    %v470 = vrot.slane %v373, 1
    %v471 = vrot.slane %v374, 1
    %v472 = vrot.slane %v375, 1
    %v473 = vrot.slane %v376, 1
    %v474 = vrot.slane %v377, 1
    %v475 = vrot.slane %v378, 1
    %v476 = vrot.slane %v379, 1
    %v477 = vrot.slane %v380, 1
    %v478 = vrot.slane %v381, 1
    %v479 = vrot.slane %v382, 1
    %v480 = vrot.slane %v383, 1
    %vm481 = vcmp.lt.s32.totalorder %v96, 7
    %v482 = vsel %vm481, %v479, %v480
    %v483 = vsel %vm481, %v478, %v479
    %v484 = vsel %vm481, %v477, %v478
    %v485 = vsel %vm481, %v476, %v477
    %v486 = vsel %vm481, %v475, %v476
    %v487 = vsel %vm481, %v474, %v475
    %v488 = vsel %vm481, %v473, %v474
    %v489 = vsel %vm481, %v472, %v473
    %v490 = vsel %vm481, %v471, %v472
    %v491 = vsel %vm481, %v470, %v471
    %v492 = vsel %vm481, %v469, %v470
    %v493 = vsel %vm481, %v468, %v469
    %v494 = vsel %vm481, %v467, %v468
    %v495 = vsel %vm481, %v466, %v467
    %v496 = vsel %vm481, %v465, %v466
    %v497 = vsel %vm481, %v480, %v465
    %v498 = vsel %vm320, 1, 0
    %v499 = vsel %vm321, 1, 0
    %v500 = vsel %vm322, 1, 0
    %v501 = vsel %vm323, 1, 0
    %v502 = vsel %vm324, 1, 0
    %v503 = vsel %vm325, 1, 0
    %v504 = vsel %vm326, 1, 0
    %v505 = vsel %vm327, 1, 0
    %v506 = vsel %vm328, 1, 0
    %v507 = vsel %vm329, 1, 0
    %v508 = vsel %vm330, 1, 0
    %v509 = vsel %vm331, 1, 0
    %v510 = vsel %vm332, 1, 0
    %v511 = vsel %vm333, 1, 0
    %v512 = vsel %vm334, 1, 0
    %v513 = vsel %vm335, 1, 0
    %vm514 = vcmp.eq.s32.totalorder %v498, 1
    %vm515 = vcmp.eq.s32.totalorder %v499, 1
    %vm516 = vcmp.eq.s32.totalorder %v500, 1
    %vm517 = vcmp.eq.s32.totalorder %v501, 1
    %vm518 = vcmp.eq.s32.totalorder %v502, 1
    %vm519 = vcmp.eq.s32.totalorder %v503, 1
    %vm520 = vcmp.eq.s32.totalorder %v504, 1
    %vm521 = vcmp.eq.s32.totalorder %v505, 1
    %vm522 = vcmp.eq.s32.totalorder %v506, 1
    %vm523 = vcmp.eq.s32.totalorder %v507, 1
    %vm524 = vcmp.eq.s32.totalorder %v508, 1
    %vm525 = vcmp.eq.s32.totalorder %v509, 1
    %vm526 = vcmp.eq.s32.totalorder %v510, 1
    %vm527 = vcmp.eq.s32.totalorder %v511, 1
    %vm528 = vcmp.eq.s32.totalorder %v512, 1
    %vm529 = vcmp.eq.s32.totalorder %v513, 1
    %v530 = vsel %vm514, %v496, 0.0
    %v531 = vsel %vm515, %v495, 0.0
    %v532 = vsel %vm516, %v494, 0.0
    %v533 = vsel %vm517, %v493, 0.0
    %v534 = vsel %vm518, %v492, 0.0
    %v535 = vsel %vm519, %v491, 0.0
    %v536 = vsel %vm520, %v490, 0.0
    %v537 = vsel %vm521, %v489, 0.0
    %v538 = vsel %vm522, %v488, 0.0
    %v539 = vsel %vm523, %v487, 0.0
    %v540 = vsel %vm524, %v486, 0.0
    %v541 = vsel %vm525, %v485, 0.0
    %v542 = vsel %vm526, %v484, 0.0
    %v543 = vsel %vm527, %v483, 0.0
    %v544 = vsel %vm528, %v482, 0.0
    %v545 = vsel %vm529, %v497, 0.0
    %v546 = vld [vmem:[#allocation7] sm:$0xff]
    %v547 = vld [vmem:[#allocation7 + $0x8] sm:$0xff]
    %v548 = vld [vmem:[#allocation7 + $0x10] sm:$0xff]
    %v549 = vld [vmem:[#allocation7 + $0x18] sm:$0xff]
    %v550 = vld [vmem:[#allocation7 + $0x20] sm:$0xff]
    %v551 = vld [vmem:[#allocation7 + $0x28] sm:$0xff]
    %v552 = vld [vmem:[#allocation7 + $0x30] sm:$0xff]
    %v553 = vld [vmem:[#allocation7 + $0x38] sm:$0xff]
    %v554 = vld [vmem:[#allocation7 + $0x40] sm:$0xff]
    %v555 = vld [vmem:[#allocation7 + $0x48] sm:$0xff]
    %v556 = vld [vmem:[#allocation7 + $0x50] sm:$0xff]
    %v557 = vld [vmem:[#allocation7 + $0x58] sm:$0xff]
    %v558 = vld [vmem:[#allocation7 + $0x60] sm:$0xff]
    %v559 = vld [vmem:[#allocation7 + $0x68] sm:$0xff]
    %v560 = vld [vmem:[#allocation7 + $0x70] sm:$0xff]
    %v561 = vld [vmem:[#allocation7 + $0x78] sm:$0xff]
    %s562 = scalar_lea.vmem [#allocation7], 128
    %v563 = vld [vmem:[%s562] sm:$0xff]
    %v564 = vld [vmem:[%s562 + $0x8] sm:$0xff]
    %v565 = vld [vmem:[%s562 + $0x10] sm:$0xff]
    %v566 = vld [vmem:[%s562 + $0x18] sm:$0xff]
    %v567 = vld [vmem:[%s562 + $0x20] sm:$0xff]
    %v568 = vld [vmem:[%s562 + $0x28] sm:$0xff]
    %v569 = vld [vmem:[%s562 + $0x30] sm:$0xff]
    %v570 = vld [vmem:[%s562 + $0x38] sm:$0xff]
    %v571 = vld [vmem:[%s562 + $0x40] sm:$0xff]
    %v572 = vld [vmem:[%s562 + $0x48] sm:$0xff]
    %v573 = vld [vmem:[%s562 + $0x50] sm:$0xff]
    %v574 = vld [vmem:[%s562 + $0x58] sm:$0xff]
    %v575 = vld [vmem:[%s562 + $0x60] sm:$0xff]
    %v576 = vld [vmem:[%s562 + $0x68] sm:$0xff]
    %v577 = vld [vmem:[%s562 + $0x70] sm:$0xff]
    %v578 = vld [vmem:[%s562 + $0x78] sm:$0xff]
    %579 = vmatprep.subr.mxu0 0.0
    %580 = vmatpush1.msra.mxu0 %v563
    %581 = vmatprep.subr.mxu0 0.0
    %582 = vmatpush1.msra.mxu0 %v564
    %583 = vmatprep.subr.mxu0 0.0
    %584 = vmatpush1.msra.mxu0 %v565
    %585 = vmatprep.subr.mxu0 0.0
    %586 = vmatpush1.msra.mxu0 %v566
    %587 = vmatprep.subr.mxu0 0.0
    %588 = vmatpush1.msra.mxu0 %v567
    %589 = vmatprep.subr.mxu0 0.0
    %590 = vmatpush1.msra.mxu0 %v568
    %591 = vmatprep.subr.mxu0 0.0
    %592 = vmatpush1.msra.mxu0 %v569
    %593 = vmatprep.subr.mxu0 0.0
    %594 = vmatpush1.msra.mxu0 %v570
    %595 = vmatprep.subr.mxu0 0.0
    %596 = vmatpush1.msra.mxu0 %v571
    %597 = vmatprep.subr.mxu0 0.0
    %598 = vmatpush1.msra.mxu0 %v572
    %599 = vmatprep.subr.mxu0 0.0
    %600 = vmatpush1.msra.mxu0 %v573
    %601 = vmatprep.subr.mxu0 0.0
    %602 = vmatpush1.msra.mxu0 %v574
    %603 = vmatprep.subr.mxu0 0.0
    %604 = vmatpush1.msra.mxu0 %v575
    %605 = vmatprep.subr.mxu0 0.0
    %606 = vmatpush1.msra.mxu0 %v576
    %607 = vmatprep.subr.mxu0 0.0
    %608 = vmatpush1.msra.mxu0 %v577
    %609 = vmatprep.subr.mxu0 0.0
    %610 = vmatpush1.msra.mxu0 %v578
    %611 = vmatprep.subr.mxu0 0.0
    %612 = vmatpush1.msra.mxu0 0.0
    %613 = vmatprep.subr.mxu0 0.0
    %614 = vmatpush1.msra.mxu0 0.0
    %615 = vmatprep.subr.mxu0 0.0
    %616 = vmatpush1.msra.mxu0 0.0
    %617 = vmatprep.subr.mxu0 0.0
    %618 = vmatpush1.msra.mxu0 0.0
    %619 = vmatprep.subr.mxu0 0.0
    %620 = vmatpush1.msra.mxu0 0.0
    %621 = vmatprep.subr.mxu0 0.0
    %622 = vmatpush1.msra.mxu0 0.0
    %623 = vmatprep.subr.mxu0 0.0
    %624 = vmatpush1.msra.mxu0 0.0
    %625 = vmatprep.subr.mxu0 0.0
    %626 = vmatpush1.msra.mxu0 0.0
    %627 = vmatprep.subr.mxu0 0.0
    %628 = vmatpush1.msra.mxu0 0.0
    %629 = vmatprep.subr.mxu0 0.0
    %630 = vmatpush1.msra.mxu0 0.0
    %631 = vmatprep.subr.mxu0 0.0
    %632 = vmatpush1.msra.mxu0 0.0
    %633 = vmatprep.subr.mxu0 0.0
    %634 = vmatpush1.msra.mxu0 0.0
    %635 = vmatprep.subr.mxu0 0.0
    %636 = vmatpush1.msra.mxu0 0.0
    %637 = vmatprep.subr.mxu0 0.0
    %638 = vmatpush1.msra.mxu0 0.0
    %639 = vmatprep.subr.mxu0 0.0
    %640 = vmatpush1.msra.mxu0 0.0
    %641 = vmatprep.subr.mxu0 0.0
    %642 = vmatpush1.msra.mxu0 0.0
    %643 = vmatprep.mubr.f32.mxu0 0.0
    %644 = vmatmul.mubr.f32.gmra.mrb[0].mxu0 %v368
    %v645 = vpop.f32.mrb[0].mxu0
    %v646 = vadd.f32 0.0, %v645
    %v647 = vpop.f32.mrb[0].mxu0
    %648 = vmatprep.mubr.f32.mxu0 0.0
    %649 = vmatmul.mubr.f32.gmra.mrb[0].mxu0 %v369
    %v650 = vpop.f32.mrb[0].mxu0
    %v651 = vadd.f32 0.0, %v650
    %v652 = vpop.f32.mrb[0].mxu0
    %653 = vmatprep.mubr.f32.mxu0 0.0
    %654 = vmatmul.mubr.f32.gmra.mrb[0].mxu0 %v370
    %v655 = vpop.f32.mrb[0].mxu0
    %v656 = vadd.f32 0.0, %v655
    %v657 = vpop.f32.mrb[0].mxu0
    %658 = vmatprep.mubr.f32.mxu0 0.0
    %659 = vmatmul.mubr.f32.gmra.mrb[0].mxu0 %v371
    %v660 = vpop.f32.mrb[0].mxu0
    %v661 = vadd.f32 0.0, %v660
    %v662 = vpop.f32.mrb[0].mxu0
    %663 = vmatprep.mubr.f32.mxu0 0.0
    %664 = vmatmul.mubr.f32.gmra.mrb[0].mxu0 %v372
    %v665 = vpop.f32.mrb[0].mxu0
    %v666 = vadd.f32 0.0, %v665
    %v667 = vpop.f32.mrb[0].mxu0
    %668 = vmatprep.mubr.f32.mxu0 0.0
    %669 = vmatmul.mubr.f32.gmra.mrb[0].mxu0 %v373
    %v670 = vpop.f32.mrb[0].mxu0
    %v671 = vadd.f32 0.0, %v670
    %v672 = vpop.f32.mrb[0].mxu0
    %673 = vmatprep.mubr.f32.mxu0 0.0
    %674 = vmatmul.mubr.f32.gmra.mrb[0].mxu0 %v374
    %v675 = vpop.f32.mrb[0].mxu0
    %v676 = vadd.f32 0.0, %v675
    %v677 = vpop.f32.mrb[0].mxu0
    %678 = vmatprep.mubr.f32.mxu0 0.0
    %679 = vmatmul.mubr.f32.gmra.mrb[0].mxu0 %v375
    %v680 = vpop.f32.mrb[0].mxu0
    %v681 = vadd.f32 0.0, %v680
    %v682 = vpop.f32.mrb[0].mxu0
    %683 = vmatprep.mubr.f32.mxu0 0.0
    %684 = vmatmul.mubr.f32.gmra.mrb[0].mxu0 %v376
    %v685 = vpop.f32.mrb[0].mxu0
    %v686 = vadd.f32 0.0, %v685
    %v687 = vpop.f32.mrb[0].mxu0
    %688 = vmatprep.mubr.f32.mxu0 0.0
    %689 = vmatmul.mubr.f32.gmra.mrb[0].mxu0 %v377
    %v690 = vpop.f32.mrb[0].mxu0
    %v691 = vadd.f32 0.0, %v690
    %v692 = vpop.f32.mrb[0].mxu0
    %693 = vmatprep.mubr.f32.mxu0 0.0
    %694 = vmatmul.mubr.f32.gmra.mrb[0].mxu0 %v378
    %v695 = vpop.f32.mrb[0].mxu0
    %v696 = vadd.f32 0.0, %v695
    %v697 = vpop.f32.mrb[0].mxu0
    %698 = vmatprep.mubr.f32.mxu0 0.0
    %699 = vmatmul.mubr.f32.gmra.mrb[0].mxu0 %v379
    %v700 = vpop.f32.mrb[0].mxu0
    %v701 = vadd.f32 0.0, %v700
    %v702 = vpop.f32.mrb[0].mxu0
    %703 = vmatprep.mubr.f32.mxu0 0.0
    %704 = vmatmul.mubr.f32.gmra.mrb[0].mxu0 %v380
    %v705 = vpop.f32.mrb[0].mxu0
    %v706 = vadd.f32 0.0, %v705
    %v707 = vpop.f32.mrb[0].mxu0
    %708 = vmatprep.mubr.f32.mxu0 0.0
    %709 = vmatmul.mubr.f32.gmra.mrb[0].mxu0 %v381
    %v710 = vpop.f32.mrb[0].mxu0
    %v711 = vadd.f32 0.0, %v710
    %v712 = vpop.f32.mrb[0].mxu0
    %713 = vmatprep.mubr.f32.mxu0 0.0
    %714 = vmatmul.mubr.f32.gmra.mrb[0].mxu0 %v382
    %v715 = vpop.f32.mrb[0].mxu0
    %v716 = vadd.f32 0.0, %v715
    %v717 = vpop.f32.mrb[0].mxu0
    %718 = vmatprep.mubr.f32.mxu0 0.0
    %719 = vmatmul.mubr.f32.gmra.mrb[0].mxu0 %v383
    %v720 = vpop.f32.mrb[0].mxu0
    %v721 = vadd.f32 0.0, %v720
    %v722 = vpop.f32.mrb[0].mxu0
    %723 = vdwg.mxu0
    %724 = vmatprep.subr.mxu0 0.0
    %725 = vmatpush1.msra.mxu0 %v546
    %726 = vmatprep.subr.mxu0 0.0
    %727 = vmatpush1.msra.mxu0 %v547
    %728 = vmatprep.subr.mxu0 0.0
    %729 = vmatpush1.msra.mxu0 %v548
    %730 = vmatprep.subr.mxu0 0.0
    %731 = vmatpush1.msra.mxu0 %v549
    %732 = vmatprep.subr.mxu0 0.0
    %733 = vmatpush1.msra.mxu0 %v550
    %734 = vmatprep.subr.mxu0 0.0
    %735 = vmatpush1.msra.mxu0 %v551
    %736 = vmatprep.subr.mxu0 0.0
    %737 = vmatpush1.msra.mxu0 %v552
    %738 = vmatprep.subr.mxu0 0.0
    %739 = vmatpush1.msra.mxu0 %v553
    %740 = vmatprep.subr.mxu0 0.0
    %741 = vmatpush1.msra.mxu0 %v554
    %742 = vmatprep.subr.mxu0 0.0
    %743 = vmatpush1.msra.mxu0 %v555
    %744 = vmatprep.subr.mxu0 0.0
    %745 = vmatpush1.msra.mxu0 %v556
    %746 = vmatprep.subr.mxu0 0.0
    %747 = vmatpush1.msra.mxu0 %v557
    %748 = vmatprep.subr.mxu0 0.0
    %749 = vmatpush1.msra.mxu0 %v558
    %750 = vmatprep.subr.mxu0 0.0
    %751 = vmatpush1.msra.mxu0 %v559
    %752 = vmatprep.subr.mxu0 0.0
    %753 = vmatpush1.msra.mxu0 %v560
    %754 = vmatprep.subr.mxu0 0.0
    %755 = vmatpush1.msra.mxu0 %v561
    %756 = vmatprep.subr.mxu0 0.0
    %757 = vmatpush1.msra.mxu0 0.0
    %758 = vmatprep.subr.mxu0 0.0
    %759 = vmatpush1.msra.mxu0 0.0
    %760 = vmatprep.subr.mxu0 0.0
    %761 = vmatpush1.msra.mxu0 0.0
    %762 = vmatprep.subr.mxu0 0.0
    %763 = vmatpush1.msra.mxu0 0.0
    %764 = vmatprep.subr.mxu0 0.0
    %765 = vmatpush1.msra.mxu0 0.0
    %766 = vmatprep.subr.mxu0 0.0
    %767 = vmatpush1.msra.mxu0 0.0
    %768 = vmatprep.subr.mxu0 0.0
    %769 = vmatpush1.msra.mxu0 0.0
    %770 = vmatprep.subr.mxu0 0.0
    %771 = vmatpush1.msra.mxu0 0.0
    %772 = vmatprep.subr.mxu0 0.0
    %773 = vmatpush1.msra.mxu0 0.0
    %774 = vmatprep.subr.mxu0 0.0
    %775 = vmatpush1.msra.mxu0 0.0
    %776 = vmatprep.subr.mxu0 0.0
    %777 = vmatpush1.msra.mxu0 0.0
    %778 = vmatprep.subr.mxu0 0.0
    %779 = vmatpush1.msra.mxu0 0.0
    %780 = vmatprep.subr.mxu0 0.0
    %781 = vmatpush1.msra.mxu0 0.0
    %782 = vmatprep.subr.mxu0 0.0
    %783 = vmatpush1.msra.mxu0 0.0
    %784 = vmatprep.subr.mxu0 0.0
    %785 = vmatpush1.msra.mxu0 0.0
    %786 = vmatprep.subr.mxu0 0.0
    %787 = vmatpush1.msra.mxu0 0.0
    %788 = vmatprep.mubr.f32.mxu0 0.0
    %789 = vmatmul.mubr.f32.gmra.mrb[0].mxu0 %v449
    %v790 = vpop.f32.mrb[0].mxu0
    %v791 = vadd.f32 %v646, %v790
    %v792 = vpop.f32.mrb[0].mxu0
    %793 = vmatprep.mubr.f32.mxu0 0.0
    %794 = vmatmul.mubr.f32.gmra.mrb[0].mxu0 %v450
    %v795 = vpop.f32.mrb[0].mxu0
    %v796 = vadd.f32 %v651, %v795
    %v797 = vpop.f32.mrb[0].mxu0
    %798 = vmatprep.mubr.f32.mxu0 0.0
    %799 = vmatmul.mubr.f32.gmra.mrb[0].mxu0 %v451
    %v800 = vpop.f32.mrb[0].mxu0
    %v801 = vadd.f32 %v656, %v800
    %v802 = vpop.f32.mrb[0].mxu0
    %803 = vmatprep.mubr.f32.mxu0 0.0
    %804 = vmatmul.mubr.f32.gmra.mrb[0].mxu0 %v452
    %v805 = vpop.f32.mrb[0].mxu0
    %v806 = vadd.f32 %v661, %v805
    %v807 = vpop.f32.mrb[0].mxu0
    %808 = vmatprep.mubr.f32.mxu0 0.0
    %809 = vmatmul.mubr.f32.gmra.mrb[0].mxu0 %v453
    %v810 = vpop.f32.mrb[0].mxu0
    %v811 = vadd.f32 %v666, %v810
    %v812 = vpop.f32.mrb[0].mxu0
    %813 = vmatprep.mubr.f32.mxu0 0.0
    %814 = vmatmul.mubr.f32.gmra.mrb[0].mxu0 %v454
    %v815 = vpop.f32.mrb[0].mxu0
    %v816 = vadd.f32 %v671, %v815
    %v817 = vpop.f32.mrb[0].mxu0
    %818 = vmatprep.mubr.f32.mxu0 0.0
    %819 = vmatmul.mubr.f32.gmra.mrb[0].mxu0 %v455
    %v820 = vpop.f32.mrb[0].mxu0
    %v821 = vadd.f32 %v676, %v820
    %v822 = vpop.f32.mrb[0].mxu0
    %823 = vmatprep.mubr.f32.mxu0 0.0
    %824 = vmatmul.mubr.f32.gmra.mrb[0].mxu0 %v456
    %v825 = vpop.f32.mrb[0].mxu0
    %v826 = vadd.f32 %v681, %v825
    %v827 = vpop.f32.mrb[0].mxu0
    %828 = vmatprep.mubr.f32.mxu0 0.0
    %829 = vmatmul.mubr.f32.gmra.mrb[0].mxu0 %v457
    %v830 = vpop.f32.mrb[0].mxu0
    %v831 = vadd.f32 %v686, %v830
    %v832 = vpop.f32.mrb[0].mxu0
    %833 = vmatprep.mubr.f32.mxu0 0.0
    %834 = vmatmul.mubr.f32.gmra.mrb[0].mxu0 %v458
    %v835 = vpop.f32.mrb[0].mxu0
    %v836 = vadd.f32 %v691, %v835
    %v837 = vpop.f32.mrb[0].mxu0
    %838 = vmatprep.mubr.f32.mxu0 0.0
    %839 = vmatmul.mubr.f32.gmra.mrb[0].mxu0 %v459
    %v840 = vpop.f32.mrb[0].mxu0
    %v841 = vadd.f32 %v696, %v840
    %v842 = vpop.f32.mrb[0].mxu0
    %843 = vmatprep.mubr.f32.mxu0 0.0
    %844 = vmatmul.mubr.f32.gmra.mrb[0].mxu0 %v460
    %v845 = vpop.f32.mrb[0].mxu0
    %v846 = vadd.f32 %v701, %v845
    %v847 = vpop.f32.mrb[0].mxu0
    %848 = vmatprep.mubr.f32.mxu0 0.0
    %849 = vmatmul.mubr.f32.gmra.mrb[0].mxu0 %v461
    %v850 = vpop.f32.mrb[0].mxu0
    %v851 = vadd.f32 %v706, %v850
    %v852 = vpop.f32.mrb[0].mxu0
    %853 = vmatprep.mubr.f32.mxu0 0.0
    %854 = vmatmul.mubr.f32.gmra.mrb[0].mxu0 %v462
    %v855 = vpop.f32.mrb[0].mxu0
    %v856 = vadd.f32 %v711, %v855
    %v857 = vpop.f32.mrb[0].mxu0
    %858 = vmatprep.mubr.f32.mxu0 0.0
    %859 = vmatmul.mubr.f32.gmra.mrb[0].mxu0 %v463
    %v860 = vpop.f32.mrb[0].mxu0
    %v861 = vadd.f32 %v716, %v860
    %v862 = vpop.f32.mrb[0].mxu0
    %863 = vmatprep.mubr.f32.mxu0 0.0
    %864 = vmatmul.mubr.f32.gmra.mrb[0].mxu0 %v464
    %v865 = vpop.f32.mrb[0].mxu0
    %v866 = vadd.f32 %v721, %v865
    %v867 = vpop.f32.mrb[0].mxu0
    %868 = vdwg.mxu0
    %s869 = scalar_lea.vmem [#allocation7], 256
    %v870 = vld [vmem:[%s869] sm:$0xff]
    %v871 = vld [vmem:[%s869 + $0x8] sm:$0xff]
    %v872 = vld [vmem:[%s869 + $0x10] sm:$0xff]
    %v873 = vld [vmem:[%s869 + $0x18] sm:$0xff]
    %v874 = vld [vmem:[%s869 + $0x20] sm:$0xff]
    %v875 = vld [vmem:[%s869 + $0x28] sm:$0xff]
    %v876 = vld [vmem:[%s869 + $0x30] sm:$0xff]
    %v877 = vld [vmem:[%s869 + $0x38] sm:$0xff]
    %v878 = vld [vmem:[%s869 + $0x40] sm:$0xff]
    %v879 = vld [vmem:[%s869 + $0x48] sm:$0xff]
    %v880 = vld [vmem:[%s869 + $0x50] sm:$0xff]
    %v881 = vld [vmem:[%s869 + $0x58] sm:$0xff]
    %v882 = vld [vmem:[%s869 + $0x60] sm:$0xff]
    %v883 = vld [vmem:[%s869 + $0x68] sm:$0xff]
    %v884 = vld [vmem:[%s869 + $0x70] sm:$0xff]
    %v885 = vld [vmem:[%s869 + $0x78] sm:$0xff]
    %886 = vmatprep.subr.mxu0 0.0
    %887 = vmatpush1.msra.mxu0 %v870
    %888 = vmatprep.subr.mxu0 0.0
    %889 = vmatpush1.msra.mxu0 %v871
    %890 = vmatprep.subr.mxu0 0.0
    %891 = vmatpush1.msra.mxu0 %v872
    %892 = vmatprep.subr.mxu0 0.0
    %893 = vmatpush1.msra.mxu0 %v873
    %894 = vmatprep.subr.mxu0 0.0
    %895 = vmatpush1.msra.mxu0 %v874
    %896 = vmatprep.subr.mxu0 0.0
    %897 = vmatpush1.msra.mxu0 %v875
    %898 = vmatprep.subr.mxu0 0.0
    %899 = vmatpush1.msra.mxu0 %v876
    %900 = vmatprep.subr.mxu0 0.0
    %901 = vmatpush1.msra.mxu0 %v877
    %902 = vmatprep.subr.mxu0 0.0
    %903 = vmatpush1.msra.mxu0 %v878
    %904 = vmatprep.subr.mxu0 0.0
    %905 = vmatpush1.msra.mxu0 %v879
    %906 = vmatprep.subr.mxu0 0.0
    %907 = vmatpush1.msra.mxu0 %v880
    %908 = vmatprep.subr.mxu0 0.0
    %909 = vmatpush1.msra.mxu0 %v881
    %910 = vmatprep.subr.mxu0 0.0
    %911 = vmatpush1.msra.mxu0 %v882
    %912 = vmatprep.subr.mxu0 0.0
    %913 = vmatpush1.msra.mxu0 %v883
    %914 = vmatprep.subr.mxu0 0.0
    %915 = vmatpush1.msra.mxu0 %v884
    %916 = vmatprep.subr.mxu0 0.0
    %917 = vmatpush1.msra.mxu0 %v885
    %918 = vmatprep.subr.mxu0 0.0
    %919 = vmatpush1.msra.mxu0 0.0
    %920 = vmatprep.subr.mxu0 0.0
    %921 = vmatpush1.msra.mxu0 0.0
    %922 = vmatprep.subr.mxu0 0.0
    %923 = vmatpush1.msra.mxu0 0.0
    %924 = vmatprep.subr.mxu0 0.0
    %925 = vmatpush1.msra.mxu0 0.0
    %926 = vmatprep.subr.mxu0 0.0
    %927 = vmatpush1.msra.mxu0 0.0
    %928 = vmatprep.subr.mxu0 0.0
    %929 = vmatpush1.msra.mxu0 0.0
    %930 = vmatprep.subr.mxu0 0.0
    %931 = vmatpush1.msra.mxu0 0.0
    %932 = vmatprep.subr.mxu0 0.0
    %933 = vmatpush1.msra.mxu0 0.0
    %934 = vmatprep.subr.mxu0 0.0
    %935 = vmatpush1.msra.mxu0 0.0
    %936 = vmatprep.subr.mxu0 0.0
    %937 = vmatpush1.msra.mxu0 0.0
    %938 = vmatprep.subr.mxu0 0.0
    %939 = vmatpush1.msra.mxu0 0.0
    %940 = vmatprep.subr.mxu0 0.0
    %941 = vmatpush1.msra.mxu0 0.0
    %942 = vmatprep.subr.mxu0 0.0
    %943 = vmatpush1.msra.mxu0 0.0
    %944 = vmatprep.subr.mxu0 0.0
    %945 = vmatpush1.msra.mxu0 0.0
    %946 = vmatprep.subr.mxu0 0.0
    %947 = vmatpush1.msra.mxu0 0.0
    %948 = vmatprep.subr.mxu0 0.0
    %949 = vmatpush1.msra.mxu0 0.0
    %950 = vmatprep.mubr.f32.mxu0 0.0
    %951 = vmatmul.mubr.f32.gmra.mrb[0].mxu0 %v530
    %v952 = vpop.f32.mrb[0].mxu0
    %v953 = vadd.f32 0.0, %v952
    %v954 = vpop.f32.mrb[0].mxu0
    %955 = vmatprep.mubr.f32.mxu0 0.0
    %956 = vmatmul.mubr.f32.gmra.mrb[0].mxu0 %v531
    %v957 = vpop.f32.mrb[0].mxu0
    %v958 = vadd.f32 0.0, %v957
    %v959 = vpop.f32.mrb[0].mxu0
    %960 = vmatprep.mubr.f32.mxu0 0.0
    %961 = vmatmul.mubr.f32.gmra.mrb[0].mxu0 %v532
    %v962 = vpop.f32.mrb[0].mxu0
    %v963 = vadd.f32 0.0, %v962
    %v964 = vpop.f32.mrb[0].mxu0
    %965 = vmatprep.mubr.f32.mxu0 0.0
    %966 = vmatmul.mubr.f32.gmra.mrb[0].mxu0 %v533
    %v967 = vpop.f32.mrb[0].mxu0
    %v968 = vadd.f32 0.0, %v967
    %v969 = vpop.f32.mrb[0].mxu0
    %970 = vmatprep.mubr.f32.mxu0 0.0
    %971 = vmatmul.mubr.f32.gmra.mrb[0].mxu0 %v534
    %v972 = vpop.f32.mrb[0].mxu0
    %v973 = vadd.f32 0.0, %v972
    %v974 = vpop.f32.mrb[0].mxu0
    %975 = vmatprep.mubr.f32.mxu0 0.0
    %976 = vmatmul.mubr.f32.gmra.mrb[0].mxu0 %v535
    %v977 = vpop.f32.mrb[0].mxu0
    %v978 = vadd.f32 0.0, %v977
    %v979 = vpop.f32.mrb[0].mxu0
    %980 = vmatprep.mubr.f32.mxu0 0.0
    %981 = vmatmul.mubr.f32.gmra.mrb[0].mxu0 %v536
    %v982 = vpop.f32.mrb[0].mxu0
    %v983 = vadd.f32 0.0, %v982
    %v984 = vpop.f32.mrb[0].mxu0
    %985 = vmatprep.mubr.f32.mxu0 0.0
    %986 = vmatmul.mubr.f32.gmra.mrb[0].mxu0 %v537
    %v987 = vpop.f32.mrb[0].mxu0
    %v988 = vadd.f32 0.0, %v987
    %v989 = vpop.f32.mrb[0].mxu0
    %990 = vmatprep.mubr.f32.mxu0 0.0
    %991 = vmatmul.mubr.f32.gmra.mrb[0].mxu0 %v538
    %v992 = vpop.f32.mrb[0].mxu0
    %v993 = vadd.f32 0.0, %v992
    %v994 = vpop.f32.mrb[0].mxu0
    %995 = vmatprep.mubr.f32.mxu0 0.0
    %996 = vmatmul.mubr.f32.gmra.mrb[0].mxu0 %v539
    %v997 = vpop.f32.mrb[0].mxu0
    %v998 = vadd.f32 0.0, %v997
    %v999 = vpop.f32.mrb[0].mxu0
    %1000 = vmatprep.mubr.f32.mxu0 0.0
    %1001 = vmatmul.mubr.f32.gmra.mrb[0].mxu0 %v540
    %v1002 = vpop.f32.mrb[0].mxu0
    %v1003 = vadd.f32 0.0, %v1002
    %v1004 = vpop.f32.mrb[0].mxu0
    %1005 = vmatprep.mubr.f32.mxu0 0.0
    %1006 = vmatmul.mubr.f32.gmra.mrb[0].mxu0 %v541
    %v1007 = vpop.f32.mrb[0].mxu0
    %v1008 = vadd.f32 0.0, %v1007
    %v1009 = vpop.f32.mrb[0].mxu0
    %1010 = vmatprep.mubr.f32.mxu0 0.0
    %1011 = vmatmul.mubr.f32.gmra.mrb[0].mxu0 %v542
    %v1012 = vpop.f32.mrb[0].mxu0
    %v1013 = vadd.f32 0.0, %v1012
    %v1014 = vpop.f32.mrb[0].mxu0
    %1015 = vmatprep.mubr.f32.mxu0 0.0
    %1016 = vmatmul.mubr.f32.gmra.mrb[0].mxu0 %v543
    %v1017 = vpop.f32.mrb[0].mxu0
    %v1018 = vadd.f32 0.0, %v1017
    %v1019 = vpop.f32.mrb[0].mxu0
    %1020 = vmatprep.mubr.f32.mxu0 0.0
    %1021 = vmatmul.mubr.f32.gmra.mrb[0].mxu0 %v544
    %v1022 = vpop.f32.mrb[0].mxu0
    %v1023 = vadd.f32 0.0, %v1022
    %v1024 = vpop.f32.mrb[0].mxu0
    %1025 = vmatprep.mubr.f32.mxu0 0.0
    %1026 = vmatmul.mubr.f32.gmra.mrb[0].mxu0 %v545
    %v1027 = vpop.f32.mrb[0].mxu0
    %v1028 = vadd.f32 0.0, %v1027
    %v1029 = vpop.f32.mrb[0].mxu0
    %1030 = vdwg.mxu0
    %v1031 = vadd.f32 %v791, %v953
    %v1032 = vadd.f32 %v796, %v958
    %v1033 = vadd.f32 %v801, %v963
    %v1034 = vadd.f32 %v806, %v968
    %v1035 = vadd.f32 %v811, %v973
    %v1036 = vadd.f32 %v816, %v978
    %v1037 = vadd.f32 %v821, %v983
    %v1038 = vadd.f32 %v826, %v988
    %v1039 = vadd.f32 %v831, %v993
    %v1040 = vadd.f32 %v836, %v998
    %v1041 = vadd.f32 %v841, %v1003
    %v1042 = vadd.f32 %v846, %v1008
    %v1043 = vadd.f32 %v851, %v1013
    %v1044 = vadd.f32 %v856, %v1018
    %v1045 = vadd.f32 %v861, %v1023
    %v1046 = vadd.f32 %v866, %v1028
    %v1047 = vld [vmem:[%s3] sm:$0x1]
    %v1049 = vlaneseq
    %v1050 = vshrl.u32 %v1049, 7
    %v1051 = vsub.s32 0, %v1050
    %v1052 = vrot.slane %v1047, %v1051
    %v1054 = vadd.f32 %v1031, %v1052
    %v1055 = vadd.f32 %v1032, %v1052
    %v1056 = vadd.f32 %v1033, %v1052
    %v1057 = vadd.f32 %v1034, %v1052
    %v1058 = vadd.f32 %v1035, %v1052
    %v1059 = vadd.f32 %v1036, %v1052
    %v1060 = vadd.f32 %v1037, %v1052
    %v1061 = vadd.f32 %v1038, %v1052
    %v1062 = vadd.f32 %v1039, %v1052
    %v1063 = vadd.f32 %v1040, %v1052
    %v1064 = vadd.f32 %v1041, %v1052
    %v1065 = vadd.f32 %v1042, %v1052
    %v1066 = vadd.f32 %v1043, %v1052
    %v1067 = vadd.f32 %v1044, %v1052
    %v1068 = vadd.f32 %v1045, %v1052
    %v1069 = vadd.f32 %v1046, %v1052
    %v1070 = vmax.f32 %v1054, 0.0
    %v1071 = vmax.f32 %v1055, 0.0
    %v1072 = vmax.f32 %v1056, 0.0
    %v1073 = vmax.f32 %v1057, 0.0
    %v1074 = vmax.f32 %v1058, 0.0
    %v1075 = vmax.f32 %v1059, 0.0
    %v1076 = vmax.f32 %v1060, 0.0
    %v1077 = vmax.f32 %v1061, 0.0
    %v1078 = vmax.f32 %v1062, 0.0
    %v1079 = vmax.f32 %v1063, 0.0
    %v1080 = vmax.f32 %v1064, 0.0
    %v1081 = vmax.f32 %v1065, 0.0
    %v1082 = vmax.f32 %v1066, 0.0
    %v1083 = vmax.f32 %v1067, 0.0
    %v1084 = vmax.f32 %v1068, 0.0
    %v1085 = vmax.f32 %v1069, 0.0
    %v1086 = vrot.slane %v1070, 7
    %v1087 = vrot.slane %v1071, 7
    %v1088 = vrot.slane %v1072, 7
    %v1089 = vrot.slane %v1073, 7
    %v1090 = vrot.slane %v1074, 7
    %v1091 = vrot.slane %v1075, 7
    %v1092 = vrot.slane %v1076, 7
    %v1093 = vrot.slane %v1077, 7
    %v1094 = vrot.slane %v1078, 7
    %v1095 = vrot.slane %v1079, 7
    %v1096 = vrot.slane %v1080, 7
    %v1097 = vrot.slane %v1081, 7
    %v1098 = vrot.slane %v1082, 7
    %v1099 = vrot.slane %v1083, 7
    %v1100 = vrot.slane %v1084, 7
    %v1101 = vrot.slane %v1085, 7
    %v1102 = vsel %vm400, %v1100, %v1101
    %v1103 = vsel %vm400, %v1099, %v1100
    %v1104 = vsel %vm400, %v1098, %v1099
    %v1105 = vsel %vm400, %v1097, %v1098
    %v1106 = vsel %vm400, %v1096, %v1097
    %v1107 = vsel %vm400, %v1095, %v1096
    %v1108 = vsel %vm400, %v1094, %v1095
    %v1109 = vsel %vm400, %v1093, %v1094
    %v1110 = vsel %vm400, %v1092, %v1093
    %v1111 = vsel %vm400, %v1091, %v1092
    %v1112 = vsel %vm400, %v1090, %v1091
    %v1113 = vsel %vm400, %v1089, %v1090
    %v1114 = vsel %vm400, %v1088, %v1089
    %v1115 = vsel %vm400, %v1087, %v1088
    %v1116 = vsel %vm400, %v1086, %v1087
    %v1117 = vsel %vm400, %v1101, %v1086
    %v1118 = vsel %vm433, %v1117, 0.0
    %v1119 = vsel %vm434, %v1116, 0.0
    %v1120 = vsel %vm435, %v1115, 0.0
    %v1121 = vsel %vm436, %v1114, 0.0
    %v1122 = vsel %vm437, %v1113, 0.0
    %v1123 = vsel %vm438, %v1112, 0.0
    %v1124 = vsel %vm439, %v1111, 0.0
    %v1125 = vsel %vm440, %v1110, 0.0
    %v1126 = vsel %vm441, %v1109, 0.0
    %v1127 = vsel %vm442, %v1108, 0.0
    %v1128 = vsel %vm443, %v1107, 0.0
    %v1129 = vsel %vm444, %v1106, 0.0
    %v1130 = vsel %vm445, %v1105, 0.0
    %v1131 = vsel %vm446, %v1104, 0.0
    %v1132 = vsel %vm447, %v1103, 0.0
    %v1133 = vsel %vm448, %v1102, 0.0
    %v1134 = vrot.slane %v1070, 1
    %v1135 = vrot.slane %v1071, 1
    %v1136 = vrot.slane %v1072, 1
    %v1137 = vrot.slane %v1073, 1
    %v1138 = vrot.slane %v1074, 1
    %v1139 = vrot.slane %v1075, 1
    %v1140 = vrot.slane %v1076, 1
    %v1141 = vrot.slane %v1077, 1
    %v1142 = vrot.slane %v1078, 1
    %v1143 = vrot.slane %v1079, 1
    %v1144 = vrot.slane %v1080, 1
    %v1145 = vrot.slane %v1081, 1
    %v1146 = vrot.slane %v1082, 1
    %v1147 = vrot.slane %v1083, 1
    %v1148 = vrot.slane %v1084, 1
    %v1149 = vrot.slane %v1085, 1
    %v1150 = vsel %vm481, %v1148, %v1149
    %v1151 = vsel %vm481, %v1147, %v1148
    %v1152 = vsel %vm481, %v1146, %v1147
    %v1153 = vsel %vm481, %v1145, %v1146
    %v1154 = vsel %vm481, %v1144, %v1145
    %v1155 = vsel %vm481, %v1143, %v1144
    %v1156 = vsel %vm481, %v1142, %v1143
    %v1157 = vsel %vm481, %v1141, %v1142
    %v1158 = vsel %vm481, %v1140, %v1141
    %v1159 = vsel %vm481, %v1139, %v1140
    %v1160 = vsel %vm481, %v1138, %v1139
    %v1161 = vsel %vm481, %v1137, %v1138
    %v1162 = vsel %vm481, %v1136, %v1137
    %v1163 = vsel %vm481, %v1135, %v1136
    %v1164 = vsel %vm481, %v1134, %v1135
    %v1165 = vsel %vm481, %v1149, %v1134
    %v1166 = vsel %vm514, %v1164, 0.0
    %v1167 = vsel %vm515, %v1163, 0.0
    %v1168 = vsel %vm516, %v1162, 0.0
    %v1169 = vsel %vm517, %v1161, 0.0
    %v1170 = vsel %vm518, %v1160, 0.0
    %v1171 = vsel %vm519, %v1159, 0.0
    %v1172 = vsel %vm520, %v1158, 0.0
    %v1173 = vsel %vm521, %v1157, 0.0
    %v1174 = vsel %vm522, %v1156, 0.0
    %v1175 = vsel %vm523, %v1155, 0.0
    %v1176 = vsel %vm524, %v1154, 0.0
    %v1177 = vsel %vm525, %v1153, 0.0
    %v1178 = vsel %vm526, %v1152, 0.0
    %v1179 = vsel %vm527, %v1151, 0.0
    %v1180 = vsel %vm528, %v1150, 0.0
    %v1181 = vsel %vm529, %v1165, 0.0
    %s1182 = scalar_lea.vmem [#allocation7], 384
    %v1183 = vld [vmem:[%s1182] sm:$0xff]
    %v1184 = vld [vmem:[%s1182 + $0x8] sm:$0xff]
    %v1185 = vld [vmem:[%s1182 + $0x10] sm:$0xff]
    %v1186 = vld [vmem:[%s1182 + $0x18] sm:$0xff]
    %v1187 = vld [vmem:[%s1182 + $0x20] sm:$0xff]
    %v1188 = vld [vmem:[%s1182 + $0x28] sm:$0xff]
    %v1189 = vld [vmem:[%s1182 + $0x30] sm:$0xff]
    %v1190 = vld [vmem:[%s1182 + $0x38] sm:$0xff]
    %v1191 = vld [vmem:[%s1182 + $0x40] sm:$0xff]
    %v1192 = vld [vmem:[%s1182 + $0x48] sm:$0xff]
    %v1193 = vld [vmem:[%s1182 + $0x50] sm:$0xff]
    %v1194 = vld [vmem:[%s1182 + $0x58] sm:$0xff]
    %v1195 = vld [vmem:[%s1182 + $0x60] sm:$0xff]
    %v1196 = vld [vmem:[%s1182 + $0x68] sm:$0xff]
    %v1197 = vld [vmem:[%s1182 + $0x70] sm:$0xff]
    %v1198 = vld [vmem:[%s1182 + $0x78] sm:$0xff]
    %s1199 = scalar_lea.vmem [#allocation7], 512
    %v1200 = vld [vmem:[%s1199] sm:$0xff]
    %v1201 = vld [vmem:[%s1199 + $0x8] sm:$0xff]
    %v1202 = vld [vmem:[%s1199 + $0x10] sm:$0xff]
    %v1203 = vld [vmem:[%s1199 + $0x18] sm:$0xff]
    %v1204 = vld [vmem:[%s1199 + $0x20] sm:$0xff]
    %v1205 = vld [vmem:[%s1199 + $0x28] sm:$0xff]
    %v1206 = vld [vmem:[%s1199 + $0x30] sm:$0xff]
    %v1207 = vld [vmem:[%s1199 + $0x38] sm:$0xff]
    %v1208 = vld [vmem:[%s1199 + $0x40] sm:$0xff]
    %v1209 = vld [vmem:[%s1199 + $0x48] sm:$0xff]
    %v1210 = vld [vmem:[%s1199 + $0x50] sm:$0xff]
    %v1211 = vld [vmem:[%s1199 + $0x58] sm:$0xff]
    %v1212 = vld [vmem:[%s1199 + $0x60] sm:$0xff]
    %v1213 = vld [vmem:[%s1199 + $0x68] sm:$0xff]
    %v1214 = vld [vmem:[%s1199 + $0x70] sm:$0xff]
    %v1215 = vld [vmem:[%s1199 + $0x78] sm:$0xff]
    %1216 = vmatprep.subr.mxu0 0.0
    %1217 = vmatpush1.msra.mxu0 %v1200
    %1218 = vmatprep.subr.mxu0 0.0
    %1219 = vmatpush1.msra.mxu0 %v1201
    %1220 = vmatprep.subr.mxu0 0.0
    %1221 = vmatpush1.msra.mxu0 %v1202
    %1222 = vmatprep.subr.mxu0 0.0
    %1223 = vmatpush1.msra.mxu0 %v1203
    %1224 = vmatprep.subr.mxu0 0.0
    %1225 = vmatpush1.msra.mxu0 %v1204
    %1226 = vmatprep.subr.mxu0 0.0
    %1227 = vmatpush1.msra.mxu0 %v1205
    %1228 = vmatprep.subr.mxu0 0.0
    %1229 = vmatpush1.msra.mxu0 %v1206
    %1230 = vmatprep.subr.mxu0 0.0
    %1231 = vmatpush1.msra.mxu0 %v1207
    %1232 = vmatprep.subr.mxu0 0.0
    %1233 = vmatpush1.msra.mxu0 %v1208
    %1234 = vmatprep.subr.mxu0 0.0
    %1235 = vmatpush1.msra.mxu0 %v1209
    %1236 = vmatprep.subr.mxu0 0.0
    %1237 = vmatpush1.msra.mxu0 %v1210
    %1238 = vmatprep.subr.mxu0 0.0
    %1239 = vmatpush1.msra.mxu0 %v1211
    %1240 = vmatprep.subr.mxu0 0.0
    %1241 = vmatpush1.msra.mxu0 %v1212
    %1242 = vmatprep.subr.mxu0 0.0
    %1243 = vmatpush1.msra.mxu0 %v1213
    %1244 = vmatprep.subr.mxu0 0.0
    %1245 = vmatpush1.msra.mxu0 %v1214
    %1246 = vmatprep.subr.mxu0 0.0
    %1247 = vmatpush1.msra.mxu0 %v1215
    %1248 = vmatprep.subr.mxu0 0.0
    %1249 = vmatpush1.msra.mxu0 0.0
    %1250 = vmatprep.subr.mxu0 0.0
    %1251 = vmatpush1.msra.mxu0 0.0
    %1252 = vmatprep.subr.mxu0 0.0
    %1253 = vmatpush1.msra.mxu0 0.0
    %1254 = vmatprep.subr.mxu0 0.0
    %1255 = vmatpush1.msra.mxu0 0.0
    %1256 = vmatprep.subr.mxu0 0.0
    %1257 = vmatpush1.msra.mxu0 0.0
    %1258 = vmatprep.subr.mxu0 0.0
    %1259 = vmatpush1.msra.mxu0 0.0
    %1260 = vmatprep.subr.mxu0 0.0
    %1261 = vmatpush1.msra.mxu0 0.0
    %1262 = vmatprep.subr.mxu0 0.0
    %1263 = vmatpush1.msra.mxu0 0.0
    %1264 = vmatprep.subr.mxu0 0.0
    %1265 = vmatpush1.msra.mxu0 0.0
    %1266 = vmatprep.subr.mxu0 0.0
    %1267 = vmatpush1.msra.mxu0 0.0
    %1268 = vmatprep.subr.mxu0 0.0
    %1269 = vmatpush1.msra.mxu0 0.0
    %1270 = vmatprep.subr.mxu0 0.0
    %1271 = vmatpush1.msra.mxu0 0.0
    %1272 = vmatprep.subr.mxu0 0.0
    %1273 = vmatpush1.msra.mxu0 0.0
    %1274 = vmatprep.subr.mxu0 0.0
    %1275 = vmatpush1.msra.mxu0 0.0
    %1276 = vmatprep.subr.mxu0 0.0
    %1277 = vmatpush1.msra.mxu0 0.0
    %1278 = vmatprep.subr.mxu0 0.0
    %1279 = vmatpush1.msra.mxu0 0.0
    %1280 = vmatprep.mubr.f32.mxu0 0.0
    %1281 = vmatmul.mubr.f32.gmra.mrb[0].mxu0 %v1070
    %v1282 = vpop.f32.mrb[0].mxu0
    %v1283 = vadd.f32 0.0, %v1282
    %v1284 = vpop.f32.mrb[0].mxu0
    %1285 = vmatprep.mubr.f32.mxu0 0.0
    %1286 = vmatmul.mubr.f32.gmra.mrb[0].mxu0 %v1071
    %v1287 = vpop.f32.mrb[0].mxu0
    %v1288 = vadd.f32 0.0, %v1287
    %v1289 = vpop.f32.mrb[0].mxu0
    %1290 = vmatprep.mubr.f32.mxu0 0.0
    %1291 = vmatmul.mubr.f32.gmra.mrb[0].mxu0 %v1072
    %v1292 = vpop.f32.mrb[0].mxu0
    %v1293 = vadd.f32 0.0, %v1292
    %v1294 = vpop.f32.mrb[0].mxu0
    %1295 = vmatprep.mubr.f32.mxu0 0.0
    %1296 = vmatmul.mubr.f32.gmra.mrb[0].mxu0 %v1073
    %v1297 = vpop.f32.mrb[0].mxu0
    %v1298 = vadd.f32 0.0, %v1297
    %v1299 = vpop.f32.mrb[0].mxu0
    %1300 = vmatprep.mubr.f32.mxu0 0.0
    %1301 = vmatmul.mubr.f32.gmra.mrb[0].mxu0 %v1074
    %v1302 = vpop.f32.mrb[0].mxu0
    %v1303 = vadd.f32 0.0, %v1302
    %v1304 = vpop.f32.mrb[0].mxu0
    %1305 = vmatprep.mubr.f32.mxu0 0.0
    %1306 = vmatmul.mubr.f32.gmra.mrb[0].mxu0 %v1075
    %v1307 = vpop.f32.mrb[0].mxu0
    %v1308 = vadd.f32 0.0, %v1307
    %v1309 = vpop.f32.mrb[0].mxu0
    %1310 = vmatprep.mubr.f32.mxu0 0.0
    %1311 = vmatmul.mubr.f32.gmra.mrb[0].mxu0 %v1076
    %v1312 = vpop.f32.mrb[0].mxu0
    %v1313 = vadd.f32 0.0, %v1312
    %v1314 = vpop.f32.mrb[0].mxu0
    %1315 = vmatprep.mubr.f32.mxu0 0.0
    %1316 = vmatmul.mubr.f32.gmra.mrb[0].mxu0 %v1077
    %v1317 = vpop.f32.mrb[0].mxu0
    %v1318 = vadd.f32 0.0, %v1317
    %v1319 = vpop.f32.mrb[0].mxu0
    %1320 = vmatprep.mubr.f32.mxu0 0.0
    %1321 = vmatmul.mubr.f32.gmra.mrb[0].mxu0 %v1078
    %v1322 = vpop.f32.mrb[0].mxu0
    %v1323 = vadd.f32 0.0, %v1322
    %v1324 = vpop.f32.mrb[0].mxu0
    %1325 = vmatprep.mubr.f32.mxu0 0.0
    %1326 = vmatmul.mubr.f32.gmra.mrb[0].mxu0 %v1079
    %v1327 = vpop.f32.mrb[0].mxu0
    %v1328 = vadd.f32 0.0, %v1327
    %v1329 = vpop.f32.mrb[0].mxu0
    %1330 = vmatprep.mubr.f32.mxu0 0.0
    %1331 = vmatmul.mubr.f32.gmra.mrb[0].mxu0 %v1080
    %v1332 = vpop.f32.mrb[0].mxu0
    %v1333 = vadd.f32 0.0, %v1332
    %v1334 = vpop.f32.mrb[0].mxu0
    %1335 = vmatprep.mubr.f32.mxu0 0.0
    %1336 = vmatmul.mubr.f32.gmra.mrb[0].mxu0 %v1081
    %v1337 = vpop.f32.mrb[0].mxu0
    %v1338 = vadd.f32 0.0, %v1337
    %v1339 = vpop.f32.mrb[0].mxu0
    %1340 = vmatprep.mubr.f32.mxu0 0.0
    %1341 = vmatmul.mubr.f32.gmra.mrb[0].mxu0 %v1082
    %v1342 = vpop.f32.mrb[0].mxu0
    %v1343 = vadd.f32 0.0, %v1342
    %v1344 = vpop.f32.mrb[0].mxu0
    %1345 = vmatprep.mubr.f32.mxu0 0.0
    %1346 = vmatmul.mubr.f32.gmra.mrb[0].mxu0 %v1083
    %v1347 = vpop.f32.mrb[0].mxu0
    %v1348 = vadd.f32 0.0, %v1347
    %v1349 = vpop.f32.mrb[0].mxu0
    %1350 = vmatprep.mubr.f32.mxu0 0.0
    %1351 = vmatmul.mubr.f32.gmra.mrb[0].mxu0 %v1084
    %v1352 = vpop.f32.mrb[0].mxu0
    %v1353 = vadd.f32 0.0, %v1352
    %v1354 = vpop.f32.mrb[0].mxu0
    %1355 = vmatprep.mubr.f32.mxu0 0.0
    %1356 = vmatmul.mubr.f32.gmra.mrb[0].mxu0 %v1085
    %v1357 = vpop.f32.mrb[0].mxu0
    %v1358 = vadd.f32 0.0, %v1357
    %v1359 = vpop.f32.mrb[0].mxu0
    %1360 = vdwg.mxu0
    %1361 = vmatprep.subr.mxu0 0.0
    %1362 = vmatpush1.msra.mxu0 %v1183
    %1363 = vmatprep.subr.mxu0 0.0
    %1364 = vmatpush1.msra.mxu0 %v1184
    %1365 = vmatprep.subr.mxu0 0.0
    %1366 = vmatpush1.msra.mxu0 %v1185
    %1367 = vmatprep.subr.mxu0 0.0
    %1368 = vmatpush1.msra.mxu0 %v1186
    %1369 = vmatprep.subr.mxu0 0.0
    %1370 = vmatpush1.msra.mxu0 %v1187
    %1371 = vmatprep.subr.mxu0 0.0
    %1372 = vmatpush1.msra.mxu0 %v1188
    %1373 = vmatprep.subr.mxu0 0.0
    %1374 = vmatpush1.msra.mxu0 %v1189
    %1375 = vmatprep.subr.mxu0 0.0
    %1376 = vmatpush1.msra.mxu0 %v1190
    %1377 = vmatprep.subr.mxu0 0.0
    %1378 = vmatpush1.msra.mxu0 %v1191
    %1379 = vmatprep.subr.mxu0 0.0
    %1380 = vmatpush1.msra.mxu0 %v1192
    %1381 = vmatprep.subr.mxu0 0.0
    %1382 = vmatpush1.msra.mxu0 %v1193
    %1383 = vmatprep.subr.mxu0 0.0
    %1384 = vmatpush1.msra.mxu0 %v1194
    %1385 = vmatprep.subr.mxu0 0.0
    %1386 = vmatpush1.msra.mxu0 %v1195
    %1387 = vmatprep.subr.mxu0 0.0
    %1388 = vmatpush1.msra.mxu0 %v1196
    %1389 = vmatprep.subr.mxu0 0.0
    %1390 = vmatpush1.msra.mxu0 %v1197
    %1391 = vmatprep.subr.mxu0 0.0
    %1392 = vmatpush1.msra.mxu0 %v1198
    %1393 = vmatprep.subr.mxu0 0.0
    %1394 = vmatpush1.msra.mxu0 0.0
    %1395 = vmatprep.subr.mxu0 0.0
    %1396 = vmatpush1.msra.mxu0 0.0
    %1397 = vmatprep.subr.mxu0 0.0
    %1398 = vmatpush1.msra.mxu0 0.0
    %1399 = vmatprep.subr.mxu0 0.0
    %1400 = vmatpush1.msra.mxu0 0.0
    %1401 = vmatprep.subr.mxu0 0.0
    %1402 = vmatpush1.msra.mxu0 0.0
    %1403 = vmatprep.subr.mxu0 0.0
    %1404 = vmatpush1.msra.mxu0 0.0
    %1405 = vmatprep.subr.mxu0 0.0
    %1406 = vmatpush1.msra.mxu0 0.0
    %1407 = vmatprep.subr.mxu0 0.0
    %1408 = vmatpush1.msra.mxu0 0.0
    %1409 = vmatprep.subr.mxu0 0.0
    %1410 = vmatpush1.msra.mxu0 0.0
    %1411 = vmatprep.subr.mxu0 0.0
    %1412 = vmatpush1.msra.mxu0 0.0
    %1413 = vmatprep.subr.mxu0 0.0
    %1414 = vmatpush1.msra.mxu0 0.0
    %1415 = vmatprep.subr.mxu0 0.0
    %1416 = vmatpush1.msra.mxu0 0.0
    %1417 = vmatprep.subr.mxu0 0.0
    %1418 = vmatpush1.msra.mxu0 0.0
    %1419 = vmatprep.subr.mxu0 0.0
    %1420 = vmatpush1.msra.mxu0 0.0
    %1421 = vmatprep.subr.mxu0 0.0
    %1422 = vmatpush1.msra.mxu0 0.0
    %1423 = vmatprep.subr.mxu0 0.0
    %1424 = vmatpush1.msra.mxu0 0.0
    %1425 = vmatprep.mubr.f32.mxu0 0.0
    %1426 = vmatmul.mubr.f32.gmra.mrb[0].mxu0 %v1118
    %v1427 = vpop.f32.mrb[0].mxu0
    %v1428 = vadd.f32 %v1283, %v1427
    %v1429 = vpop.f32.mrb[0].mxu0
    %1430 = vmatprep.mubr.f32.mxu0 0.0
    %1431 = vmatmul.mubr.f32.gmra.mrb[0].mxu0 %v1119
    %v1432 = vpop.f32.mrb[0].mxu0
    %v1433 = vadd.f32 %v1288, %v1432
    %v1434 = vpop.f32.mrb[0].mxu0
    %1435 = vmatprep.mubr.f32.mxu0 0.0
    %1436 = vmatmul.mubr.f32.gmra.mrb[0].mxu0 %v1120
    %v1437 = vpop.f32.mrb[0].mxu0
    %v1438 = vadd.f32 %v1293, %v1437
    %v1439 = vpop.f32.mrb[0].mxu0
    %1440 = vmatprep.mubr.f32.mxu0 0.0
    %1441 = vmatmul.mubr.f32.gmra.mrb[0].mxu0 %v1121
    %v1442 = vpop.f32.mrb[0].mxu0
    %v1443 = vadd.f32 %v1298, %v1442
    %v1444 = vpop.f32.mrb[0].mxu0
    %1445 = vmatprep.mubr.f32.mxu0 0.0
    %1446 = vmatmul.mubr.f32.gmra.mrb[0].mxu0 %v1122
    %v1447 = vpop.f32.mrb[0].mxu0
    %v1448 = vadd.f32 %v1303, %v1447
    %v1449 = vpop.f32.mrb[0].mxu0
    %1450 = vmatprep.mubr.f32.mxu0 0.0
    %1451 = vmatmul.mubr.f32.gmra.mrb[0].mxu0 %v1123
    %v1452 = vpop.f32.mrb[0].mxu0
    %v1453 = vadd.f32 %v1308, %v1452
    %v1454 = vpop.f32.mrb[0].mxu0
    %1455 = vmatprep.mubr.f32.mxu0 0.0
    %1456 = vmatmul.mubr.f32.gmra.mrb[0].mxu0 %v1124
    %v1457 = vpop.f32.mrb[0].mxu0
    %v1458 = vadd.f32 %v1313, %v1457
    %v1459 = vpop.f32.mrb[0].mxu0
    %1460 = vmatprep.mubr.f32.mxu0 0.0
    %1461 = vmatmul.mubr.f32.gmra.mrb[0].mxu0 %v1125
    %v1462 = vpop.f32.mrb[0].mxu0
    %v1463 = vadd.f32 %v1318, %v1462
    %v1464 = vpop.f32.mrb[0].mxu0
    %1465 = vmatprep.mubr.f32.mxu0 0.0
    %1466 = vmatmul.mubr.f32.gmra.mrb[0].mxu0 %v1126
    %v1467 = vpop.f32.mrb[0].mxu0
    %v1468 = vadd.f32 %v1323, %v1467
    %v1469 = vpop.f32.mrb[0].mxu0
    %1470 = vmatprep.mubr.f32.mxu0 0.0
    %1471 = vmatmul.mubr.f32.gmra.mrb[0].mxu0 %v1127
    %v1472 = vpop.f32.mrb[0].mxu0
    %v1473 = vadd.f32 %v1328, %v1472
    %v1474 = vpop.f32.mrb[0].mxu0
    %1475 = vmatprep.mubr.f32.mxu0 0.0
    %1476 = vmatmul.mubr.f32.gmra.mrb[0].mxu0 %v1128
    %v1477 = vpop.f32.mrb[0].mxu0
    %v1478 = vadd.f32 %v1333, %v1477
    %v1479 = vpop.f32.mrb[0].mxu0
    %1480 = vmatprep.mubr.f32.mxu0 0.0
    %1481 = vmatmul.mubr.f32.gmra.mrb[0].mxu0 %v1129
    %v1482 = vpop.f32.mrb[0].mxu0
    %v1483 = vadd.f32 %v1338, %v1482
    %v1484 = vpop.f32.mrb[0].mxu0
    %1485 = vmatprep.mubr.f32.mxu0 0.0
    %1486 = vmatmul.mubr.f32.gmra.mrb[0].mxu0 %v1130
    %v1487 = vpop.f32.mrb[0].mxu0
    %v1488 = vadd.f32 %v1343, %v1487
    %v1489 = vpop.f32.mrb[0].mxu0
    %1490 = vmatprep.mubr.f32.mxu0 0.0
    %1491 = vmatmul.mubr.f32.gmra.mrb[0].mxu0 %v1131
    %v1492 = vpop.f32.mrb[0].mxu0
    %v1493 = vadd.f32 %v1348, %v1492
    %v1494 = vpop.f32.mrb[0].mxu0
    %1495 = vmatprep.mubr.f32.mxu0 0.0
    %1496 = vmatmul.mubr.f32.gmra.mrb[0].mxu0 %v1132
    %v1497 = vpop.f32.mrb[0].mxu0
    %v1498 = vadd.f32 %v1353, %v1497
    %v1499 = vpop.f32.mrb[0].mxu0
    %1500 = vmatprep.mubr.f32.mxu0 0.0
    %1501 = vmatmul.mubr.f32.gmra.mrb[0].mxu0 %v1133
    %v1502 = vpop.f32.mrb[0].mxu0
    %v1503 = vadd.f32 %v1358, %v1502
    %v1504 = vpop.f32.mrb[0].mxu0
    %1505 = vdwg.mxu0
    %s1506 = scalar_lea.vmem [#allocation7], 640
    %v1507 = vld [vmem:[%s1506] sm:$0xff]
    %v1508 = vld [vmem:[%s1506 + $0x8] sm:$0xff]
    %v1509 = vld [vmem:[%s1506 + $0x10] sm:$0xff]
    %v1510 = vld [vmem:[%s1506 + $0x18] sm:$0xff]
    %v1511 = vld [vmem:[%s1506 + $0x20] sm:$0xff]
    %v1512 = vld [vmem:[%s1506 + $0x28] sm:$0xff]
    %v1513 = vld [vmem:[%s1506 + $0x30] sm:$0xff]
    %v1514 = vld [vmem:[%s1506 + $0x38] sm:$0xff]
    %v1515 = vld [vmem:[%s1506 + $0x40] sm:$0xff]
    %v1516 = vld [vmem:[%s1506 + $0x48] sm:$0xff]
    %v1517 = vld [vmem:[%s1506 + $0x50] sm:$0xff]
    %v1518 = vld [vmem:[%s1506 + $0x58] sm:$0xff]
    %v1519 = vld [vmem:[%s1506 + $0x60] sm:$0xff]
    %v1520 = vld [vmem:[%s1506 + $0x68] sm:$0xff]
    %v1521 = vld [vmem:[%s1506 + $0x70] sm:$0xff]
    %v1522 = vld [vmem:[%s1506 + $0x78] sm:$0xff]
    %1523 = vmatprep.subr.mxu0 0.0
    %1524 = vmatpush1.msra.mxu0 %v1507
    %1525 = vmatprep.subr.mxu0 0.0
    %1526 = vmatpush1.msra.mxu0 %v1508
    %1527 = vmatprep.subr.mxu0 0.0
    %1528 = vmatpush1.msra.mxu0 %v1509
    %1529 = vmatprep.subr.mxu0 0.0
    %1530 = vmatpush1.msra.mxu0 %v1510
    %1531 = vmatprep.subr.mxu0 0.0
    %1532 = vmatpush1.msra.mxu0 %v1511
    %1533 = vmatprep.subr.mxu0 0.0
    %1534 = vmatpush1.msra.mxu0 %v1512
    %1535 = vmatprep.subr.mxu0 0.0
    %1536 = vmatpush1.msra.mxu0 %v1513
    %1537 = vmatprep.subr.mxu0 0.0
    %1538 = vmatpush1.msra.mxu0 %v1514
    %1539 = vmatprep.subr.mxu0 0.0
    %1540 = vmatpush1.msra.mxu0 %v1515
    %1541 = vmatprep.subr.mxu0 0.0
    %1542 = vmatpush1.msra.mxu0 %v1516
    %1543 = vmatprep.subr.mxu0 0.0
    %1544 = vmatpush1.msra.mxu0 %v1517
    %1545 = vmatprep.subr.mxu0 0.0
    %1546 = vmatpush1.msra.mxu0 %v1518
    %1547 = vmatprep.subr.mxu0 0.0
    %1548 = vmatpush1.msra.mxu0 %v1519
    %1549 = vmatprep.subr.mxu0 0.0
    %1550 = vmatpush1.msra.mxu0 %v1520
    %1551 = vmatprep.subr.mxu0 0.0
    %1552 = vmatpush1.msra.mxu0 %v1521
    %1553 = vmatprep.subr.mxu0 0.0
    %1554 = vmatpush1.msra.mxu0 %v1522
    %1555 = vmatprep.subr.mxu0 0.0
    %1556 = vmatpush1.msra.mxu0 0.0
    %1557 = vmatprep.subr.mxu0 0.0
    %1558 = vmatpush1.msra.mxu0 0.0
    %1559 = vmatprep.subr.mxu0 0.0
    %1560 = vmatpush1.msra.mxu0 0.0
    %1561 = vmatprep.subr.mxu0 0.0
    %1562 = vmatpush1.msra.mxu0 0.0
    %1563 = vmatprep.subr.mxu0 0.0
    %1564 = vmatpush1.msra.mxu0 0.0
    %1565 = vmatprep.subr.mxu0 0.0
    %1566 = vmatpush1.msra.mxu0 0.0
    %1567 = vmatprep.subr.mxu0 0.0
    %1568 = vmatpush1.msra.mxu0 0.0
    %1569 = vmatprep.subr.mxu0 0.0
    %1570 = vmatpush1.msra.mxu0 0.0
    %1571 = vmatprep.subr.mxu0 0.0
    %1572 = vmatpush1.msra.mxu0 0.0
    %1573 = vmatprep.subr.mxu0 0.0
    %1574 = vmatpush1.msra.mxu0 0.0
    %1575 = vmatprep.subr.mxu0 0.0
    %1576 = vmatpush1.msra.mxu0 0.0
    %1577 = vmatprep.subr.mxu0 0.0
    %1578 = vmatpush1.msra.mxu0 0.0
    %1579 = vmatprep.subr.mxu0 0.0
    %1580 = vmatpush1.msra.mxu0 0.0
    %1581 = vmatprep.subr.mxu0 0.0
    %1582 = vmatpush1.msra.mxu0 0.0
    %1583 = vmatprep.subr.mxu0 0.0
    %1584 = vmatpush1.msra.mxu0 0.0
    %1585 = vmatprep.subr.mxu0 0.0
    %1586 = vmatpush1.msra.mxu0 0.0
    %1587 = vmatprep.mubr.f32.mxu0 0.0
    %1588 = vmatmul.mubr.f32.gmra.mrb[0].mxu0 %v1166
    %v1589 = vpop.f32.mrb[0].mxu0
    %v1590 = vadd.f32 0.0, %v1589
    %v1591 = vpop.f32.mrb[0].mxu0
    %1592 = vmatprep.mubr.f32.mxu0 0.0
    %1593 = vmatmul.mubr.f32.gmra.mrb[0].mxu0 %v1167
    %v1594 = vpop.f32.mrb[0].mxu0
    %v1595 = vadd.f32 0.0, %v1594
    %v1596 = vpop.f32.mrb[0].mxu0
    %1597 = vmatprep.mubr.f32.mxu0 0.0
    %1598 = vmatmul.mubr.f32.gmra.mrb[0].mxu0 %v1168
    %v1599 = vpop.f32.mrb[0].mxu0
    %v1600 = vadd.f32 0.0, %v1599
    %v1601 = vpop.f32.mrb[0].mxu0
    %1602 = vmatprep.mubr.f32.mxu0 0.0
    %1603 = vmatmul.mubr.f32.gmra.mrb[0].mxu0 %v1169
    %v1604 = vpop.f32.mrb[0].mxu0
    %v1605 = vadd.f32 0.0, %v1604
    %v1606 = vpop.f32.mrb[0].mxu0
    %1607 = vmatprep.mubr.f32.mxu0 0.0
    %1608 = vmatmul.mubr.f32.gmra.mrb[0].mxu0 %v1170
    %v1609 = vpop.f32.mrb[0].mxu0
    %v1610 = vadd.f32 0.0, %v1609
    %v1611 = vpop.f32.mrb[0].mxu0
    %1612 = vmatprep.mubr.f32.mxu0 0.0
    %1613 = vmatmul.mubr.f32.gmra.mrb[0].mxu0 %v1171
    %v1614 = vpop.f32.mrb[0].mxu0
    %v1615 = vadd.f32 0.0, %v1614
    %v1616 = vpop.f32.mrb[0].mxu0
    %1617 = vmatprep.mubr.f32.mxu0 0.0
    %1618 = vmatmul.mubr.f32.gmra.mrb[0].mxu0 %v1172
    %v1619 = vpop.f32.mrb[0].mxu0
    %v1620 = vadd.f32 0.0, %v1619
    %v1621 = vpop.f32.mrb[0].mxu0
    %1622 = vmatprep.mubr.f32.mxu0 0.0
    %1623 = vmatmul.mubr.f32.gmra.mrb[0].mxu0 %v1173
    %v1624 = vpop.f32.mrb[0].mxu0
    %v1625 = vadd.f32 0.0, %v1624
    %v1626 = vpop.f32.mrb[0].mxu0
    %1627 = vmatprep.mubr.f32.mxu0 0.0
    %1628 = vmatmul.mubr.f32.gmra.mrb[0].mxu0 %v1174
    %v1629 = vpop.f32.mrb[0].mxu0
    %v1630 = vadd.f32 0.0, %v1629
    %v1631 = vpop.f32.mrb[0].mxu0
    %1632 = vmatprep.mubr.f32.mxu0 0.0
    %1633 = vmatmul.mubr.f32.gmra.mrb[0].mxu0 %v1175
    %v1634 = vpop.f32.mrb[0].mxu0
    %v1635 = vadd.f32 0.0, %v1634
    %v1636 = vpop.f32.mrb[0].mxu0
    %1637 = vmatprep.mubr.f32.mxu0 0.0
    %1638 = vmatmul.mubr.f32.gmra.mrb[0].mxu0 %v1176
    %v1639 = vpop.f32.mrb[0].mxu0
    %v1640 = vadd.f32 0.0, %v1639
    %v1641 = vpop.f32.mrb[0].mxu0
    %1642 = vmatprep.mubr.f32.mxu0 0.0
    %1643 = vmatmul.mubr.f32.gmra.mrb[0].mxu0 %v1177
    %v1644 = vpop.f32.mrb[0].mxu0
    %v1645 = vadd.f32 0.0, %v1644
    %v1646 = vpop.f32.mrb[0].mxu0
    %1647 = vmatprep.mubr.f32.mxu0 0.0
    %1648 = vmatmul.mubr.f32.gmra.mrb[0].mxu0 %v1178
    %v1649 = vpop.f32.mrb[0].mxu0
    %v1650 = vadd.f32 0.0, %v1649
    %v1651 = vpop.f32.mrb[0].mxu0
    %1652 = vmatprep.mubr.f32.mxu0 0.0
    %1653 = vmatmul.mubr.f32.gmra.mrb[0].mxu0 %v1179
    %v1654 = vpop.f32.mrb[0].mxu0
    %v1655 = vadd.f32 0.0, %v1654
    %v1656 = vpop.f32.mrb[0].mxu0
    %1657 = vmatprep.mubr.f32.mxu0 0.0
    %1658 = vmatmul.mubr.f32.gmra.mrb[0].mxu0 %v1180
    %v1659 = vpop.f32.mrb[0].mxu0
    %v1660 = vadd.f32 0.0, %v1659
    %v1661 = vpop.f32.mrb[0].mxu0
    %1662 = vmatprep.mubr.f32.mxu0 0.0
    %1663 = vmatmul.mubr.f32.gmra.mrb[0].mxu0 %v1181
    %v1664 = vpop.f32.mrb[0].mxu0
    %v1665 = vadd.f32 0.0, %v1664
    %v1666 = vpop.f32.mrb[0].mxu0
    %1667 = vdwg.mxu0
    %v1668 = vadd.f32 %v1428, %v1590
    %v1669 = vadd.f32 %v1433, %v1595
    %v1670 = vadd.f32 %v1438, %v1600
    %v1671 = vadd.f32 %v1443, %v1605
    %v1672 = vadd.f32 %v1448, %v1610
    %v1673 = vadd.f32 %v1453, %v1615
    %v1674 = vadd.f32 %v1458, %v1620
    %v1675 = vadd.f32 %v1463, %v1625
    %v1676 = vadd.f32 %v1468, %v1630
    %v1677 = vadd.f32 %v1473, %v1635
    %v1678 = vadd.f32 %v1478, %v1640
    %v1679 = vadd.f32 %v1483, %v1645
    %v1680 = vadd.f32 %v1488, %v1650
    %v1681 = vadd.f32 %v1493, %v1655
    %v1682 = vadd.f32 %v1498, %v1660
    %v1683 = vadd.f32 %v1503, %v1665
    %s1684 = scalar_lea.vmem %s3, 1
    %v1685 = vld [vmem:[%s1684] sm:$0x1]
    %v1687 = vlaneseq
    %v1688 = vshrl.u32 %v1687, 7
    %v1689 = vsub.s32 0, %v1688
    %v1690 = vrot.slane %v1685, %v1689
    %v1692 = vadd.f32 %v1668, %v1690
    %v1693 = vadd.f32 %v1669, %v1690
    %v1694 = vadd.f32 %v1670, %v1690
    %v1695 = vadd.f32 %v1671, %v1690
    %v1696 = vadd.f32 %v1672, %v1690
    %v1697 = vadd.f32 %v1673, %v1690
    %v1698 = vadd.f32 %v1674, %v1690
    %v1699 = vadd.f32 %v1675, %v1690
    %v1700 = vadd.f32 %v1676, %v1690
    %v1701 = vadd.f32 %v1677, %v1690
    %v1702 = vadd.f32 %v1678, %v1690
    %v1703 = vadd.f32 %v1679, %v1690
    %v1704 = vadd.f32 %v1680, %v1690
    %v1705 = vadd.f32 %v1681, %v1690
    %v1706 = vadd.f32 %v1682, %v1690
    %v1707 = vadd.f32 %v1683, %v1690
    %v1708 = vadd.f32 %v1692, %v352
    %v1709 = vadd.f32 %v1693, %v353
    %v1710 = vadd.f32 %v1694, %v354
    %v1711 = vadd.f32 %v1695, %v355
    %v1712 = vadd.f32 %v1696, %v356
    %v1713 = vadd.f32 %v1697, %v357
    %v1714 = vadd.f32 %v1698, %v358
    %v1715 = vadd.f32 %v1699, %v359
    %v1716 = vadd.f32 %v1700, %v360
    %v1717 = vadd.f32 %v1701, %v361
    %v1718 = vadd.f32 %v1702, %v362
    %v1719 = vadd.f32 %v1703, %v363
    %v1720 = vadd.f32 %v1704, %v364
    %v1721 = vadd.f32 %v1705, %v365
    %v1722 = vadd.f32 %v1706, %v366
    %v1723 = vadd.f32 %v1707, %v367
    %v1724 = vadd.f32 %v336, %v1708
    %v1725 = vadd.f32 %v337, %v1709
    %v1726 = vadd.f32 %v338, %v1710
    %v1727 = vadd.f32 %v339, %v1711
    %v1728 = vadd.f32 %v340, %v1712
    %v1729 = vadd.f32 %v341, %v1713
    %v1730 = vadd.f32 %v342, %v1714
    %v1731 = vadd.f32 %v343, %v1715
    %v1732 = vadd.f32 %v344, %v1716
    %v1733 = vadd.f32 %v345, %v1717
    %v1734 = vadd.f32 %v346, %v1718
    %v1735 = vadd.f32 %v347, %v1719
    %v1736 = vadd.f32 %v348, %v1720
    %v1737 = vadd.f32 %v349, %v1721
    %v1738 = vadd.f32 %v350, %v1722
    %v1739 = vadd.f32 %v351, %v1723
    %v1740 = vmax.f32 %v1724, 0.0
    %v1741 = vmax.f32 %v1725, 0.0
    %v1742 = vmax.f32 %v1726, 0.0
    %v1743 = vmax.f32 %v1727, 0.0
    %v1744 = vmax.f32 %v1728, 0.0
    %v1745 = vmax.f32 %v1729, 0.0
    %v1746 = vmax.f32 %v1730, 0.0
    %v1747 = vmax.f32 %v1731, 0.0
    %v1748 = vmax.f32 %v1732, 0.0
    %v1749 = vmax.f32 %v1733, 0.0
    %v1750 = vmax.f32 %v1734, 0.0
    %v1751 = vmax.f32 %v1735, 0.0
    %v1752 = vmax.f32 %v1736, 0.0
    %v1753 = vmax.f32 %v1737, 0.0
    %v1754 = vmax.f32 %v1738, 0.0
    %v1755 = vmax.f32 %v1739, 0.0
    %v1756 = vrot.slane %v1740, 7
    %v1757 = vrot.slane %v1741, 7
    %v1758 = vrot.slane %v1742, 7
    %v1759 = vrot.slane %v1743, 7
    %v1760 = vrot.slane %v1744, 7
    %v1761 = vrot.slane %v1745, 7
    %v1762 = vrot.slane %v1746, 7
    %v1763 = vrot.slane %v1747, 7
    %v1764 = vrot.slane %v1748, 7
    %v1765 = vrot.slane %v1749, 7
    %v1766 = vrot.slane %v1750, 7
    %v1767 = vrot.slane %v1751, 7
    %v1768 = vrot.slane %v1752, 7
    %v1769 = vrot.slane %v1753, 7
    %v1770 = vrot.slane %v1754, 7
    %v1771 = vrot.slane %v1755, 7
    %v1772 = vsel %vm400, %v1770, %v1771
    %v1773 = vsel %vm400, %v1769, %v1770
    %v1774 = vsel %vm400, %v1768, %v1769
    %v1775 = vsel %vm400, %v1767, %v1768
    %v1776 = vsel %vm400, %v1766, %v1767
    %v1777 = vsel %vm400, %v1765, %v1766
    %v1778 = vsel %vm400, %v1764, %v1765
    %v1779 = vsel %vm400, %v1763, %v1764
    %v1780 = vsel %vm400, %v1762, %v1763
    %v1781 = vsel %vm400, %v1761, %v1762
    %v1782 = vsel %vm400, %v1760, %v1761
    %v1783 = vsel %vm400, %v1759, %v1760
    %v1784 = vsel %vm400, %v1758, %v1759
    %v1785 = vsel %vm400, %v1757, %v1758
    %v1786 = vsel %vm400, %v1756, %v1757
    %v1787 = vsel %vm400, %v1771, %v1756
    %v1788 = vsel %vm433, %v1787, 0.0
    %v1789 = vsel %vm434, %v1786, 0.0
    %v1790 = vsel %vm435, %v1785, 0.0
    %v1791 = vsel %vm436, %v1784, 0.0
    %v1792 = vsel %vm437, %v1783, 0.0
    %v1793 = vsel %vm438, %v1782, 0.0
    %v1794 = vsel %vm439, %v1781, 0.0
    %v1795 = vsel %vm440, %v1780, 0.0
    %v1796 = vsel %vm441, %v1779, 0.0
    %v1797 = vsel %vm442, %v1778, 0.0
    %v1798 = vsel %vm443, %v1777, 0.0
    %v1799 = vsel %vm444, %v1776, 0.0
    %v1800 = vsel %vm445, %v1775, 0.0
    %v1801 = vsel %vm446, %v1774, 0.0
    %v1802 = vsel %vm447, %v1773, 0.0
    %v1803 = vsel %vm448, %v1772, 0.0
    %v1804 = vrot.slane %v1740, 1
    %v1805 = vrot.slane %v1741, 1
    %v1806 = vrot.slane %v1742, 1
    %v1807 = vrot.slane %v1743, 1
    %v1808 = vrot.slane %v1744, 1
    %v1809 = vrot.slane %v1745, 1
    %v1810 = vrot.slane %v1746, 1
    %v1811 = vrot.slane %v1747, 1
    %v1812 = vrot.slane %v1748, 1
    %v1813 = vrot.slane %v1749, 1
    %v1814 = vrot.slane %v1750, 1
    %v1815 = vrot.slane %v1751, 1
    %v1816 = vrot.slane %v1752, 1
    %v1817 = vrot.slane %v1753, 1
    %v1818 = vrot.slane %v1754, 1
    %v1819 = vrot.slane %v1755, 1
    %v1820 = vsel %vm481, %v1818, %v1819
    %v1821 = vsel %vm481, %v1817, %v1818
    %v1822 = vsel %vm481, %v1816, %v1817
    %v1823 = vsel %vm481, %v1815, %v1816
    %v1824 = vsel %vm481, %v1814, %v1815
    %v1825 = vsel %vm481, %v1813, %v1814
    %v1826 = vsel %vm481, %v1812, %v1813
    %v1827 = vsel %vm481, %v1811, %v1812
    %v1828 = vsel %vm481, %v1810, %v1811
    %v1829 = vsel %vm481, %v1809, %v1810
    %v1830 = vsel %vm481, %v1808, %v1809
    %v1831 = vsel %vm481, %v1807, %v1808
    %v1832 = vsel %vm481, %v1806, %v1807
    %v1833 = vsel %vm481, %v1805, %v1806
    %v1834 = vsel %vm481, %v1804, %v1805
    %v1835 = vsel %vm481, %v1819, %v1804
    %v1836 = vsel %vm514, %v1834, 0.0
    %v1837 = vsel %vm515, %v1833, 0.0
    %v1838 = vsel %vm516, %v1832, 0.0
    %v1839 = vsel %vm517, %v1831, 0.0
    %v1840 = vsel %vm518, %v1830, 0.0
    %v1841 = vsel %vm519, %v1829, 0.0
    %v1842 = vsel %vm520, %v1828, 0.0
    %v1843 = vsel %vm521, %v1827, 0.0
    %v1844 = vsel %vm522, %v1826, 0.0
    %v1845 = vsel %vm523, %v1825, 0.0
    %v1846 = vsel %vm524, %v1824, 0.0
    %v1847 = vsel %vm525, %v1823, 0.0
    %v1848 = vsel %vm526, %v1822, 0.0
    %v1849 = vsel %vm527, %v1821, 0.0
    %v1850 = vsel %vm528, %v1820, 0.0
    %v1851 = vsel %vm529, %v1835, 0.0
    %s1852 = scalar_lea.vmem [#allocation7], 768
    %v1853 = vld [vmem:[%s1852] sm:$0xff]
    %v1854 = vld [vmem:[%s1852 + $0x8] sm:$0xff]
    %v1855 = vld [vmem:[%s1852 + $0x10] sm:$0xff]
    %v1856 = vld [vmem:[%s1852 + $0x18] sm:$0xff]
    %v1857 = vld [vmem:[%s1852 + $0x20] sm:$0xff]
    %v1858 = vld [vmem:[%s1852 + $0x28] sm:$0xff]
    %v1859 = vld [vmem:[%s1852 + $0x30] sm:$0xff]
    %v1860 = vld [vmem:[%s1852 + $0x38] sm:$0xff]
    %v1861 = vld [vmem:[%s1852 + $0x40] sm:$0xff]
    %v1862 = vld [vmem:[%s1852 + $0x48] sm:$0xff]
    %v1863 = vld [vmem:[%s1852 + $0x50] sm:$0xff]
    %v1864 = vld [vmem:[%s1852 + $0x58] sm:$0xff]
    %v1865 = vld [vmem:[%s1852 + $0x60] sm:$0xff]
    %v1866 = vld [vmem:[%s1852 + $0x68] sm:$0xff]
    %v1867 = vld [vmem:[%s1852 + $0x70] sm:$0xff]
    %v1868 = vld [vmem:[%s1852 + $0x78] sm:$0xff]
    %s1869 = scalar_lea.vmem [#allocation7], 896
    %v1870 = vld [vmem:[%s1869] sm:$0xff]
    %v1871 = vld [vmem:[%s1869 + $0x8] sm:$0xff]
    %v1872 = vld [vmem:[%s1869 + $0x10] sm:$0xff]
    %v1873 = vld [vmem:[%s1869 + $0x18] sm:$0xff]
    %v1874 = vld [vmem:[%s1869 + $0x20] sm:$0xff]
    %v1875 = vld [vmem:[%s1869 + $0x28] sm:$0xff]
    %v1876 = vld [vmem:[%s1869 + $0x30] sm:$0xff]
    %v1877 = vld [vmem:[%s1869 + $0x38] sm:$0xff]
    %v1878 = vld [vmem:[%s1869 + $0x40] sm:$0xff]
    %v1879 = vld [vmem:[%s1869 + $0x48] sm:$0xff]
    %v1880 = vld [vmem:[%s1869 + $0x50] sm:$0xff]
    %v1881 = vld [vmem:[%s1869 + $0x58] sm:$0xff]
    %v1882 = vld [vmem:[%s1869 + $0x60] sm:$0xff]
    %v1883 = vld [vmem:[%s1869 + $0x68] sm:$0xff]
    %v1884 = vld [vmem:[%s1869 + $0x70] sm:$0xff]
    %v1885 = vld [vmem:[%s1869 + $0x78] sm:$0xff]
    %1886 = vmatprep.subr.mxu0 0.0
    %1887 = vmatpush1.msra.mxu0 %v1870
    %1888 = vmatprep.subr.mxu0 0.0
    %1889 = vmatpush1.msra.mxu0 %v1871
    %1890 = vmatprep.subr.mxu0 0.0
    %1891 = vmatpush1.msra.mxu0 %v1872
    %1892 = vmatprep.subr.mxu0 0.0
    %1893 = vmatpush1.msra.mxu0 %v1873
    %1894 = vmatprep.subr.mxu0 0.0
    %1895 = vmatpush1.msra.mxu0 %v1874
    %1896 = vmatprep.subr.mxu0 0.0
    %1897 = vmatpush1.msra.mxu0 %v1875
    %1898 = vmatprep.subr.mxu0 0.0
    %1899 = vmatpush1.msra.mxu0 %v1876
    %1900 = vmatprep.subr.mxu0 0.0
    %1901 = vmatpush1.msra.mxu0 %v1877
    %1902 = vmatprep.subr.mxu0 0.0
    %1903 = vmatpush1.msra.mxu0 %v1878
    %1904 = vmatprep.subr.mxu0 0.0
    %1905 = vmatpush1.msra.mxu0 %v1879
    %1906 = vmatprep.subr.mxu0 0.0
    %1907 = vmatpush1.msra.mxu0 %v1880
    %1908 = vmatprep.subr.mxu0 0.0
    %1909 = vmatpush1.msra.mxu0 %v1881
    %1910 = vmatprep.subr.mxu0 0.0
    %1911 = vmatpush1.msra.mxu0 %v1882
    %1912 = vmatprep.subr.mxu0 0.0
    %1913 = vmatpush1.msra.mxu0 %v1883
    %1914 = vmatprep.subr.mxu0 0.0
    %1915 = vmatpush1.msra.mxu0 %v1884
    %1916 = vmatprep.subr.mxu0 0.0
    %1917 = vmatpush1.msra.mxu0 %v1885
    %1918 = vmatprep.subr.mxu0 0.0
    %1919 = vmatpush1.msra.mxu0 0.0
    %1920 = vmatprep.subr.mxu0 0.0
    %1921 = vmatpush1.msra.mxu0 0.0
    %1922 = vmatprep.subr.mxu0 0.0
    %1923 = vmatpush1.msra.mxu0 0.0
    %1924 = vmatprep.subr.mxu0 0.0
    %1925 = vmatpush1.msra.mxu0 0.0
    %1926 = vmatprep.subr.mxu0 0.0
    %1927 = vmatpush1.msra.mxu0 0.0
    %1928 = vmatprep.subr.mxu0 0.0
    %1929 = vmatpush1.msra.mxu0 0.0
    %1930 = vmatprep.subr.mxu0 0.0
    %1931 = vmatpush1.msra.mxu0 0.0
    %1932 = vmatprep.subr.mxu0 0.0
    %1933 = vmatpush1.msra.mxu0 0.0
    %1934 = vmatprep.subr.mxu0 0.0
    %1935 = vmatpush1.msra.mxu0 0.0
    %1936 = vmatprep.subr.mxu0 0.0
    %1937 = vmatpush1.msra.mxu0 0.0
    %1938 = vmatprep.subr.mxu0 0.0
    %1939 = vmatpush1.msra.mxu0 0.0
    %1940 = vmatprep.subr.mxu0 0.0
    %1941 = vmatpush1.msra.mxu0 0.0
    %1942 = vmatprep.subr.mxu0 0.0
    %1943 = vmatpush1.msra.mxu0 0.0
    %1944 = vmatprep.subr.mxu0 0.0
    %1945 = vmatpush1.msra.mxu0 0.0
    %1946 = vmatprep.subr.mxu0 0.0
    %1947 = vmatpush1.msra.mxu0 0.0
    %1948 = vmatprep.subr.mxu0 0.0
    %1949 = vmatpush1.msra.mxu0 0.0
    %1950 = vmatprep.mubr.f32.mxu0 0.0
    %1951 = vmatmul.mubr.f32.gmra.mrb[0].mxu0 %v1740
    %v1952 = vpop.f32.mrb[0].mxu0
    %v1953 = vadd.f32 0.0, %v1952
    %v1954 = vpop.f32.mrb[0].mxu0
    %1955 = vmatprep.mubr.f32.mxu0 0.0
    %1956 = vmatmul.mubr.f32.gmra.mrb[0].mxu0 %v1741
    %v1957 = vpop.f32.mrb[0].mxu0
    %v1958 = vadd.f32 0.0, %v1957
    %v1959 = vpop.f32.mrb[0].mxu0
    %1960 = vmatprep.mubr.f32.mxu0 0.0
    %1961 = vmatmul.mubr.f32.gmra.mrb[0].mxu0 %v1742
    %v1962 = vpop.f32.mrb[0].mxu0
    %v1963 = vadd.f32 0.0, %v1962
    %v1964 = vpop.f32.mrb[0].mxu0
    %1965 = vmatprep.mubr.f32.mxu0 0.0
    %1966 = vmatmul.mubr.f32.gmra.mrb[0].mxu0 %v1743
    %v1967 = vpop.f32.mrb[0].mxu0
    %v1968 = vadd.f32 0.0, %v1967
    %v1969 = vpop.f32.mrb[0].mxu0
    %1970 = vmatprep.mubr.f32.mxu0 0.0
    %1971 = vmatmul.mubr.f32.gmra.mrb[0].mxu0 %v1744
    %v1972 = vpop.f32.mrb[0].mxu0
    %v1973 = vadd.f32 0.0, %v1972
    %v1974 = vpop.f32.mrb[0].mxu0
    %1975 = vmatprep.mubr.f32.mxu0 0.0
    %1976 = vmatmul.mubr.f32.gmra.mrb[0].mxu0 %v1745
    %v1977 = vpop.f32.mrb[0].mxu0
    %v1978 = vadd.f32 0.0, %v1977
    %v1979 = vpop.f32.mrb[0].mxu0
    %1980 = vmatprep.mubr.f32.mxu0 0.0
    %1981 = vmatmul.mubr.f32.gmra.mrb[0].mxu0 %v1746
    %v1982 = vpop.f32.mrb[0].mxu0
    %v1983 = vadd.f32 0.0, %v1982
    %v1984 = vpop.f32.mrb[0].mxu0
    %1985 = vmatprep.mubr.f32.mxu0 0.0
    %1986 = vmatmul.mubr.f32.gmra.mrb[0].mxu0 %v1747
    %v1987 = vpop.f32.mrb[0].mxu0
    %v1988 = vadd.f32 0.0, %v1987
    %v1989 = vpop.f32.mrb[0].mxu0
    %1990 = vmatprep.mubr.f32.mxu0 0.0
    %1991 = vmatmul.mubr.f32.gmra.mrb[0].mxu0 %v1748
    %v1992 = vpop.f32.mrb[0].mxu0
    %v1993 = vadd.f32 0.0, %v1992
    %v1994 = vpop.f32.mrb[0].mxu0
    %1995 = vmatprep.mubr.f32.mxu0 0.0
    %1996 = vmatmul.mubr.f32.gmra.mrb[0].mxu0 %v1749
    %v1997 = vpop.f32.mrb[0].mxu0
    %v1998 = vadd.f32 0.0, %v1997
    %v1999 = vpop.f32.mrb[0].mxu0
    %2000 = vmatprep.mubr.f32.mxu0 0.0
    %2001 = vmatmul.mubr.f32.gmra.mrb[0].mxu0 %v1750
    %v2002 = vpop.f32.mrb[0].mxu0
    %v2003 = vadd.f32 0.0, %v2002
    %v2004 = vpop.f32.mrb[0].mxu0
    %2005 = vmatprep.mubr.f32.mxu0 0.0
    %2006 = vmatmul.mubr.f32.gmra.mrb[0].mxu0 %v1751
    %v2007 = vpop.f32.mrb[0].mxu0
    %v2008 = vadd.f32 0.0, %v2007
    %v2009 = vpop.f32.mrb[0].mxu0
    %2010 = vmatprep.mubr.f32.mxu0 0.0
    %2011 = vmatmul.mubr.f32.gmra.mrb[0].mxu0 %v1752
    %v2012 = vpop.f32.mrb[0].mxu0
    %v2013 = vadd.f32 0.0, %v2012
    %v2014 = vpop.f32.mrb[0].mxu0
    %2015 = vmatprep.mubr.f32.mxu0 0.0
    %2016 = vmatmul.mubr.f32.gmra.mrb[0].mxu0 %v1753
    %v2017 = vpop.f32.mrb[0].mxu0
    %v2018 = vadd.f32 0.0, %v2017
    %v2019 = vpop.f32.mrb[0].mxu0
    %2020 = vmatprep.mubr.f32.mxu0 0.0
    %2021 = vmatmul.mubr.f32.gmra.mrb[0].mxu0 %v1754
    %v2022 = vpop.f32.mrb[0].mxu0
    %v2023 = vadd.f32 0.0, %v2022
    %v2024 = vpop.f32.mrb[0].mxu0
    %2025 = vmatprep.mubr.f32.mxu0 0.0
    %2026 = vmatmul.mubr.f32.gmra.mrb[0].mxu0 %v1755
    %v2027 = vpop.f32.mrb[0].mxu0
    %v2028 = vadd.f32 0.0, %v2027
    %v2029 = vpop.f32.mrb[0].mxu0
    %2030 = vdwg.mxu0
    %2031 = vmatprep.subr.mxu0 0.0
    %2032 = vmatpush1.msra.mxu0 %v1853
    %2033 = vmatprep.subr.mxu0 0.0
    %2034 = vmatpush1.msra.mxu0 %v1854
    %2035 = vmatprep.subr.mxu0 0.0
    %2036 = vmatpush1.msra.mxu0 %v1855
    %2037 = vmatprep.subr.mxu0 0.0
    %2038 = vmatpush1.msra.mxu0 %v1856
    %2039 = vmatprep.subr.mxu0 0.0
    %2040 = vmatpush1.msra.mxu0 %v1857
    %2041 = vmatprep.subr.mxu0 0.0
    %2042 = vmatpush1.msra.mxu0 %v1858
    %2043 = vmatprep.subr.mxu0 0.0
    %2044 = vmatpush1.msra.mxu0 %v1859
    %2045 = vmatprep.subr.mxu0 0.0
    %2046 = vmatpush1.msra.mxu0 %v1860
    %2047 = vmatprep.subr.mxu0 0.0
    %2048 = vmatpush1.msra.mxu0 %v1861
    %2049 = vmatprep.subr.mxu0 0.0
    %2050 = vmatpush1.msra.mxu0 %v1862
    %2051 = vmatprep.subr.mxu0 0.0
    %2052 = vmatpush1.msra.mxu0 %v1863
    %2053 = vmatprep.subr.mxu0 0.0
    %2054 = vmatpush1.msra.mxu0 %v1864
    %2055 = vmatprep.subr.mxu0 0.0
    %2056 = vmatpush1.msra.mxu0 %v1865
    %2057 = vmatprep.subr.mxu0 0.0
    %2058 = vmatpush1.msra.mxu0 %v1866
    %2059 = vmatprep.subr.mxu0 0.0
    %2060 = vmatpush1.msra.mxu0 %v1867
    %2061 = vmatprep.subr.mxu0 0.0
    %2062 = vmatpush1.msra.mxu0 %v1868
    %2063 = vmatprep.subr.mxu0 0.0
    %2064 = vmatpush1.msra.mxu0 0.0
    %2065 = vmatprep.subr.mxu0 0.0
    %2066 = vmatpush1.msra.mxu0 0.0
    %2067 = vmatprep.subr.mxu0 0.0
    %2068 = vmatpush1.msra.mxu0 0.0
    %2069 = vmatprep.subr.mxu0 0.0
    %2070 = vmatpush1.msra.mxu0 0.0
    %2071 = vmatprep.subr.mxu0 0.0
    %2072 = vmatpush1.msra.mxu0 0.0
    %2073 = vmatprep.subr.mxu0 0.0
    %2074 = vmatpush1.msra.mxu0 0.0
    %2075 = vmatprep.subr.mxu0 0.0
    %2076 = vmatpush1.msra.mxu0 0.0
    %2077 = vmatprep.subr.mxu0 0.0
    %2078 = vmatpush1.msra.mxu0 0.0
    %2079 = vmatprep.subr.mxu0 0.0
    %2080 = vmatpush1.msra.mxu0 0.0
    %2081 = vmatprep.subr.mxu0 0.0
    %2082 = vmatpush1.msra.mxu0 0.0
    %2083 = vmatprep.subr.mxu0 0.0
    %2084 = vmatpush1.msra.mxu0 0.0
    %2085 = vmatprep.subr.mxu0 0.0
    %2086 = vmatpush1.msra.mxu0 0.0
    %2087 = vmatprep.subr.mxu0 0.0
    %2088 = vmatpush1.msra.mxu0 0.0
    %2089 = vmatprep.subr.mxu0 0.0
    %2090 = vmatpush1.msra.mxu0 0.0
    %2091 = vmatprep.subr.mxu0 0.0
    %2092 = vmatpush1.msra.mxu0 0.0
    %2093 = vmatprep.subr.mxu0 0.0
    %2094 = vmatpush1.msra.mxu0 0.0
    %2095 = vmatprep.mubr.f32.mxu0 0.0
    %2096 = vmatmul.mubr.f32.gmra.mrb[0].mxu0 %v1788
    %v2097 = vpop.f32.mrb[0].mxu0
    %v2098 = vadd.f32 %v1953, %v2097
    %v2099 = vpop.f32.mrb[0].mxu0
    %2100 = vmatprep.mubr.f32.mxu0 0.0
    %2101 = vmatmul.mubr.f32.gmra.mrb[0].mxu0 %v1789
    %v2102 = vpop.f32.mrb[0].mxu0
    %v2103 = vadd.f32 %v1958, %v2102
    %v2104 = vpop.f32.mrb[0].mxu0
    %2105 = vmatprep.mubr.f32.mxu0 0.0
    %2106 = vmatmul.mubr.f32.gmra.mrb[0].mxu0 %v1790
    %v2107 = vpop.f32.mrb[0].mxu0
    %v2108 = vadd.f32 %v1963, %v2107
    %v2109 = vpop.f32.mrb[0].mxu0
    %2110 = vmatprep.mubr.f32.mxu0 0.0
    %2111 = vmatmul.mubr.f32.gmra.mrb[0].mxu0 %v1791
    %v2112 = vpop.f32.mrb[0].mxu0
    %v2113 = vadd.f32 %v1968, %v2112
    %v2114 = vpop.f32.mrb[0].mxu0
    %2115 = vmatprep.mubr.f32.mxu0 0.0
    %2116 = vmatmul.mubr.f32.gmra.mrb[0].mxu0 %v1792
    %v2117 = vpop.f32.mrb[0].mxu0
    %v2118 = vadd.f32 %v1973, %v2117
    %v2119 = vpop.f32.mrb[0].mxu0
    %2120 = vmatprep.mubr.f32.mxu0 0.0
    %2121 = vmatmul.mubr.f32.gmra.mrb[0].mxu0 %v1793
    %v2122 = vpop.f32.mrb[0].mxu0
    %v2123 = vadd.f32 %v1978, %v2122
    %v2124 = vpop.f32.mrb[0].mxu0
    %2125 = vmatprep.mubr.f32.mxu0 0.0
    %2126 = vmatmul.mubr.f32.gmra.mrb[0].mxu0 %v1794
    %v2127 = vpop.f32.mrb[0].mxu0
    %v2128 = vadd.f32 %v1983, %v2127
    %v2129 = vpop.f32.mrb[0].mxu0
    %2130 = vmatprep.mubr.f32.mxu0 0.0
    %2131 = vmatmul.mubr.f32.gmra.mrb[0].mxu0 %v1795
    %v2132 = vpop.f32.mrb[0].mxu0
    %v2133 = vadd.f32 %v1988, %v2132
    %v2134 = vpop.f32.mrb[0].mxu0
    %2135 = vmatprep.mubr.f32.mxu0 0.0
    %2136 = vmatmul.mubr.f32.gmra.mrb[0].mxu0 %v1796
    %v2137 = vpop.f32.mrb[0].mxu0
    %v2138 = vadd.f32 %v1993, %v2137
    %v2139 = vpop.f32.mrb[0].mxu0
    %2140 = vmatprep.mubr.f32.mxu0 0.0
    %2141 = vmatmul.mubr.f32.gmra.mrb[0].mxu0 %v1797
    %v2142 = vpop.f32.mrb[0].mxu0
    %v2143 = vadd.f32 %v1998, %v2142
    %v2144 = vpop.f32.mrb[0].mxu0
    %2145 = vmatprep.mubr.f32.mxu0 0.0
    %2146 = vmatmul.mubr.f32.gmra.mrb[0].mxu0 %v1798
    %v2147 = vpop.f32.mrb[0].mxu0
    %v2148 = vadd.f32 %v2003, %v2147
    %v2149 = vpop.f32.mrb[0].mxu0
    %2150 = vmatprep.mubr.f32.mxu0 0.0
    %2151 = vmatmul.mubr.f32.gmra.mrb[0].mxu0 %v1799
    %v2152 = vpop.f32.mrb[0].mxu0
    %v2153 = vadd.f32 %v2008, %v2152
    %v2154 = vpop.f32.mrb[0].mxu0
    %2155 = vmatprep.mubr.f32.mxu0 0.0
    %2156 = vmatmul.mubr.f32.gmra.mrb[0].mxu0 %v1800
    %v2157 = vpop.f32.mrb[0].mxu0
    %v2158 = vadd.f32 %v2013, %v2157
    %v2159 = vpop.f32.mrb[0].mxu0
    %2160 = vmatprep.mubr.f32.mxu0 0.0
    %2161 = vmatmul.mubr.f32.gmra.mrb[0].mxu0 %v1801
    %v2162 = vpop.f32.mrb[0].mxu0
    %v2163 = vadd.f32 %v2018, %v2162
    %v2164 = vpop.f32.mrb[0].mxu0
    %2165 = vmatprep.mubr.f32.mxu0 0.0
    %2166 = vmatmul.mubr.f32.gmra.mrb[0].mxu0 %v1802
    %v2167 = vpop.f32.mrb[0].mxu0
    %v2168 = vadd.f32 %v2023, %v2167
    %v2169 = vpop.f32.mrb[0].mxu0
    %2170 = vmatprep.mubr.f32.mxu0 0.0
    %2171 = vmatmul.mubr.f32.gmra.mrb[0].mxu0 %v1803
    %v2172 = vpop.f32.mrb[0].mxu0
    %v2173 = vadd.f32 %v2028, %v2172
    %v2174 = vpop.f32.mrb[0].mxu0
    %2175 = vdwg.mxu0
    %s2176 = scalar_lea.vmem [#allocation7], 1024
    %v2177 = vld [vmem:[%s2176] sm:$0xff]
    %v2178 = vld [vmem:[%s2176 + $0x8] sm:$0xff]
    %v2179 = vld [vmem:[%s2176 + $0x10] sm:$0xff]
    %v2180 = vld [vmem:[%s2176 + $0x18] sm:$0xff]
    %v2181 = vld [vmem:[%s2176 + $0x20] sm:$0xff]
    %v2182 = vld [vmem:[%s2176 + $0x28] sm:$0xff]
    %v2183 = vld [vmem:[%s2176 + $0x30] sm:$0xff]
    %v2184 = vld [vmem:[%s2176 + $0x38] sm:$0xff]
    %v2185 = vld [vmem:[%s2176 + $0x40] sm:$0xff]
    %v2186 = vld [vmem:[%s2176 + $0x48] sm:$0xff]
    %v2187 = vld [vmem:[%s2176 + $0x50] sm:$0xff]
    %v2188 = vld [vmem:[%s2176 + $0x58] sm:$0xff]
    %v2189 = vld [vmem:[%s2176 + $0x60] sm:$0xff]
    %v2190 = vld [vmem:[%s2176 + $0x68] sm:$0xff]
    %v2191 = vld [vmem:[%s2176 + $0x70] sm:$0xff]
    %v2192 = vld [vmem:[%s2176 + $0x78] sm:$0xff]
    %2193 = vmatprep.subr.mxu0 0.0
    %2194 = vmatpush1.msra.mxu0 %v2177
    %2195 = vmatprep.subr.mxu0 0.0
    %2196 = vmatpush1.msra.mxu0 %v2178
    %2197 = vmatprep.subr.mxu0 0.0
    %2198 = vmatpush1.msra.mxu0 %v2179
    %2199 = vmatprep.subr.mxu0 0.0
    %2200 = vmatpush1.msra.mxu0 %v2180
    %2201 = vmatprep.subr.mxu0 0.0
    %2202 = vmatpush1.msra.mxu0 %v2181
    %2203 = vmatprep.subr.mxu0 0.0
    %2204 = vmatpush1.msra.mxu0 %v2182
    %2205 = vmatprep.subr.mxu0 0.0
    %2206 = vmatpush1.msra.mxu0 %v2183
    %2207 = vmatprep.subr.mxu0 0.0
    %2208 = vmatpush1.msra.mxu0 %v2184
    %2209 = vmatprep.subr.mxu0 0.0
    %2210 = vmatpush1.msra.mxu0 %v2185
    %2211 = vmatprep.subr.mxu0 0.0
    %2212 = vmatpush1.msra.mxu0 %v2186
    %2213 = vmatprep.subr.mxu0 0.0
    %2214 = vmatpush1.msra.mxu0 %v2187
    %2215 = vmatprep.subr.mxu0 0.0
    %2216 = vmatpush1.msra.mxu0 %v2188
    %2217 = vmatprep.subr.mxu0 0.0
    %2218 = vmatpush1.msra.mxu0 %v2189
    %2219 = vmatprep.subr.mxu0 0.0
    %2220 = vmatpush1.msra.mxu0 %v2190
    %2221 = vmatprep.subr.mxu0 0.0
    %2222 = vmatpush1.msra.mxu0 %v2191
    %2223 = vmatprep.subr.mxu0 0.0
    %2224 = vmatpush1.msra.mxu0 %v2192
    %2225 = vmatprep.subr.mxu0 0.0
    %2226 = vmatpush1.msra.mxu0 0.0
    %2227 = vmatprep.subr.mxu0 0.0
    %2228 = vmatpush1.msra.mxu0 0.0
    %2229 = vmatprep.subr.mxu0 0.0
    %2230 = vmatpush1.msra.mxu0 0.0
    %2231 = vmatprep.subr.mxu0 0.0
    %2232 = vmatpush1.msra.mxu0 0.0
    %2233 = vmatprep.subr.mxu0 0.0
    %2234 = vmatpush1.msra.mxu0 0.0
    %2235 = vmatprep.subr.mxu0 0.0
    %2236 = vmatpush1.msra.mxu0 0.0
    %2237 = vmatprep.subr.mxu0 0.0
    %2238 = vmatpush1.msra.mxu0 0.0
    %2239 = vmatprep.subr.mxu0 0.0
    %2240 = vmatpush1.msra.mxu0 0.0
    %2241 = vmatprep.subr.mxu0 0.0
    %2242 = vmatpush1.msra.mxu0 0.0
    %2243 = vmatprep.subr.mxu0 0.0
    %2244 = vmatpush1.msra.mxu0 0.0
    %2245 = vmatprep.subr.mxu0 0.0
    %2246 = vmatpush1.msra.mxu0 0.0
    %2247 = vmatprep.subr.mxu0 0.0
    %2248 = vmatpush1.msra.mxu0 0.0
    %2249 = vmatprep.subr.mxu0 0.0
    %2250 = vmatpush1.msra.mxu0 0.0
    %2251 = vmatprep.subr.mxu0 0.0
    %2252 = vmatpush1.msra.mxu0 0.0
    %2253 = vmatprep.subr.mxu0 0.0
    %2254 = vmatpush1.msra.mxu0 0.0
    %2255 = vmatprep.subr.mxu0 0.0
    %2256 = vmatpush1.msra.mxu0 0.0
    %2257 = vmatprep.mubr.f32.mxu0 0.0
    %2258 = vmatmul.mubr.f32.gmra.mrb[0].mxu0 %v1836
    %v2259 = vpop.f32.mrb[0].mxu0
    %v2260 = vadd.f32 0.0, %v2259
    %v2261 = vpop.f32.mrb[0].mxu0
    %2262 = vmatprep.mubr.f32.mxu0 0.0
    %2263 = vmatmul.mubr.f32.gmra.mrb[0].mxu0 %v1837
    %v2264 = vpop.f32.mrb[0].mxu0
    %v2265 = vadd.f32 0.0, %v2264
    %v2266 = vpop.f32.mrb[0].mxu0
    %2267 = vmatprep.mubr.f32.mxu0 0.0
    %2268 = vmatmul.mubr.f32.gmra.mrb[0].mxu0 %v1838
    %v2269 = vpop.f32.mrb[0].mxu0
    %v2270 = vadd.f32 0.0, %v2269
    %v2271 = vpop.f32.mrb[0].mxu0
    %2272 = vmatprep.mubr.f32.mxu0 0.0
    %2273 = vmatmul.mubr.f32.gmra.mrb[0].mxu0 %v1839
    %v2274 = vpop.f32.mrb[0].mxu0
    %v2275 = vadd.f32 0.0, %v2274
    %v2276 = vpop.f32.mrb[0].mxu0
    %2277 = vmatprep.mubr.f32.mxu0 0.0
    %2278 = vmatmul.mubr.f32.gmra.mrb[0].mxu0 %v1840
    %v2279 = vpop.f32.mrb[0].mxu0
    %v2280 = vadd.f32 0.0, %v2279
    %v2281 = vpop.f32.mrb[0].mxu0
    %2282 = vmatprep.mubr.f32.mxu0 0.0
    %2283 = vmatmul.mubr.f32.gmra.mrb[0].mxu0 %v1841
    %v2284 = vpop.f32.mrb[0].mxu0
    %v2285 = vadd.f32 0.0, %v2284
    %v2286 = vpop.f32.mrb[0].mxu0
    %2287 = vmatprep.mubr.f32.mxu0 0.0
    %2288 = vmatmul.mubr.f32.gmra.mrb[0].mxu0 %v1842
    %v2289 = vpop.f32.mrb[0].mxu0
    %v2290 = vadd.f32 0.0, %v2289
    %v2291 = vpop.f32.mrb[0].mxu0
    %2292 = vmatprep.mubr.f32.mxu0 0.0
    %2293 = vmatmul.mubr.f32.gmra.mrb[0].mxu0 %v1843
    %v2294 = vpop.f32.mrb[0].mxu0
    %v2295 = vadd.f32 0.0, %v2294
    %v2296 = vpop.f32.mrb[0].mxu0
    %2297 = vmatprep.mubr.f32.mxu0 0.0
    %2298 = vmatmul.mubr.f32.gmra.mrb[0].mxu0 %v1844
    %v2299 = vpop.f32.mrb[0].mxu0
    %v2300 = vadd.f32 0.0, %v2299
    %v2301 = vpop.f32.mrb[0].mxu0
    %2302 = vmatprep.mubr.f32.mxu0 0.0
    %2303 = vmatmul.mubr.f32.gmra.mrb[0].mxu0 %v1845
    %v2304 = vpop.f32.mrb[0].mxu0
    %v2305 = vadd.f32 0.0, %v2304
    %v2306 = vpop.f32.mrb[0].mxu0
    %2307 = vmatprep.mubr.f32.mxu0 0.0
    %2308 = vmatmul.mubr.f32.gmra.mrb[0].mxu0 %v1846
    %v2309 = vpop.f32.mrb[0].mxu0
    %v2310 = vadd.f32 0.0, %v2309
    %v2311 = vpop.f32.mrb[0].mxu0
    %2312 = vmatprep.mubr.f32.mxu0 0.0
    %2313 = vmatmul.mubr.f32.gmra.mrb[0].mxu0 %v1847
    %v2314 = vpop.f32.mrb[0].mxu0
    %v2315 = vadd.f32 0.0, %v2314
    %v2316 = vpop.f32.mrb[0].mxu0
    %2317 = vmatprep.mubr.f32.mxu0 0.0
    %2318 = vmatmul.mubr.f32.gmra.mrb[0].mxu0 %v1848
    %v2319 = vpop.f32.mrb[0].mxu0
    %v2320 = vadd.f32 0.0, %v2319
    %v2321 = vpop.f32.mrb[0].mxu0
    %2322 = vmatprep.mubr.f32.mxu0 0.0
    %2323 = vmatmul.mubr.f32.gmra.mrb[0].mxu0 %v1849
    %v2324 = vpop.f32.mrb[0].mxu0
    %v2325 = vadd.f32 0.0, %v2324
    %v2326 = vpop.f32.mrb[0].mxu0
    %2327 = vmatprep.mubr.f32.mxu0 0.0
    %2328 = vmatmul.mubr.f32.gmra.mrb[0].mxu0 %v1850
    %v2329 = vpop.f32.mrb[0].mxu0
    %v2330 = vadd.f32 0.0, %v2329
    %v2331 = vpop.f32.mrb[0].mxu0
    %2332 = vmatprep.mubr.f32.mxu0 0.0
    %2333 = vmatmul.mubr.f32.gmra.mrb[0].mxu0 %v1851
    %v2334 = vpop.f32.mrb[0].mxu0
    %v2335 = vadd.f32 0.0, %v2334
    %v2336 = vpop.f32.mrb[0].mxu0
    %2337 = vdwg.mxu0
    %v2338 = vadd.f32 %v2098, %v2260
    %v2339 = vadd.f32 %v2103, %v2265
    %v2340 = vadd.f32 %v2108, %v2270
    %v2341 = vadd.f32 %v2113, %v2275
    %v2342 = vadd.f32 %v2118, %v2280
    %v2343 = vadd.f32 %v2123, %v2285
    %v2344 = vadd.f32 %v2128, %v2290
    %v2345 = vadd.f32 %v2133, %v2295
    %v2346 = vadd.f32 %v2138, %v2300
    %v2347 = vadd.f32 %v2143, %v2305
    %v2348 = vadd.f32 %v2148, %v2310
    %v2349 = vadd.f32 %v2153, %v2315
    %v2350 = vadd.f32 %v2158, %v2320
    %v2351 = vadd.f32 %v2163, %v2325
    %v2352 = vadd.f32 %v2168, %v2330
    %v2353 = vadd.f32 %v2173, %v2335
    %s2354 = scalar_lea.vmem %s3, 2
    %v2355 = vld [vmem:[%s2354] sm:$0x1]
    %v2357 = vlaneseq
    %v2358 = vshrl.u32 %v2357, 7
    %v2359 = vsub.s32 0, %v2358
    %v2360 = vrot.slane %v2355, %v2359
    %v2362 = vadd.f32 %v2338, %v2360
    %v2363 = vadd.f32 %v2339, %v2360
    %v2364 = vadd.f32 %v2340, %v2360
    %v2365 = vadd.f32 %v2341, %v2360
    %v2366 = vadd.f32 %v2342, %v2360
    %v2367 = vadd.f32 %v2343, %v2360
    %v2368 = vadd.f32 %v2344, %v2360
    %v2369 = vadd.f32 %v2345, %v2360
    %v2370 = vadd.f32 %v2346, %v2360
    %v2371 = vadd.f32 %v2347, %v2360
    %v2372 = vadd.f32 %v2348, %v2360
    %v2373 = vadd.f32 %v2349, %v2360
    %v2374 = vadd.f32 %v2350, %v2360
    %v2375 = vadd.f32 %v2351, %v2360
    %v2376 = vadd.f32 %v2352, %v2360
    %v2377 = vadd.f32 %v2353, %v2360
    %v2378 = vmax.f32 %v2362, 0.0
    %v2379 = vmax.f32 %v2363, 0.0
    %v2380 = vmax.f32 %v2364, 0.0
    %v2381 = vmax.f32 %v2365, 0.0
    %v2382 = vmax.f32 %v2366, 0.0
    %v2383 = vmax.f32 %v2367, 0.0
    %v2384 = vmax.f32 %v2368, 0.0
    %v2385 = vmax.f32 %v2369, 0.0
    %v2386 = vmax.f32 %v2370, 0.0
    %v2387 = vmax.f32 %v2371, 0.0
    %v2388 = vmax.f32 %v2372, 0.0
    %v2389 = vmax.f32 %v2373, 0.0
    %v2390 = vmax.f32 %v2374, 0.0
    %v2391 = vmax.f32 %v2375, 0.0
    %v2392 = vmax.f32 %v2376, 0.0
    %v2393 = vmax.f32 %v2377, 0.0
    %v2394 = vrot.slane %v2378, 7
    %v2395 = vrot.slane %v2379, 7
    %v2396 = vrot.slane %v2380, 7
    %v2397 = vrot.slane %v2381, 7
    %v2398 = vrot.slane %v2382, 7
    %v2399 = vrot.slane %v2383, 7
    %v2400 = vrot.slane %v2384, 7
    %v2401 = vrot.slane %v2385, 7
    %v2402 = vrot.slane %v2386, 7
    %v2403 = vrot.slane %v2387, 7
    %v2404 = vrot.slane %v2388, 7
    %v2405 = vrot.slane %v2389, 7
    %v2406 = vrot.slane %v2390, 7
    %v2407 = vrot.slane %v2391, 7
    %v2408 = vrot.slane %v2392, 7
    %v2409 = vrot.slane %v2393, 7
    %v2410 = vsel %vm400, %v2408, %v2409
    %v2411 = vsel %vm400, %v2407, %v2408
    %v2412 = vsel %vm400, %v2406, %v2407
    %v2413 = vsel %vm400, %v2405, %v2406
    %v2414 = vsel %vm400, %v2404, %v2405
    %v2415 = vsel %vm400, %v2403, %v2404
    %v2416 = vsel %vm400, %v2402, %v2403
    %v2417 = vsel %vm400, %v2401, %v2402
    %v2418 = vsel %vm400, %v2400, %v2401
    %v2419 = vsel %vm400, %v2399, %v2400
    %v2420 = vsel %vm400, %v2398, %v2399
    %v2421 = vsel %vm400, %v2397, %v2398
    %v2422 = vsel %vm400, %v2396, %v2397
    %v2423 = vsel %vm400, %v2395, %v2396
    %v2424 = vsel %vm400, %v2394, %v2395
    %v2425 = vsel %vm400, %v2409, %v2394
    %v2426 = vsel %vm433, %v2425, 0.0
    %v2427 = vsel %vm434, %v2424, 0.0
    %v2428 = vsel %vm435, %v2423, 0.0
    %v2429 = vsel %vm436, %v2422, 0.0
    %v2430 = vsel %vm437, %v2421, 0.0
    %v2431 = vsel %vm438, %v2420, 0.0
    %v2432 = vsel %vm439, %v2419, 0.0
    %v2433 = vsel %vm440, %v2418, 0.0
    %v2434 = vsel %vm441, %v2417, 0.0
    %v2435 = vsel %vm442, %v2416, 0.0
    %v2436 = vsel %vm443, %v2415, 0.0
    %v2437 = vsel %vm444, %v2414, 0.0
    %v2438 = vsel %vm445, %v2413, 0.0
    %v2439 = vsel %vm446, %v2412, 0.0
    %v2440 = vsel %vm447, %v2411, 0.0
    %v2441 = vsel %vm448, %v2410, 0.0
    %v2442 = vrot.slane %v2378, 1
    %v2443 = vrot.slane %v2379, 1
    %v2444 = vrot.slane %v2380, 1
    %v2445 = vrot.slane %v2381, 1
    %v2446 = vrot.slane %v2382, 1
    %v2447 = vrot.slane %v2383, 1
    %v2448 = vrot.slane %v2384, 1
    %v2449 = vrot.slane %v2385, 1
    %v2450 = vrot.slane %v2386, 1
    %v2451 = vrot.slane %v2387, 1
    %v2452 = vrot.slane %v2388, 1
    %v2453 = vrot.slane %v2389, 1
    %v2454 = vrot.slane %v2390, 1
    %v2455 = vrot.slane %v2391, 1
    %v2456 = vrot.slane %v2392, 1
    %v2457 = vrot.slane %v2393, 1
    %v2458 = vsel %vm481, %v2456, %v2457
    %v2459 = vsel %vm481, %v2455, %v2456
    %v2460 = vsel %vm481, %v2454, %v2455
    %v2461 = vsel %vm481, %v2453, %v2454
    %v2462 = vsel %vm481, %v2452, %v2453
    %v2463 = vsel %vm481, %v2451, %v2452
    %v2464 = vsel %vm481, %v2450, %v2451
    %v2465 = vsel %vm481, %v2449, %v2450
    %v2466 = vsel %vm481, %v2448, %v2449
    %v2467 = vsel %vm481, %v2447, %v2448
    %v2468 = vsel %vm481, %v2446, %v2447
    %v2469 = vsel %vm481, %v2445, %v2446
    %v2470 = vsel %vm481, %v2444, %v2445
    %v2471 = vsel %vm481, %v2443, %v2444
    %v2472 = vsel %vm481, %v2442, %v2443
    %v2473 = vsel %vm481, %v2457, %v2442
    %v2474 = vsel %vm514, %v2472, 0.0
    %v2475 = vsel %vm515, %v2471, 0.0
    %v2476 = vsel %vm516, %v2470, 0.0
    %v2477 = vsel %vm517, %v2469, 0.0
    %v2478 = vsel %vm518, %v2468, 0.0
    %v2479 = vsel %vm519, %v2467, 0.0
    %v2480 = vsel %vm520, %v2466, 0.0
    %v2481 = vsel %vm521, %v2465, 0.0
    %v2482 = vsel %vm522, %v2464, 0.0
    %v2483 = vsel %vm523, %v2463, 0.0
    %v2484 = vsel %vm524, %v2462, 0.0
    %v2485 = vsel %vm525, %v2461, 0.0
    %v2486 = vsel %vm526, %v2460, 0.0
    %v2487 = vsel %vm527, %v2459, 0.0
    %v2488 = vsel %vm528, %v2458, 0.0
    %v2489 = vsel %vm529, %v2473, 0.0
    %s2490 = scalar_lea.vmem [#allocation7], 1152
    %v2491 = vld [vmem:[%s2490] sm:$0xff]
    %v2492 = vld [vmem:[%s2490 + $0x8] sm:$0xff]
    %v2493 = vld [vmem:[%s2490 + $0x10] sm:$0xff]
    %v2494 = vld [vmem:[%s2490 + $0x18] sm:$0xff]
    %v2495 = vld [vmem:[%s2490 + $0x20] sm:$0xff]
    %v2496 = vld [vmem:[%s2490 + $0x28] sm:$0xff]
    %v2497 = vld [vmem:[%s2490 + $0x30] sm:$0xff]
    %v2498 = vld [vmem:[%s2490 + $0x38] sm:$0xff]
    %v2499 = vld [vmem:[%s2490 + $0x40] sm:$0xff]
    %v2500 = vld [vmem:[%s2490 + $0x48] sm:$0xff]
    %v2501 = vld [vmem:[%s2490 + $0x50] sm:$0xff]
    %v2502 = vld [vmem:[%s2490 + $0x58] sm:$0xff]
    %v2503 = vld [vmem:[%s2490 + $0x60] sm:$0xff]
    %v2504 = vld [vmem:[%s2490 + $0x68] sm:$0xff]
    %v2505 = vld [vmem:[%s2490 + $0x70] sm:$0xff]
    %v2506 = vld [vmem:[%s2490 + $0x78] sm:$0xff]
    %s2507 = scalar_lea.vmem [#allocation7], 1280
    %v2508 = vld [vmem:[%s2507] sm:$0xff]
    %v2509 = vld [vmem:[%s2507 + $0x8] sm:$0xff]
    %v2510 = vld [vmem:[%s2507 + $0x10] sm:$0xff]
    %v2511 = vld [vmem:[%s2507 + $0x18] sm:$0xff]
    %v2512 = vld [vmem:[%s2507 + $0x20] sm:$0xff]
    %v2513 = vld [vmem:[%s2507 + $0x28] sm:$0xff]
    %v2514 = vld [vmem:[%s2507 + $0x30] sm:$0xff]
    %v2515 = vld [vmem:[%s2507 + $0x38] sm:$0xff]
    %v2516 = vld [vmem:[%s2507 + $0x40] sm:$0xff]
    %v2517 = vld [vmem:[%s2507 + $0x48] sm:$0xff]
    %v2518 = vld [vmem:[%s2507 + $0x50] sm:$0xff]
    %v2519 = vld [vmem:[%s2507 + $0x58] sm:$0xff]
    %v2520 = vld [vmem:[%s2507 + $0x60] sm:$0xff]
    %v2521 = vld [vmem:[%s2507 + $0x68] sm:$0xff]
    %v2522 = vld [vmem:[%s2507 + $0x70] sm:$0xff]
    %v2523 = vld [vmem:[%s2507 + $0x78] sm:$0xff]
    %2524 = vmatprep.subr.mxu0 0.0
    %2525 = vmatpush1.msra.mxu0 %v2508
    %2526 = vmatprep.subr.mxu0 0.0
    %2527 = vmatpush1.msra.mxu0 %v2509
    %2528 = vmatprep.subr.mxu0 0.0
    %2529 = vmatpush1.msra.mxu0 %v2510
    %2530 = vmatprep.subr.mxu0 0.0
    %2531 = vmatpush1.msra.mxu0 %v2511
    %2532 = vmatprep.subr.mxu0 0.0
    %2533 = vmatpush1.msra.mxu0 %v2512
    %2534 = vmatprep.subr.mxu0 0.0
    %2535 = vmatpush1.msra.mxu0 %v2513
    %2536 = vmatprep.subr.mxu0 0.0
    %2537 = vmatpush1.msra.mxu0 %v2514
    %2538 = vmatprep.subr.mxu0 0.0
    %2539 = vmatpush1.msra.mxu0 %v2515
    %2540 = vmatprep.subr.mxu0 0.0
    %2541 = vmatpush1.msra.mxu0 %v2516
    %2542 = vmatprep.subr.mxu0 0.0
    %2543 = vmatpush1.msra.mxu0 %v2517
    %2544 = vmatprep.subr.mxu0 0.0
    %2545 = vmatpush1.msra.mxu0 %v2518
    %2546 = vmatprep.subr.mxu0 0.0
    %2547 = vmatpush1.msra.mxu0 %v2519
    %2548 = vmatprep.subr.mxu0 0.0
    %2549 = vmatpush1.msra.mxu0 %v2520
    %2550 = vmatprep.subr.mxu0 0.0
    %2551 = vmatpush1.msra.mxu0 %v2521
    %2552 = vmatprep.subr.mxu0 0.0
    %2553 = vmatpush1.msra.mxu0 %v2522
    %2554 = vmatprep.subr.mxu0 0.0
    %2555 = vmatpush1.msra.mxu0 %v2523
    %2556 = vmatprep.subr.mxu0 0.0
    %2557 = vmatpush1.msra.mxu0 0.0
    %2558 = vmatprep.subr.mxu0 0.0
    %2559 = vmatpush1.msra.mxu0 0.0
    %2560 = vmatprep.subr.mxu0 0.0
    %2561 = vmatpush1.msra.mxu0 0.0
    %2562 = vmatprep.subr.mxu0 0.0
    %2563 = vmatpush1.msra.mxu0 0.0
    %2564 = vmatprep.subr.mxu0 0.0
    %2565 = vmatpush1.msra.mxu0 0.0
    %2566 = vmatprep.subr.mxu0 0.0
    %2567 = vmatpush1.msra.mxu0 0.0
    %2568 = vmatprep.subr.mxu0 0.0
    %2569 = vmatpush1.msra.mxu0 0.0
    %2570 = vmatprep.subr.mxu0 0.0
    %2571 = vmatpush1.msra.mxu0 0.0
    %2572 = vmatprep.subr.mxu0 0.0
    %2573 = vmatpush1.msra.mxu0 0.0
    %2574 = vmatprep.subr.mxu0 0.0
    %2575 = vmatpush1.msra.mxu0 0.0
    %2576 = vmatprep.subr.mxu0 0.0
    %2577 = vmatpush1.msra.mxu0 0.0
    %2578 = vmatprep.subr.mxu0 0.0
    %2579 = vmatpush1.msra.mxu0 0.0
    %2580 = vmatprep.subr.mxu0 0.0
    %2581 = vmatpush1.msra.mxu0 0.0
    %2582 = vmatprep.subr.mxu0 0.0
    %2583 = vmatpush1.msra.mxu0 0.0
    %2584 = vmatprep.subr.mxu0 0.0
    %2585 = vmatpush1.msra.mxu0 0.0
    %2586 = vmatprep.subr.mxu0 0.0
    %2587 = vmatpush1.msra.mxu0 0.0
    %2588 = vmatprep.mubr.f32.mxu0 0.0
    %2589 = vmatmul.mubr.f32.gmra.mrb[0].mxu0 %v2378
    %v2590 = vpop.f32.mrb[0].mxu0
    %v2591 = vadd.f32 0.0, %v2590
    %v2592 = vpop.f32.mrb[0].mxu0
    %2593 = vmatprep.mubr.f32.mxu0 0.0
    %2594 = vmatmul.mubr.f32.gmra.mrb[0].mxu0 %v2379
    %v2595 = vpop.f32.mrb[0].mxu0
    %v2596 = vadd.f32 0.0, %v2595
    %v2597 = vpop.f32.mrb[0].mxu0
    %2598 = vmatprep.mubr.f32.mxu0 0.0
    %2599 = vmatmul.mubr.f32.gmra.mrb[0].mxu0 %v2380
    %v2600 = vpop.f32.mrb[0].mxu0
    %v2601 = vadd.f32 0.0, %v2600
    %v2602 = vpop.f32.mrb[0].mxu0
    %2603 = vmatprep.mubr.f32.mxu0 0.0
    %2604 = vmatmul.mubr.f32.gmra.mrb[0].mxu0 %v2381
    %v2605 = vpop.f32.mrb[0].mxu0
    %v2606 = vadd.f32 0.0, %v2605
    %v2607 = vpop.f32.mrb[0].mxu0
    %2608 = vmatprep.mubr.f32.mxu0 0.0
    %2609 = vmatmul.mubr.f32.gmra.mrb[0].mxu0 %v2382
    %v2610 = vpop.f32.mrb[0].mxu0
    %v2611 = vadd.f32 0.0, %v2610
    %v2612 = vpop.f32.mrb[0].mxu0
    %2613 = vmatprep.mubr.f32.mxu0 0.0
    %2614 = vmatmul.mubr.f32.gmra.mrb[0].mxu0 %v2383
    %v2615 = vpop.f32.mrb[0].mxu0
    %v2616 = vadd.f32 0.0, %v2615
    %v2617 = vpop.f32.mrb[0].mxu0
    %2618 = vmatprep.mubr.f32.mxu0 0.0
    %2619 = vmatmul.mubr.f32.gmra.mrb[0].mxu0 %v2384
    %v2620 = vpop.f32.mrb[0].mxu0
    %v2621 = vadd.f32 0.0, %v2620
    %v2622 = vpop.f32.mrb[0].mxu0
    %2623 = vmatprep.mubr.f32.mxu0 0.0
    %2624 = vmatmul.mubr.f32.gmra.mrb[0].mxu0 %v2385
    %v2625 = vpop.f32.mrb[0].mxu0
    %v2626 = vadd.f32 0.0, %v2625
    %v2627 = vpop.f32.mrb[0].mxu0
    %2628 = vmatprep.mubr.f32.mxu0 0.0
    %2629 = vmatmul.mubr.f32.gmra.mrb[0].mxu0 %v2386
    %v2630 = vpop.f32.mrb[0].mxu0
    %v2631 = vadd.f32 0.0, %v2630
    %v2632 = vpop.f32.mrb[0].mxu0
    %2633 = vmatprep.mubr.f32.mxu0 0.0
    %2634 = vmatmul.mubr.f32.gmra.mrb[0].mxu0 %v2387
    %v2635 = vpop.f32.mrb[0].mxu0
    %v2636 = vadd.f32 0.0, %v2635
    %v2637 = vpop.f32.mrb[0].mxu0
    %2638 = vmatprep.mubr.f32.mxu0 0.0
    %2639 = vmatmul.mubr.f32.gmra.mrb[0].mxu0 %v2388
    %v2640 = vpop.f32.mrb[0].mxu0
    %v2641 = vadd.f32 0.0, %v2640
    %v2642 = vpop.f32.mrb[0].mxu0
    %2643 = vmatprep.mubr.f32.mxu0 0.0
    %2644 = vmatmul.mubr.f32.gmra.mrb[0].mxu0 %v2389
    %v2645 = vpop.f32.mrb[0].mxu0
    %v2646 = vadd.f32 0.0, %v2645
    %v2647 = vpop.f32.mrb[0].mxu0
    %2648 = vmatprep.mubr.f32.mxu0 0.0
    %2649 = vmatmul.mubr.f32.gmra.mrb[0].mxu0 %v2390
    %v2650 = vpop.f32.mrb[0].mxu0
    %v2651 = vadd.f32 0.0, %v2650
    %v2652 = vpop.f32.mrb[0].mxu0
    %2653 = vmatprep.mubr.f32.mxu0 0.0
    %2654 = vmatmul.mubr.f32.gmra.mrb[0].mxu0 %v2391
    %v2655 = vpop.f32.mrb[0].mxu0
    %v2656 = vadd.f32 0.0, %v2655
    %v2657 = vpop.f32.mrb[0].mxu0
    %2658 = vmatprep.mubr.f32.mxu0 0.0
    %2659 = vmatmul.mubr.f32.gmra.mrb[0].mxu0 %v2392
    %v2660 = vpop.f32.mrb[0].mxu0
    %v2661 = vadd.f32 0.0, %v2660
    %v2662 = vpop.f32.mrb[0].mxu0
    %2663 = vmatprep.mubr.f32.mxu0 0.0
    %2664 = vmatmul.mubr.f32.gmra.mrb[0].mxu0 %v2393
    %v2665 = vpop.f32.mrb[0].mxu0
    %v2666 = vadd.f32 0.0, %v2665
    %v2667 = vpop.f32.mrb[0].mxu0
    %2668 = vdwg.mxu0
    %2669 = vmatprep.subr.mxu0 0.0
    %2670 = vmatpush1.msra.mxu0 %v2491
    %2671 = vmatprep.subr.mxu0 0.0
    %2672 = vmatpush1.msra.mxu0 %v2492
    %2673 = vmatprep.subr.mxu0 0.0
    %2674 = vmatpush1.msra.mxu0 %v2493
    %2675 = vmatprep.subr.mxu0 0.0
    %2676 = vmatpush1.msra.mxu0 %v2494
    %2677 = vmatprep.subr.mxu0 0.0
    %2678 = vmatpush1.msra.mxu0 %v2495
    %2679 = vmatprep.subr.mxu0 0.0
    %2680 = vmatpush1.msra.mxu0 %v2496
    %2681 = vmatprep.subr.mxu0 0.0
    %2682 = vmatpush1.msra.mxu0 %v2497
    %2683 = vmatprep.subr.mxu0 0.0
    %2684 = vmatpush1.msra.mxu0 %v2498
    %2685 = vmatprep.subr.mxu0 0.0
    %2686 = vmatpush1.msra.mxu0 %v2499
    %2687 = vmatprep.subr.mxu0 0.0
    %2688 = vmatpush1.msra.mxu0 %v2500
    %2689 = vmatprep.subr.mxu0 0.0
    %2690 = vmatpush1.msra.mxu0 %v2501
    %2691 = vmatprep.subr.mxu0 0.0
    %2692 = vmatpush1.msra.mxu0 %v2502
    %2693 = vmatprep.subr.mxu0 0.0
    %2694 = vmatpush1.msra.mxu0 %v2503
    %2695 = vmatprep.subr.mxu0 0.0
    %2696 = vmatpush1.msra.mxu0 %v2504
    %2697 = vmatprep.subr.mxu0 0.0
    %2698 = vmatpush1.msra.mxu0 %v2505
    %2699 = vmatprep.subr.mxu0 0.0
    %2700 = vmatpush1.msra.mxu0 %v2506
    %2701 = vmatprep.subr.mxu0 0.0
    %2702 = vmatpush1.msra.mxu0 0.0
    %2703 = vmatprep.subr.mxu0 0.0
    %2704 = vmatpush1.msra.mxu0 0.0
    %2705 = vmatprep.subr.mxu0 0.0
    %2706 = vmatpush1.msra.mxu0 0.0
    %2707 = vmatprep.subr.mxu0 0.0
    %2708 = vmatpush1.msra.mxu0 0.0
    %2709 = vmatprep.subr.mxu0 0.0
    %2710 = vmatpush1.msra.mxu0 0.0
    %2711 = vmatprep.subr.mxu0 0.0
    %2712 = vmatpush1.msra.mxu0 0.0
    %2713 = vmatprep.subr.mxu0 0.0
    %2714 = vmatpush1.msra.mxu0 0.0
    %2715 = vmatprep.subr.mxu0 0.0
    %2716 = vmatpush1.msra.mxu0 0.0
    %2717 = vmatprep.subr.mxu0 0.0
    %2718 = vmatpush1.msra.mxu0 0.0
    %2719 = vmatprep.subr.mxu0 0.0
    %2720 = vmatpush1.msra.mxu0 0.0
    %2721 = vmatprep.subr.mxu0 0.0
    %2722 = vmatpush1.msra.mxu0 0.0
    %2723 = vmatprep.subr.mxu0 0.0
    %2724 = vmatpush1.msra.mxu0 0.0
    %2725 = vmatprep.subr.mxu0 0.0
    %2726 = vmatpush1.msra.mxu0 0.0
    %2727 = vmatprep.subr.mxu0 0.0
    %2728 = vmatpush1.msra.mxu0 0.0
    %2729 = vmatprep.subr.mxu0 0.0
    %2730 = vmatpush1.msra.mxu0 0.0
    %2731 = vmatprep.subr.mxu0 0.0
    %2732 = vmatpush1.msra.mxu0 0.0
    %2733 = vmatprep.mubr.f32.mxu0 0.0
    %2734 = vmatmul.mubr.f32.gmra.mrb[0].mxu0 %v2426
    %v2735 = vpop.f32.mrb[0].mxu0
    %v2736 = vadd.f32 %v2591, %v2735
    %v2737 = vpop.f32.mrb[0].mxu0
    %2738 = vmatprep.mubr.f32.mxu0 0.0
    %2739 = vmatmul.mubr.f32.gmra.mrb[0].mxu0 %v2427
    %v2740 = vpop.f32.mrb[0].mxu0
    %v2741 = vadd.f32 %v2596, %v2740
    %v2742 = vpop.f32.mrb[0].mxu0
    %2743 = vmatprep.mubr.f32.mxu0 0.0
    %2744 = vmatmul.mubr.f32.gmra.mrb[0].mxu0 %v2428
    %v2745 = vpop.f32.mrb[0].mxu0
    %v2746 = vadd.f32 %v2601, %v2745
    %v2747 = vpop.f32.mrb[0].mxu0
    %2748 = vmatprep.mubr.f32.mxu0 0.0
    %2749 = vmatmul.mubr.f32.gmra.mrb[0].mxu0 %v2429
    %v2750 = vpop.f32.mrb[0].mxu0
    %v2751 = vadd.f32 %v2606, %v2750
    %v2752 = vpop.f32.mrb[0].mxu0
    %2753 = vmatprep.mubr.f32.mxu0 0.0
    %2754 = vmatmul.mubr.f32.gmra.mrb[0].mxu0 %v2430
    %v2755 = vpop.f32.mrb[0].mxu0
    %v2756 = vadd.f32 %v2611, %v2755
    %v2757 = vpop.f32.mrb[0].mxu0
    %2758 = vmatprep.mubr.f32.mxu0 0.0
    %2759 = vmatmul.mubr.f32.gmra.mrb[0].mxu0 %v2431
    %v2760 = vpop.f32.mrb[0].mxu0
    %v2761 = vadd.f32 %v2616, %v2760
    %v2762 = vpop.f32.mrb[0].mxu0
    %2763 = vmatprep.mubr.f32.mxu0 0.0
    %2764 = vmatmul.mubr.f32.gmra.mrb[0].mxu0 %v2432
    %v2765 = vpop.f32.mrb[0].mxu0
    %v2766 = vadd.f32 %v2621, %v2765
    %v2767 = vpop.f32.mrb[0].mxu0
    %2768 = vmatprep.mubr.f32.mxu0 0.0
    %2769 = vmatmul.mubr.f32.gmra.mrb[0].mxu0 %v2433
    %v2770 = vpop.f32.mrb[0].mxu0
    %v2771 = vadd.f32 %v2626, %v2770
    %v2772 = vpop.f32.mrb[0].mxu0
    %2773 = vmatprep.mubr.f32.mxu0 0.0
    %2774 = vmatmul.mubr.f32.gmra.mrb[0].mxu0 %v2434
    %v2775 = vpop.f32.mrb[0].mxu0
    %v2776 = vadd.f32 %v2631, %v2775
    %v2777 = vpop.f32.mrb[0].mxu0
    %2778 = vmatprep.mubr.f32.mxu0 0.0
    %2779 = vmatmul.mubr.f32.gmra.mrb[0].mxu0 %v2435
    %v2780 = vpop.f32.mrb[0].mxu0
    %v2781 = vadd.f32 %v2636, %v2780
    %v2782 = vpop.f32.mrb[0].mxu0
    %2783 = vmatprep.mubr.f32.mxu0 0.0
    %2784 = vmatmul.mubr.f32.gmra.mrb[0].mxu0 %v2436
    %v2785 = vpop.f32.mrb[0].mxu0
    %v2786 = vadd.f32 %v2641, %v2785
    %v2787 = vpop.f32.mrb[0].mxu0
    %2788 = vmatprep.mubr.f32.mxu0 0.0
    %2789 = vmatmul.mubr.f32.gmra.mrb[0].mxu0 %v2437
    %v2790 = vpop.f32.mrb[0].mxu0
    %v2791 = vadd.f32 %v2646, %v2790
    %v2792 = vpop.f32.mrb[0].mxu0
    %2793 = vmatprep.mubr.f32.mxu0 0.0
    %2794 = vmatmul.mubr.f32.gmra.mrb[0].mxu0 %v2438
    %v2795 = vpop.f32.mrb[0].mxu0
    %v2796 = vadd.f32 %v2651, %v2795
    %v2797 = vpop.f32.mrb[0].mxu0
    %2798 = vmatprep.mubr.f32.mxu0 0.0
    %2799 = vmatmul.mubr.f32.gmra.mrb[0].mxu0 %v2439
    %v2800 = vpop.f32.mrb[0].mxu0
    %v2801 = vadd.f32 %v2656, %v2800
    %v2802 = vpop.f32.mrb[0].mxu0
    %2803 = vmatprep.mubr.f32.mxu0 0.0
    %2804 = vmatmul.mubr.f32.gmra.mrb[0].mxu0 %v2440
    %v2805 = vpop.f32.mrb[0].mxu0
    %v2806 = vadd.f32 %v2661, %v2805
    %v2807 = vpop.f32.mrb[0].mxu0
    %2808 = vmatprep.mubr.f32.mxu0 0.0
    %2809 = vmatmul.mubr.f32.gmra.mrb[0].mxu0 %v2441
    %v2810 = vpop.f32.mrb[0].mxu0
    %v2811 = vadd.f32 %v2666, %v2810
    %v2812 = vpop.f32.mrb[0].mxu0
    %2813 = vdwg.mxu0
    %s2814 = scalar_lea.vmem [#allocation7], 1408
    %v2815 = vld [vmem:[%s2814] sm:$0xff]
    %v2816 = vld [vmem:[%s2814 + $0x8] sm:$0xff]
    %v2817 = vld [vmem:[%s2814 + $0x10] sm:$0xff]
    %v2818 = vld [vmem:[%s2814 + $0x18] sm:$0xff]
    %v2819 = vld [vmem:[%s2814 + $0x20] sm:$0xff]
    %v2820 = vld [vmem:[%s2814 + $0x28] sm:$0xff]
    %v2821 = vld [vmem:[%s2814 + $0x30] sm:$0xff]
    %v2822 = vld [vmem:[%s2814 + $0x38] sm:$0xff]
    %v2823 = vld [vmem:[%s2814 + $0x40] sm:$0xff]
    %v2824 = vld [vmem:[%s2814 + $0x48] sm:$0xff]
    %v2825 = vld [vmem:[%s2814 + $0x50] sm:$0xff]
    %v2826 = vld [vmem:[%s2814 + $0x58] sm:$0xff]
    %v2827 = vld [vmem:[%s2814 + $0x60] sm:$0xff]
    %v2828 = vld [vmem:[%s2814 + $0x68] sm:$0xff]
    %v2829 = vld [vmem:[%s2814 + $0x70] sm:$0xff]
    %v2830 = vld [vmem:[%s2814 + $0x78] sm:$0xff]
    %2831 = vmatprep.subr.mxu0 0.0
    %2832 = vmatpush1.msra.mxu0 %v2815
    %2833 = vmatprep.subr.mxu0 0.0
    %2834 = vmatpush1.msra.mxu0 %v2816
    %2835 = vmatprep.subr.mxu0 0.0
    %2836 = vmatpush1.msra.mxu0 %v2817
    %2837 = vmatprep.subr.mxu0 0.0
    %2838 = vmatpush1.msra.mxu0 %v2818
    %2839 = vmatprep.subr.mxu0 0.0
    %2840 = vmatpush1.msra.mxu0 %v2819
    %2841 = vmatprep.subr.mxu0 0.0
    %2842 = vmatpush1.msra.mxu0 %v2820
    %2843 = vmatprep.subr.mxu0 0.0
    %2844 = vmatpush1.msra.mxu0 %v2821
    %2845 = vmatprep.subr.mxu0 0.0
    %2846 = vmatpush1.msra.mxu0 %v2822
    %2847 = vmatprep.subr.mxu0 0.0
    %2848 = vmatpush1.msra.mxu0 %v2823
    %2849 = vmatprep.subr.mxu0 0.0
    %2850 = vmatpush1.msra.mxu0 %v2824
    %2851 = vmatprep.subr.mxu0 0.0
    %2852 = vmatpush1.msra.mxu0 %v2825
    %2853 = vmatprep.subr.mxu0 0.0
    %2854 = vmatpush1.msra.mxu0 %v2826
    %2855 = vmatprep.subr.mxu0 0.0
    %2856 = vmatpush1.msra.mxu0 %v2827
    %2857 = vmatprep.subr.mxu0 0.0
    %2858 = vmatpush1.msra.mxu0 %v2828
    %2859 = vmatprep.subr.mxu0 0.0
    %2860 = vmatpush1.msra.mxu0 %v2829
    %2861 = vmatprep.subr.mxu0 0.0
    %2862 = vmatpush1.msra.mxu0 %v2830
    %2863 = vmatprep.subr.mxu0 0.0
    %2864 = vmatpush1.msra.mxu0 0.0
    %2865 = vmatprep.subr.mxu0 0.0
    %2866 = vmatpush1.msra.mxu0 0.0
    %2867 = vmatprep.subr.mxu0 0.0
    %2868 = vmatpush1.msra.mxu0 0.0
    %2869 = vmatprep.subr.mxu0 0.0
    %2870 = vmatpush1.msra.mxu0 0.0
    %2871 = vmatprep.subr.mxu0 0.0
    %2872 = vmatpush1.msra.mxu0 0.0
    %2873 = vmatprep.subr.mxu0 0.0
    %2874 = vmatpush1.msra.mxu0 0.0
    %2875 = vmatprep.subr.mxu0 0.0
    %2876 = vmatpush1.msra.mxu0 0.0
    %2877 = vmatprep.subr.mxu0 0.0
    %2878 = vmatpush1.msra.mxu0 0.0
    %2879 = vmatprep.subr.mxu0 0.0
    %2880 = vmatpush1.msra.mxu0 0.0
    %2881 = vmatprep.subr.mxu0 0.0
    %2882 = vmatpush1.msra.mxu0 0.0
    %2883 = vmatprep.subr.mxu0 0.0
    %2884 = vmatpush1.msra.mxu0 0.0
    %2885 = vmatprep.subr.mxu0 0.0
    %2886 = vmatpush1.msra.mxu0 0.0
    %2887 = vmatprep.subr.mxu0 0.0
    %2888 = vmatpush1.msra.mxu0 0.0
    %2889 = vmatprep.subr.mxu0 0.0
    %2890 = vmatpush1.msra.mxu0 0.0
    %2891 = vmatprep.subr.mxu0 0.0
    %2892 = vmatpush1.msra.mxu0 0.0
    %2893 = vmatprep.subr.mxu0 0.0
    %2894 = vmatpush1.msra.mxu0 0.0
    %2895 = vmatprep.mubr.f32.mxu0 0.0
    %2896 = vmatmul.mubr.f32.gmra.mrb[0].mxu0 %v2474
    %v2897 = vpop.f32.mrb[0].mxu0
    %v2898 = vadd.f32 0.0, %v2897
    %v2899 = vpop.f32.mrb[0].mxu0
    %2900 = vmatprep.mubr.f32.mxu0 0.0
    %2901 = vmatmul.mubr.f32.gmra.mrb[0].mxu0 %v2475
    %v2902 = vpop.f32.mrb[0].mxu0
    %v2903 = vadd.f32 0.0, %v2902
    %v2904 = vpop.f32.mrb[0].mxu0
    %2905 = vmatprep.mubr.f32.mxu0 0.0
    %2906 = vmatmul.mubr.f32.gmra.mrb[0].mxu0 %v2476
    %v2907 = vpop.f32.mrb[0].mxu0
    %v2908 = vadd.f32 0.0, %v2907
    %v2909 = vpop.f32.mrb[0].mxu0
    %2910 = vmatprep.mubr.f32.mxu0 0.0
    %2911 = vmatmul.mubr.f32.gmra.mrb[0].mxu0 %v2477
    %v2912 = vpop.f32.mrb[0].mxu0
    %v2913 = vadd.f32 0.0, %v2912
    %v2914 = vpop.f32.mrb[0].mxu0
    %2915 = vmatprep.mubr.f32.mxu0 0.0
    %2916 = vmatmul.mubr.f32.gmra.mrb[0].mxu0 %v2478
    %v2917 = vpop.f32.mrb[0].mxu0
    %v2918 = vadd.f32 0.0, %v2917
    %v2919 = vpop.f32.mrb[0].mxu0
    %2920 = vmatprep.mubr.f32.mxu0 0.0
    %2921 = vmatmul.mubr.f32.gmra.mrb[0].mxu0 %v2479
    %v2922 = vpop.f32.mrb[0].mxu0
    %v2923 = vadd.f32 0.0, %v2922
    %v2924 = vpop.f32.mrb[0].mxu0
    %2925 = vmatprep.mubr.f32.mxu0 0.0
    %2926 = vmatmul.mubr.f32.gmra.mrb[0].mxu0 %v2480
    %v2927 = vpop.f32.mrb[0].mxu0
    %v2928 = vadd.f32 0.0, %v2927
    %v2929 = vpop.f32.mrb[0].mxu0
    %2930 = vmatprep.mubr.f32.mxu0 0.0
    %2931 = vmatmul.mubr.f32.gmra.mrb[0].mxu0 %v2481
    %v2932 = vpop.f32.mrb[0].mxu0
    %v2933 = vadd.f32 0.0, %v2932
    %v2934 = vpop.f32.mrb[0].mxu0
    %2935 = vmatprep.mubr.f32.mxu0 0.0
    %2936 = vmatmul.mubr.f32.gmra.mrb[0].mxu0 %v2482
    %v2937 = vpop.f32.mrb[0].mxu0
    %v2938 = vadd.f32 0.0, %v2937
    %v2939 = vpop.f32.mrb[0].mxu0
    %2940 = vmatprep.mubr.f32.mxu0 0.0
    %2941 = vmatmul.mubr.f32.gmra.mrb[0].mxu0 %v2483
    %v2942 = vpop.f32.mrb[0].mxu0
    %v2943 = vadd.f32 0.0, %v2942
    %v2944 = vpop.f32.mrb[0].mxu0
    %2945 = vmatprep.mubr.f32.mxu0 0.0
    %2946 = vmatmul.mubr.f32.gmra.mrb[0].mxu0 %v2484
    %v2947 = vpop.f32.mrb[0].mxu0
    %v2948 = vadd.f32 0.0, %v2947
    %v2949 = vpop.f32.mrb[0].mxu0
    %2950 = vmatprep.mubr.f32.mxu0 0.0
    %2951 = vmatmul.mubr.f32.gmra.mrb[0].mxu0 %v2485
    %v2952 = vpop.f32.mrb[0].mxu0
    %v2953 = vadd.f32 0.0, %v2952
    %v2954 = vpop.f32.mrb[0].mxu0
    %2955 = vmatprep.mubr.f32.mxu0 0.0
    %2956 = vmatmul.mubr.f32.gmra.mrb[0].mxu0 %v2486
    %v2957 = vpop.f32.mrb[0].mxu0
    %v2958 = vadd.f32 0.0, %v2957
    %v2959 = vpop.f32.mrb[0].mxu0
    %2960 = vmatprep.mubr.f32.mxu0 0.0
    %2961 = vmatmul.mubr.f32.gmra.mrb[0].mxu0 %v2487
    %v2962 = vpop.f32.mrb[0].mxu0
    %v2963 = vadd.f32 0.0, %v2962
    %v2964 = vpop.f32.mrb[0].mxu0
    %2965 = vmatprep.mubr.f32.mxu0 0.0
    %2966 = vmatmul.mubr.f32.gmra.mrb[0].mxu0 %v2488
    %v2967 = vpop.f32.mrb[0].mxu0
    %v2968 = vadd.f32 0.0, %v2967
    %v2969 = vpop.f32.mrb[0].mxu0
    %2970 = vmatprep.mubr.f32.mxu0 0.0
    %2971 = vmatmul.mubr.f32.gmra.mrb[0].mxu0 %v2489
    %v2972 = vpop.f32.mrb[0].mxu0
    %v2973 = vadd.f32 0.0, %v2972
    %v2974 = vpop.f32.mrb[0].mxu0
    %2975 = vdwg.mxu0
    %v2976 = vadd.f32 %v2736, %v2898
    %v2977 = vadd.f32 %v2741, %v2903
    %v2978 = vadd.f32 %v2746, %v2908
    %v2979 = vadd.f32 %v2751, %v2913
    %v2980 = vadd.f32 %v2756, %v2918
    %v2981 = vadd.f32 %v2761, %v2923
    %v2982 = vadd.f32 %v2766, %v2928
    %v2983 = vadd.f32 %v2771, %v2933
    %v2984 = vadd.f32 %v2776, %v2938
    %v2985 = vadd.f32 %v2781, %v2943
    %v2986 = vadd.f32 %v2786, %v2948
    %v2987 = vadd.f32 %v2791, %v2953
    %v2988 = vadd.f32 %v2796, %v2958
    %v2989 = vadd.f32 %v2801, %v2963
    %v2990 = vadd.f32 %v2806, %v2968
    %v2991 = vadd.f32 %v2811, %v2973
    %s2992 = scalar_lea.vmem %s3, 3
    %v2993 = vld [vmem:[%s2992] sm:$0x1]
    %v2995 = vlaneseq
    %v2996 = vshrl.u32 %v2995, 7
    %v2997 = vsub.s32 0, %v2996
    %v2998 = vrot.slane %v2993, %v2997
    %v3000 = vadd.f32 %v2976, %v2998
    %v3001 = vadd.f32 %v2977, %v2998
    %v3002 = vadd.f32 %v2978, %v2998
    %v3003 = vadd.f32 %v2979, %v2998
    %v3004 = vadd.f32 %v2980, %v2998
    %v3005 = vadd.f32 %v2981, %v2998
    %v3006 = vadd.f32 %v2982, %v2998
    %v3007 = vadd.f32 %v2983, %v2998
    %v3008 = vadd.f32 %v2984, %v2998
    %v3009 = vadd.f32 %v2985, %v2998
    %v3010 = vadd.f32 %v2986, %v2998
    %v3011 = vadd.f32 %v2987, %v2998
    %v3012 = vadd.f32 %v2988, %v2998
    %v3013 = vadd.f32 %v2989, %v2998
    %v3014 = vadd.f32 %v2990, %v2998
    %v3015 = vadd.f32 %v2991, %v2998
    %v3016 = vadd.f32 %v3000, %v1724
    %v3017 = vadd.f32 %v3001, %v1725
    %v3018 = vadd.f32 %v3002, %v1726
    %v3019 = vadd.f32 %v3003, %v1727
    %v3020 = vadd.f32 %v3004, %v1728
    %v3021 = vadd.f32 %v3005, %v1729
    %v3022 = vadd.f32 %v3006, %v1730
    %v3023 = vadd.f32 %v3007, %v1731
    %v3024 = vadd.f32 %v3008, %v1732
    %v3025 = vadd.f32 %v3009, %v1733
    %v3026 = vadd.f32 %v3010, %v1734
    %v3027 = vadd.f32 %v3011, %v1735
    %v3028 = vadd.f32 %v3012, %v1736
    %v3029 = vadd.f32 %v3013, %v1737
    %v3030 = vadd.f32 %v3014, %v1738
    %v3031 = vadd.f32 %v3015, %v1739
    %v3032 = vld [vmem:[#allocation8] sm:$0xff]
    %v3033 = vld [vmem:[#allocation8 + $0x8] sm:$0xff]
    %v3034 = vld [vmem:[#allocation8 + $0x10] sm:$0xff]
    %v3035 = vld [vmem:[#allocation8 + $0x18] sm:$0xff]
    %v3036 = vld [vmem:[#allocation8 + $0x20] sm:$0xff]
    %v3037 = vld [vmem:[#allocation8 + $0x28] sm:$0xff]
    %v3038 = vld [vmem:[#allocation8 + $0x30] sm:$0xff]
    %v3039 = vld [vmem:[#allocation8 + $0x38] sm:$0xff]
    %v3040 = vld [vmem:[#allocation8 + $0x40] sm:$0xff]
    %v3041 = vld [vmem:[#allocation8 + $0x48] sm:$0xff]
    %v3042 = vld [vmem:[#allocation8 + $0x50] sm:$0xff]
    %v3043 = vld [vmem:[#allocation8 + $0x58] sm:$0xff]
    %v3044 = vld [vmem:[#allocation8 + $0x60] sm:$0xff]
    %v3045 = vld [vmem:[#allocation8 + $0x68] sm:$0xff]
    %v3046 = vld [vmem:[#allocation8 + $0x70] sm:$0xff]
    %v3047 = vld [vmem:[#allocation8 + $0x78] sm:$0xff]
    %v3048 = vld [vmem:[#allocation8 + $0x80] sm:$0xff]
    %v3049 = vld [vmem:[#allocation8 + $0x88] sm:$0xff]
    %v3050 = vld [vmem:[#allocation8 + $0x90] sm:$0xff]
    %v3051 = vld [vmem:[#allocation8 + $0x98] sm:$0xff]
    %v3052 = vld [vmem:[#allocation8 + $0xa0] sm:$0xff]
    %v3053 = vld [vmem:[#allocation8 + $0xa8] sm:$0xff]
    %v3054 = vld [vmem:[#allocation8 + $0xb0] sm:$0xff]
    %v3055 = vld [vmem:[#allocation8 + $0xb8] sm:$0xff]
    %v3056 = vld [vmem:[#allocation8 + $0xc0] sm:$0xff]
    %v3057 = vld [vmem:[#allocation8 + $0xc8] sm:$0xff]
    %v3058 = vld [vmem:[#allocation8 + $0xd0] sm:$0xff]
    %v3059 = vld [vmem:[#allocation8 + $0xd8] sm:$0xff]
    %v3060 = vld [vmem:[#allocation8 + $0xe0] sm:$0xff]
    %v3061 = vld [vmem:[#allocation8 + $0xe8] sm:$0xff]
    %v3062 = vld [vmem:[#allocation8 + $0xf0] sm:$0xff]
    %v3063 = vld [vmem:[#allocation8 + $0xf8] sm:$0xff]
    %3064 = vmatprep.subr.mxu0 %v3033
    %3065 = vmatpush1.msra.mxu0 %v3032
    %3066 = vmatprep.subr.mxu0 %v3035
    %3067 = vmatpush1.msra.mxu0 %v3034
    %3068 = vmatprep.subr.mxu0 %v3037
    %3069 = vmatpush1.msra.mxu0 %v3036
    %3070 = vmatprep.subr.mxu0 %v3039
    %3071 = vmatpush1.msra.mxu0 %v3038
    %3072 = vmatprep.subr.mxu0 %v3041
    %3073 = vmatpush1.msra.mxu0 %v3040
    %3074 = vmatprep.subr.mxu0 %v3043
    %3075 = vmatpush1.msra.mxu0 %v3042
    %3076 = vmatprep.subr.mxu0 %v3045
    %3077 = vmatpush1.msra.mxu0 %v3044
    %3078 = vmatprep.subr.mxu0 %v3047
    %3079 = vmatpush1.msra.mxu0 %v3046
    %3080 = vmatprep.subr.mxu0 %v3049
    %3081 = vmatpush1.msra.mxu0 %v3048
    %3082 = vmatprep.subr.mxu0 %v3051
    %3083 = vmatpush1.msra.mxu0 %v3050
    %3084 = vmatprep.subr.mxu0 %v3053
    %3085 = vmatpush1.msra.mxu0 %v3052
    %3086 = vmatprep.subr.mxu0 %v3055
    %3087 = vmatpush1.msra.mxu0 %v3054
    %3088 = vmatprep.subr.mxu0 %v3057
    %3089 = vmatpush1.msra.mxu0 %v3056
    %3090 = vmatprep.subr.mxu0 %v3059
    %3091 = vmatpush1.msra.mxu0 %v3058
    %3092 = vmatprep.subr.mxu0 %v3061
    %3093 = vmatpush1.msra.mxu0 %v3060
    %3094 = vmatprep.subr.mxu0 %v3063
    %3095 = vmatpush1.msra.mxu0 %v3062
    %3096 = vmatprep.subr.mxu0 0.0
    %3097 = vmatpush1.msra.mxu0 0.0
    %3098 = vmatprep.subr.mxu0 0.0
    %3099 = vmatpush1.msra.mxu0 0.0
    %3100 = vmatprep.subr.mxu0 0.0
    %3101 = vmatpush1.msra.mxu0 0.0
    %3102 = vmatprep.subr.mxu0 0.0
    %3103 = vmatpush1.msra.mxu0 0.0
    %3104 = vmatprep.subr.mxu0 0.0
    %3105 = vmatpush1.msra.mxu0 0.0
    %3106 = vmatprep.subr.mxu0 0.0
    %3107 = vmatpush1.msra.mxu0 0.0
    %3108 = vmatprep.subr.mxu0 0.0
    %3109 = vmatpush1.msra.mxu0 0.0
    %3110 = vmatprep.subr.mxu0 0.0
    %3111 = vmatpush1.msra.mxu0 0.0
    %3112 = vmatprep.subr.mxu0 0.0
    %3113 = vmatpush1.msra.mxu0 0.0
    %3114 = vmatprep.subr.mxu0 0.0
    %3115 = vmatpush1.msra.mxu0 0.0
    %3116 = vmatprep.subr.mxu0 0.0
    %3117 = vmatpush1.msra.mxu0 0.0
    %3118 = vmatprep.subr.mxu0 0.0
    %3119 = vmatpush1.msra.mxu0 0.0
    %3120 = vmatprep.subr.mxu0 0.0
    %3121 = vmatpush1.msra.mxu0 0.0
    %3122 = vmatprep.subr.mxu0 0.0
    %3123 = vmatpush1.msra.mxu0 0.0
    %3124 = vmatprep.subr.mxu0 0.0
    %3125 = vmatpush1.msra.mxu0 0.0
    %3126 = vmatprep.subr.mxu0 0.0
    %3127 = vmatpush1.msra.mxu0 0.0
    %3128 = vmatprep.mubr.f32.mxu0 0.0
    %3129 = vmatmul.mubr.f32.gmra.mrb[0].mxu0 %v3016
    %v3130 = vpop.f32.mrb[0].mxu0
    %v3131 = vadd.f32 0.0, %v3130
    %v3132 = vpop.f32.mrb[0].mxu0
    %v3133 = vadd.f32 0.0, %v3132
    %3134 = vmatprep.mubr.f32.mxu0 0.0
    %3135 = vmatmul.mubr.f32.gmra.mrb[0].mxu0 %v3017
    %v3136 = vpop.f32.mrb[0].mxu0
    %v3137 = vadd.f32 0.0, %v3136
    %v3138 = vpop.f32.mrb[0].mxu0
    %v3139 = vadd.f32 0.0, %v3138
    %3140 = vmatprep.mubr.f32.mxu0 0.0
    %3141 = vmatmul.mubr.f32.gmra.mrb[0].mxu0 %v3018
    %v3142 = vpop.f32.mrb[0].mxu0
    %v3143 = vadd.f32 0.0, %v3142
    %v3144 = vpop.f32.mrb[0].mxu0
    %v3145 = vadd.f32 0.0, %v3144
    %3146 = vmatprep.mubr.f32.mxu0 0.0
    %3147 = vmatmul.mubr.f32.gmra.mrb[0].mxu0 %v3019
    %v3148 = vpop.f32.mrb[0].mxu0
    %v3149 = vadd.f32 0.0, %v3148
    %v3150 = vpop.f32.mrb[0].mxu0
    %v3151 = vadd.f32 0.0, %v3150
    %3152 = vmatprep.mubr.f32.mxu0 0.0
    %3153 = vmatmul.mubr.f32.gmra.mrb[0].mxu0 %v3020
    %v3154 = vpop.f32.mrb[0].mxu0
    %v3155 = vadd.f32 0.0, %v3154
    %v3156 = vpop.f32.mrb[0].mxu0
    %v3157 = vadd.f32 0.0, %v3156
    %3158 = vmatprep.mubr.f32.mxu0 0.0
    %3159 = vmatmul.mubr.f32.gmra.mrb[0].mxu0 %v3021
    %v3160 = vpop.f32.mrb[0].mxu0
    %v3161 = vadd.f32 0.0, %v3160
    %v3162 = vpop.f32.mrb[0].mxu0
    %v3163 = vadd.f32 0.0, %v3162
    %3164 = vmatprep.mubr.f32.mxu0 0.0
    %3165 = vmatmul.mubr.f32.gmra.mrb[0].mxu0 %v3022
    %v3166 = vpop.f32.mrb[0].mxu0
    %v3167 = vadd.f32 0.0, %v3166
    %v3168 = vpop.f32.mrb[0].mxu0
    %v3169 = vadd.f32 0.0, %v3168
    %3170 = vmatprep.mubr.f32.mxu0 0.0
    %3171 = vmatmul.mubr.f32.gmra.mrb[0].mxu0 %v3023
    %v3172 = vpop.f32.mrb[0].mxu0
    %v3173 = vadd.f32 0.0, %v3172
    %v3174 = vpop.f32.mrb[0].mxu0
    %v3175 = vadd.f32 0.0, %v3174
    %3176 = vmatprep.mubr.f32.mxu0 0.0
    %3177 = vmatmul.mubr.f32.gmra.mrb[0].mxu0 %v3024
    %v3178 = vpop.f32.mrb[0].mxu0
    %v3179 = vadd.f32 0.0, %v3178
    %v3180 = vpop.f32.mrb[0].mxu0
    %v3181 = vadd.f32 0.0, %v3180
    %3182 = vmatprep.mubr.f32.mxu0 0.0
    %3183 = vmatmul.mubr.f32.gmra.mrb[0].mxu0 %v3025
    %v3184 = vpop.f32.mrb[0].mxu0
    %v3185 = vadd.f32 0.0, %v3184
    %v3186 = vpop.f32.mrb[0].mxu0
    %v3187 = vadd.f32 0.0, %v3186
    %3188 = vmatprep.mubr.f32.mxu0 0.0
    %3189 = vmatmul.mubr.f32.gmra.mrb[0].mxu0 %v3026
    %v3190 = vpop.f32.mrb[0].mxu0
    %v3191 = vadd.f32 0.0, %v3190
    %v3192 = vpop.f32.mrb[0].mxu0
    %v3193 = vadd.f32 0.0, %v3192
    %3194 = vmatprep.mubr.f32.mxu0 0.0
    %3195 = vmatmul.mubr.f32.gmra.mrb[0].mxu0 %v3027
    %v3196 = vpop.f32.mrb[0].mxu0
    %v3197 = vadd.f32 0.0, %v3196
    %v3198 = vpop.f32.mrb[0].mxu0
    %v3199 = vadd.f32 0.0, %v3198
    %3200 = vmatprep.mubr.f32.mxu0 0.0
    %3201 = vmatmul.mubr.f32.gmra.mrb[0].mxu0 %v3028
    %v3202 = vpop.f32.mrb[0].mxu0
    %v3203 = vadd.f32 0.0, %v3202
    %v3204 = vpop.f32.mrb[0].mxu0
    %v3205 = vadd.f32 0.0, %v3204
    %3206 = vmatprep.mubr.f32.mxu0 0.0
    %3207 = vmatmul.mubr.f32.gmra.mrb[0].mxu0 %v3029
    %v3208 = vpop.f32.mrb[0].mxu0
    %v3209 = vadd.f32 0.0, %v3208
    %v3210 = vpop.f32.mrb[0].mxu0
    %v3211 = vadd.f32 0.0, %v3210
    %3212 = vmatprep.mubr.f32.mxu0 0.0
    %3213 = vmatmul.mubr.f32.gmra.mrb[0].mxu0 %v3030
    %v3214 = vpop.f32.mrb[0].mxu0
    %v3215 = vadd.f32 0.0, %v3214
    %v3216 = vpop.f32.mrb[0].mxu0
    %v3217 = vadd.f32 0.0, %v3216
    %3218 = vmatprep.mubr.f32.mxu0 0.0
    %3219 = vmatmul.mubr.f32.gmra.mrb[0].mxu0 %v3031
    %v3220 = vpop.f32.mrb[0].mxu0
    %v3221 = vadd.f32 0.0, %v3220
    %v3222 = vpop.f32.mrb[0].mxu0
    %v3223 = vadd.f32 0.0, %v3222
    %3224 = vdwg.mxu0
    %v3225 = vld [vmem:[#allocation10] sm:$0xff]
    %v3226 = vld [vmem:[#allocation10 + $0x8] sm:$0xff]
    %v3227 = vld [vmem:[#allocation10 + $0x10] sm:$0xff]
    %v3228 = vld [vmem:[#allocation10 + $0x18] sm:$0xff]
    %v3229 = vld [vmem:[#allocation10 + $0x20] sm:$0xff]
    %v3230 = vld [vmem:[#allocation10 + $0x28] sm:$0xff]
    %v3231 = vld [vmem:[#allocation10 + $0x30] sm:$0xff]
    %v3232 = vld [vmem:[#allocation10 + $0x38] sm:$0xff]
    %v3233 = vld [vmem:[#allocation10 + $0x40] sm:$0xff]
    %v3234 = vld [vmem:[#allocation10 + $0x48] sm:$0xff]
    %v3235 = vld [vmem:[#allocation10 + $0x50] sm:$0xff]
    %v3236 = vld [vmem:[#allocation10 + $0x58] sm:$0xff]
    %v3237 = vld [vmem:[#allocation10 + $0x60] sm:$0xff]
    %v3238 = vld [vmem:[#allocation10 + $0x68] sm:$0xff]
    %v3239 = vld [vmem:[#allocation10 + $0x70] sm:$0xff]
    %v3240 = vld [vmem:[#allocation10 + $0x78] sm:$0xff]
    %v3241 = vld [vmem:[#allocation10 + $0x80] sm:$0xff]
    %v3242 = vld [vmem:[#allocation10 + $0x88] sm:$0xff]
    %v3243 = vld [vmem:[#allocation10 + $0x90] sm:$0xff]
    %v3244 = vld [vmem:[#allocation10 + $0x98] sm:$0xff]
    %v3245 = vld [vmem:[#allocation10 + $0xa0] sm:$0xff]
    %v3246 = vld [vmem:[#allocation10 + $0xa8] sm:$0xff]
    %v3247 = vld [vmem:[#allocation10 + $0xb0] sm:$0xff]
    %v3248 = vld [vmem:[#allocation10 + $0xb8] sm:$0xff]
    %v3249 = vld [vmem:[#allocation10 + $0xc0] sm:$0xff]
    %v3250 = vld [vmem:[#allocation10 + $0xc8] sm:$0xff]
    %v3251 = vld [vmem:[#allocation10 + $0xd0] sm:$0xff]
    %v3252 = vld [vmem:[#allocation10 + $0xd8] sm:$0xff]
    %v3253 = vld [vmem:[#allocation10 + $0xe0] sm:$0xff]
    %v3254 = vld [vmem:[#allocation10 + $0xe8] sm:$0xff]
    %v3255 = vld [vmem:[#allocation10 + $0xf0] sm:$0xff]
    %v3256 = vld [vmem:[#allocation10 + $0xf8] sm:$0xff]
    %v3257 = vld [vmem:[%s5] sm:$0x3]
    %v3259 = vlaneseq
    %v3260 = vshrl.u32 %v3259, 7
    %v3261 = vsub.s32 0, %v3260
    %v3262 = vrot.slane %v3257, %v3261
    %v3263 = vlaneseq
    %v3264 = vshrl.u32 %v3263, 7
    %v3265 = vsub.s32 1, %v3264
    %v3266 = vrot.slane %v3257, %v3265
    %3269 = vmatprep.subr.mxu0 %v3133
    %3270 = vmatpush1.msra.mxu0 %v3131
    %3271 = vmatprep.subr.mxu0 %v3139
    %3272 = vmatpush1.msra.mxu0 %v3137
    %3273 = vmatprep.subr.mxu0 %v3145
    %3274 = vmatpush1.msra.mxu0 %v3143
    %3275 = vmatprep.subr.mxu0 %v3151
    %3276 = vmatpush1.msra.mxu0 %v3149
    %3277 = vmatprep.subr.mxu0 %v3157
    %3278 = vmatpush1.msra.mxu0 %v3155
    %3279 = vmatprep.subr.mxu0 %v3163
    %3280 = vmatpush1.msra.mxu0 %v3161
    %3281 = vmatprep.subr.mxu0 %v3169
    %3282 = vmatpush1.msra.mxu0 %v3167
    %3283 = vmatprep.subr.mxu0 %v3175
    %3284 = vmatpush1.msra.mxu0 %v3173
    %3285 = vmatprep.subr.mxu0 %v3181
    %3286 = vmatpush1.msra.mxu0 %v3179
    %3287 = vmatprep.subr.mxu0 %v3187
    %3288 = vmatpush1.msra.mxu0 %v3185
    %3289 = vmatprep.subr.mxu0 %v3193
    %3290 = vmatpush1.msra.mxu0 %v3191
    %3291 = vmatprep.subr.mxu0 %v3199
    %3292 = vmatpush1.msra.mxu0 %v3197
    %3293 = vmatprep.subr.mxu0 %v3205
    %3294 = vmatpush1.msra.mxu0 %v3203
    %3295 = vmatprep.subr.mxu0 %v3211
    %3296 = vmatpush1.msra.mxu0 %v3209
    %3297 = vmatprep.subr.mxu0 %v3217
    %3298 = vmatpush1.msra.mxu0 %v3215
    %3299 = vmatprep.subr.mxu0 %v3223
    %3300 = vmatpush1.msra.mxu0 %v3221
    %3301 = vmatprep.subr.mxu0 0.0
    %3302 = vmatpush1.msra.mxu0 0.0
    %3303 = vmatprep.subr.mxu0 0.0
    %3304 = vmatpush1.msra.mxu0 0.0
    %3305 = vmatprep.subr.mxu0 0.0
    %3306 = vmatpush1.msra.mxu0 0.0
    %3307 = vmatprep.subr.mxu0 0.0
    %3308 = vmatpush1.msra.mxu0 0.0
    %3309 = vmatprep.subr.mxu0 0.0
    %3310 = vmatpush1.msra.mxu0 0.0
    %3311 = vmatprep.subr.mxu0 0.0
    %3312 = vmatpush1.msra.mxu0 0.0
    %3313 = vmatprep.subr.mxu0 0.0
    %3314 = vmatpush1.msra.mxu0 0.0
    %3315 = vmatprep.subr.mxu0 0.0
    %3316 = vmatpush1.msra.mxu0 0.0
    %3317 = vmatprep.subr.mxu0 0.0
    %3318 = vmatpush1.msra.mxu0 0.0
    %3319 = vmatprep.subr.mxu0 0.0
    %3320 = vmatpush1.msra.mxu0 0.0
    %3321 = vmatprep.subr.mxu0 0.0
    %3322 = vmatpush1.msra.mxu0 0.0
    %3323 = vmatprep.subr.mxu0 0.0
    %3324 = vmatpush1.msra.mxu0 0.0
    %3325 = vmatprep.subr.mxu0 0.0
    %3326 = vmatpush1.msra.mxu0 0.0
    %3327 = vmatprep.subr.mxu0 0.0
    %3328 = vmatpush1.msra.mxu0 0.0
    %3329 = vmatprep.subr.mxu0 0.0
    %3330 = vmatpush1.msra.mxu0 0.0
    %3331 = vmatprep.subr.mxu0 0.0
    %3332 = vmatpush1.msra.mxu0 0.0
    %3333 = vmatprep.mubr.f32.mxu0 0.0
    %3334 = vmatmul.mubr.f32.gmra.mrb[0].mxu0 %v3225
    %v3335 = vpop.f32.mrb[0].mxu0
    %v3336 = vadd.f32 %v3262, %v3335
    %v3337 = vpop.f32.mrb[0].mxu0
    %v3338 = vadd.f32 %v3266, %v3337
    %3339 = vmatprep.mubr.f32.mxu0 0.0
    %3340 = vmatmul.mubr.f32.gmra.mrb[0].mxu0 %v3226
    %v3341 = vpop.f32.mrb[0].mxu0
    %v3342 = vadd.f32 %v3262, %v3341
    %v3343 = vpop.f32.mrb[0].mxu0
    %v3344 = vadd.f32 %v3266, %v3343
    %3345 = vmatprep.mubr.f32.mxu0 0.0
    %3346 = vmatmul.mubr.f32.gmra.mrb[0].mxu0 %v3227
    %v3347 = vpop.f32.mrb[0].mxu0
    %v3348 = vadd.f32 %v3262, %v3347
    %v3349 = vpop.f32.mrb[0].mxu0
    %v3350 = vadd.f32 %v3266, %v3349
    %3351 = vmatprep.mubr.f32.mxu0 0.0
    %3352 = vmatmul.mubr.f32.gmra.mrb[0].mxu0 %v3228
    %v3353 = vpop.f32.mrb[0].mxu0
    %v3354 = vadd.f32 %v3262, %v3353
    %v3355 = vpop.f32.mrb[0].mxu0
    %v3356 = vadd.f32 %v3266, %v3355
    %3357 = vmatprep.mubr.f32.mxu0 0.0
    %3358 = vmatmul.mubr.f32.gmra.mrb[0].mxu0 %v3229
    %v3359 = vpop.f32.mrb[0].mxu0
    %v3360 = vadd.f32 %v3262, %v3359
    %v3361 = vpop.f32.mrb[0].mxu0
    %v3362 = vadd.f32 %v3266, %v3361
    %3363 = vmatprep.mubr.f32.mxu0 0.0
    %3364 = vmatmul.mubr.f32.gmra.mrb[0].mxu0 %v3230
    %v3365 = vpop.f32.mrb[0].mxu0
    %v3366 = vadd.f32 %v3262, %v3365
    %v3367 = vpop.f32.mrb[0].mxu0
    %v3368 = vadd.f32 %v3266, %v3367
    %3369 = vmatprep.mubr.f32.mxu0 0.0
    %3370 = vmatmul.mubr.f32.gmra.mrb[0].mxu0 %v3231
    %v3371 = vpop.f32.mrb[0].mxu0
    %v3372 = vadd.f32 %v3262, %v3371
    %v3373 = vpop.f32.mrb[0].mxu0
    %v3374 = vadd.f32 %v3266, %v3373
    %3375 = vmatprep.mubr.f32.mxu0 0.0
    %3376 = vmatmul.mubr.f32.gmra.mrb[0].mxu0 %v3232
    %v3377 = vpop.f32.mrb[0].mxu0
    %v3378 = vadd.f32 %v3262, %v3377
    %v3379 = vpop.f32.mrb[0].mxu0
    %v3380 = vadd.f32 %v3266, %v3379
    %3381 = vmatprep.mubr.f32.mxu0 0.0
    %3382 = vmatmul.mubr.f32.gmra.mrb[0].mxu0 %v3233
    %v3383 = vpop.f32.mrb[0].mxu0
    %v3384 = vadd.f32 %v3262, %v3383
    %v3385 = vpop.f32.mrb[0].mxu0
    %v3386 = vadd.f32 %v3266, %v3385
    %3387 = vmatprep.mubr.f32.mxu0 0.0
    %3388 = vmatmul.mubr.f32.gmra.mrb[0].mxu0 %v3234
    %v3389 = vpop.f32.mrb[0].mxu0
    %v3390 = vadd.f32 %v3262, %v3389
    %v3391 = vpop.f32.mrb[0].mxu0
    %v3392 = vadd.f32 %v3266, %v3391
    %3393 = vmatprep.mubr.f32.mxu0 0.0
    %3394 = vmatmul.mubr.f32.gmra.mrb[0].mxu0 %v3235
    %v3395 = vpop.f32.mrb[0].mxu0
    %v3396 = vadd.f32 %v3262, %v3395
    %v3397 = vpop.f32.mrb[0].mxu0
    %v3398 = vadd.f32 %v3266, %v3397
    %3399 = vmatprep.mubr.f32.mxu0 0.0
    %3400 = vmatmul.mubr.f32.gmra.mrb[0].mxu0 %v3236
    %v3401 = vpop.f32.mrb[0].mxu0
    %v3402 = vadd.f32 %v3262, %v3401
    %v3403 = vpop.f32.mrb[0].mxu0
    %v3404 = vadd.f32 %v3266, %v3403
    %3405 = vmatprep.mubr.f32.mxu0 0.0
    %3406 = vmatmul.mubr.f32.gmra.mrb[0].mxu0 %v3237
    %v3407 = vpop.f32.mrb[0].mxu0
    %v3408 = vadd.f32 %v3262, %v3407
    %v3409 = vpop.f32.mrb[0].mxu0
    %v3410 = vadd.f32 %v3266, %v3409
    %3411 = vmatprep.mubr.f32.mxu0 0.0
    %3412 = vmatmul.mubr.f32.gmra.mrb[0].mxu0 %v3238
    %v3413 = vpop.f32.mrb[0].mxu0
    %v3414 = vadd.f32 %v3262, %v3413
    %v3415 = vpop.f32.mrb[0].mxu0
    %v3416 = vadd.f32 %v3266, %v3415
    %3417 = vmatprep.mubr.f32.mxu0 0.0
    %3418 = vmatmul.mubr.f32.gmra.mrb[0].mxu0 %v3239
    %v3419 = vpop.f32.mrb[0].mxu0
    %v3420 = vadd.f32 %v3262, %v3419
    %v3421 = vpop.f32.mrb[0].mxu0
    %v3422 = vadd.f32 %v3266, %v3421
    %3423 = vmatprep.mubr.f32.mxu0 0.0
    %3424 = vmatmul.mubr.f32.gmra.mrb[0].mxu0 %v3240
    %v3425 = vpop.f32.mrb[0].mxu0
    %v3426 = vadd.f32 %v3262, %v3425
    %v3427 = vpop.f32.mrb[0].mxu0
    %v3428 = vadd.f32 %v3266, %v3427
    %3429 = vmatprep.mubr.f32.mxu0 0.0
    %3430 = vmatmul.mubr.f32.gmra.mrb[0].mxu0 %v3241
    %v3431 = vpop.f32.mrb[0].mxu0
    %v3432 = vadd.f32 %v3262, %v3431
    %v3433 = vpop.f32.mrb[0].mxu0
    %v3434 = vadd.f32 %v3266, %v3433
    %3435 = vmatprep.mubr.f32.mxu0 0.0
    %3436 = vmatmul.mubr.f32.gmra.mrb[0].mxu0 %v3242
    %v3437 = vpop.f32.mrb[0].mxu0
    %v3438 = vadd.f32 %v3262, %v3437
    %v3439 = vpop.f32.mrb[0].mxu0
    %v3440 = vadd.f32 %v3266, %v3439
    %3441 = vmatprep.mubr.f32.mxu0 0.0
    %3442 = vmatmul.mubr.f32.gmra.mrb[0].mxu0 %v3243
    %v3443 = vpop.f32.mrb[0].mxu0
    %v3444 = vadd.f32 %v3262, %v3443
    %v3445 = vpop.f32.mrb[0].mxu0
    %v3446 = vadd.f32 %v3266, %v3445
    %3447 = vmatprep.mubr.f32.mxu0 0.0
    %3448 = vmatmul.mubr.f32.gmra.mrb[0].mxu0 %v3244
    %v3449 = vpop.f32.mrb[0].mxu0
    %v3450 = vadd.f32 %v3262, %v3449
    %v3451 = vpop.f32.mrb[0].mxu0
    %v3452 = vadd.f32 %v3266, %v3451
    %3453 = vmatprep.mubr.f32.mxu0 0.0
    %3454 = vmatmul.mubr.f32.gmra.mrb[0].mxu0 %v3245
    %v3455 = vpop.f32.mrb[0].mxu0
    %v3456 = vadd.f32 %v3262, %v3455
    %v3457 = vpop.f32.mrb[0].mxu0
    %v3458 = vadd.f32 %v3266, %v3457
    %3459 = vmatprep.mubr.f32.mxu0 0.0
    %3460 = vmatmul.mubr.f32.gmra.mrb[0].mxu0 %v3246
    %v3461 = vpop.f32.mrb[0].mxu0
    %v3462 = vadd.f32 %v3262, %v3461
    %v3463 = vpop.f32.mrb[0].mxu0
    %v3464 = vadd.f32 %v3266, %v3463
    %3465 = vmatprep.mubr.f32.mxu0 0.0
    %3466 = vmatmul.mubr.f32.gmra.mrb[0].mxu0 %v3247
    %v3467 = vpop.f32.mrb[0].mxu0
    %v3468 = vadd.f32 %v3262, %v3467
    %v3469 = vpop.f32.mrb[0].mxu0
    %v3470 = vadd.f32 %v3266, %v3469
    %3471 = vmatprep.mubr.f32.mxu0 0.0
    %3472 = vmatmul.mubr.f32.gmra.mrb[0].mxu0 %v3248
    %v3473 = vpop.f32.mrb[0].mxu0
    %v3474 = vadd.f32 %v3262, %v3473
    %v3475 = vpop.f32.mrb[0].mxu0
    %v3476 = vadd.f32 %v3266, %v3475
    %3477 = vmatprep.mubr.f32.mxu0 0.0
    %3478 = vmatmul.mubr.f32.gmra.mrb[0].mxu0 %v3249
    %v3479 = vpop.f32.mrb[0].mxu0
    %v3480 = vadd.f32 %v3262, %v3479
    %v3481 = vpop.f32.mrb[0].mxu0
    %v3482 = vadd.f32 %v3266, %v3481
    %3483 = vmatprep.mubr.f32.mxu0 0.0
    %3484 = vmatmul.mubr.f32.gmra.mrb[0].mxu0 %v3250
    %v3485 = vpop.f32.mrb[0].mxu0
    %v3486 = vadd.f32 %v3262, %v3485
    %v3487 = vpop.f32.mrb[0].mxu0
    %v3488 = vadd.f32 %v3266, %v3487
    %3489 = vmatprep.mubr.f32.mxu0 0.0
    %3490 = vmatmul.mubr.f32.gmra.mrb[0].mxu0 %v3251
    %v3491 = vpop.f32.mrb[0].mxu0
    %v3492 = vadd.f32 %v3262, %v3491
    %v3493 = vpop.f32.mrb[0].mxu0
    %v3494 = vadd.f32 %v3266, %v3493
    %3495 = vmatprep.mubr.f32.mxu0 0.0
    %3496 = vmatmul.mubr.f32.gmra.mrb[0].mxu0 %v3252
    %v3497 = vpop.f32.mrb[0].mxu0
    %v3498 = vadd.f32 %v3262, %v3497
    %v3499 = vpop.f32.mrb[0].mxu0
    %v3500 = vadd.f32 %v3266, %v3499
    %3501 = vmatprep.mubr.f32.mxu0 0.0
    %3502 = vmatmul.mubr.f32.gmra.mrb[0].mxu0 %v3253
    %v3503 = vpop.f32.mrb[0].mxu0
    %v3504 = vadd.f32 %v3262, %v3503
    %v3505 = vpop.f32.mrb[0].mxu0
    %v3506 = vadd.f32 %v3266, %v3505
    %3507 = vmatprep.mubr.f32.mxu0 0.0
    %3508 = vmatmul.mubr.f32.gmra.mrb[0].mxu0 %v3254
    %v3509 = vpop.f32.mrb[0].mxu0
    %v3510 = vadd.f32 %v3262, %v3509
    %v3511 = vpop.f32.mrb[0].mxu0
    %v3512 = vadd.f32 %v3266, %v3511
    %3513 = vmatprep.mubr.f32.mxu0 0.0
    %3514 = vmatmul.mubr.f32.gmra.mrb[0].mxu0 %v3255
    %v3515 = vpop.f32.mrb[0].mxu0
    %v3516 = vadd.f32 %v3262, %v3515
    %v3517 = vpop.f32.mrb[0].mxu0
    %v3518 = vadd.f32 %v3266, %v3517
    %3519 = vmatprep.mubr.f32.mxu0 0.0
    %3520 = vmatmul.mubr.f32.gmra.mrb[0].mxu0 %v3256
    %v3521 = vpop.f32.mrb[0].mxu0
    %v3522 = vadd.f32 %v3262, %v3521
    %v3523 = vpop.f32.mrb[0].mxu0
    %v3524 = vadd.f32 %v3266, %v3523
    %3525 = vdwg.mxu0
    %3526 = vst [vmem:[#allocation11] sm:$0xff] %v3336
    %3527 = vst [vmem:[#allocation11 + $0x8] sm:$0xff] %v3338
    %3528 = vst [vmem:[#allocation11 + $0x10] sm:$0xff] %v3342
    %3529 = vst [vmem:[#allocation11 + $0x18] sm:$0xff] %v3344
    %3530 = vst [vmem:[#allocation11 + $0x20] sm:$0xff] %v3348
    %3531 = vst [vmem:[#allocation11 + $0x28] sm:$0xff] %v3350
    %3532 = vst [vmem:[#allocation11 + $0x30] sm:$0xff] %v3354
    %3533 = vst [vmem:[#allocation11 + $0x38] sm:$0xff] %v3356
    %3534 = vst [vmem:[#allocation11 + $0x40] sm:$0xff] %v3360
    %3535 = vst [vmem:[#allocation11 + $0x48] sm:$0xff] %v3362
    %3536 = vst [vmem:[#allocation11 + $0x50] sm:$0xff] %v3366
    %3537 = vst [vmem:[#allocation11 + $0x58] sm:$0xff] %v3368
    %3538 = vst [vmem:[#allocation11 + $0x60] sm:$0xff] %v3372
    %3539 = vst [vmem:[#allocation11 + $0x68] sm:$0xff] %v3374
    %3540 = vst [vmem:[#allocation11 + $0x70] sm:$0xff] %v3378
    %3541 = vst [vmem:[#allocation11 + $0x78] sm:$0xff] %v3380
    %3542 = vst [vmem:[#allocation11 + $0x80] sm:$0xff] %v3384
    %3543 = vst [vmem:[#allocation11 + $0x88] sm:$0xff] %v3386
    %3544 = vst [vmem:[#allocation11 + $0x90] sm:$0xff] %v3390
    %3545 = vst [vmem:[#allocation11 + $0x98] sm:$0xff] %v3392
    %3546 = vst [vmem:[#allocation11 + $0xa0] sm:$0xff] %v3396
    %3547 = vst [vmem:[#allocation11 + $0xa8] sm:$0xff] %v3398
    %3548 = vst [vmem:[#allocation11 + $0xb0] sm:$0xff] %v3402
    %3549 = vst [vmem:[#allocation11 + $0xb8] sm:$0xff] %v3404
    %3550 = vst [vmem:[#allocation11 + $0xc0] sm:$0xff] %v3408
    %3551 = vst [vmem:[#allocation11 + $0xc8] sm:$0xff] %v3410
    %3552 = vst [vmem:[#allocation11 + $0xd0] sm:$0xff] %v3414
    %3553 = vst [vmem:[#allocation11 + $0xd8] sm:$0xff] %v3416
    %3554 = vst [vmem:[#allocation11 + $0xe0] sm:$0xff] %v3420
    %3555 = vst [vmem:[#allocation11 + $0xe8] sm:$0xff] %v3422
    %3556 = vst [vmem:[#allocation11 + $0xf0] sm:$0xff] %v3426
    %3557 = vst [vmem:[#allocation11 + $0xf8] sm:$0xff] %v3428
    %3558 = vst [vmem:[#allocation11 + $0x100] sm:$0xff] %v3432
    %3559 = vst [vmem:[#allocation11 + $0x108] sm:$0xff] %v3434
    %3560 = vst [vmem:[#allocation11 + $0x110] sm:$0xff] %v3438
    %3561 = vst [vmem:[#allocation11 + $0x118] sm:$0xff] %v3440
    %3562 = vst [vmem:[#allocation11 + $0x120] sm:$0xff] %v3444
    %3563 = vst [vmem:[#allocation11 + $0x128] sm:$0xff] %v3446
    %3564 = vst [vmem:[#allocation11 + $0x130] sm:$0xff] %v3450
    %3565 = vst [vmem:[#allocation11 + $0x138] sm:$0xff] %v3452
    %3566 = vst [vmem:[#allocation11 + $0x140] sm:$0xff] %v3456
    %3567 = vst [vmem:[#allocation11 + $0x148] sm:$0xff] %v3458
    %3568 = vst [vmem:[#allocation11 + $0x150] sm:$0xff] %v3462
    %3569 = vst [vmem:[#allocation11 + $0x158] sm:$0xff] %v3464
    %3570 = vst [vmem:[#allocation11 + $0x160] sm:$0xff] %v3468
    %3571 = vst [vmem:[#allocation11 + $0x168] sm:$0xff] %v3470
    %3572 = vst [vmem:[#allocation11 + $0x170] sm:$0xff] %v3474
    %3573 = vst [vmem:[#allocation11 + $0x178] sm:$0xff] %v3476
    %3574 = vst [vmem:[#allocation11 + $0x180] sm:$0xff] %v3480
    %3575 = vst [vmem:[#allocation11 + $0x188] sm:$0xff] %v3482
    %3576 = vst [vmem:[#allocation11 + $0x190] sm:$0xff] %v3486
    %3577 = vst [vmem:[#allocation11 + $0x198] sm:$0xff] %v3488
    %3578 = vst [vmem:[#allocation11 + $0x1a0] sm:$0xff] %v3492
    %3579 = vst [vmem:[#allocation11 + $0x1a8] sm:$0xff] %v3494
    %3580 = vst [vmem:[#allocation11 + $0x1b0] sm:$0xff] %v3498
    %3581 = vst [vmem:[#allocation11 + $0x1b8] sm:$0xff] %v3500
    %3582 = vst [vmem:[#allocation11 + $0x1c0] sm:$0xff] %v3504
    %3583 = vst [vmem:[#allocation11 + $0x1c8] sm:$0xff] %v3506
    %3584 = vst [vmem:[#allocation11 + $0x1d0] sm:$0xff] %v3510
    %3585 = vst [vmem:[#allocation11 + $0x1d8] sm:$0xff] %v3512
    %3586 = vst [vmem:[#allocation11 + $0x1e0] sm:$0xff] %v3516
    %3587 = vst [vmem:[#allocation11 + $0x1e8] sm:$0xff] %v3518
    %3588 = vst [vmem:[#allocation11 + $0x1f0] sm:$0xff] %v3522
    %3589 = vst [vmem:[#allocation11 + $0x1f8] sm:$0xff] %v3524
    // Predicated region
    $region50: #{tpu_custom_call.1} parent=1 // pred_check
      _
    $region51: #{tpu_custom_call.1} parent=1 // pred_check_branch
      %3591 = sbr.rel (0) target = $region53
    $region52: #{tpu_custom_call.1} parent=1 // pred_region
      %s3593 = ssub.s32 8192, 8192
      %3594 = vsyncadd [#allocation4], %s3593
      %s3595 = sshll.u32 [#allocation11], 4
      %s3596 = int_to_ptr.vmem [resolvable:$true] %s3595
      %3601 = dma.vmem_to_hbm [thread:$0]  %s3596, 8192, %s7, [#allocation4], 256, 256, 16
    $region53: #{tpu_custom_call.1} parent=1 // pred_fallthru
      _
    // Predicated region
    $region54: #{tpu_custom_call.1} parent=1 // pred_check
      _
    $region55: #{tpu_custom_call.1} parent=1 // pred_check_branch
      %3603 = sbr.rel (0) target = $region57
    $region56: #{tpu_custom_call.1} parent=1 // pred_region
      %3604 = dma.done [#allocation4], 8192
    $region57: #{tpu_custom_call.1} parent=1 // pred_fallthru
      _
    %3605 = vsyncpa [#allocation3], 1
    %3606 = vsyncpa [#allocation6], 1
    %3607 = vsyncpa [#allocation9], 1
    %3608 = vsyncpa [#allocation4], 1

</llo_original>
